<compile_context>
chip_gen: v7x
topology: tpu7x:2x2x1
jax: 0.10.0
libtpu: 0.0.40
codegen_flags: <defaults>
</compile_context>

<pallas_src>
import functools

import jax
import jax.numpy as jnp
from jax import lax
from jax.experimental import pallas as pl
from jax.experimental.pallas import tpu as pltpu

_EPS_SQ = 1e-24            # == F.normalize(eps=1e-12) applied on the squared norm
_LOGIT_SCALE_MAX = 4.6052
_NEG_BIG = -1e30           # softmax mask value for lane-padded text columns


def _round_up(x, m):
    return ((x + m - 1) // m) * m


def _round_down(x, m):
    return max(m, (x // m) * m)


def _vmem_capacity_bytes():
    """Physical VMEM of the current generation (v5e/v6e: 128 MiB, v7x: 64 MiB per TC)."""
    try:
        cap = int(pltpu.get_tpu_info().vmem_capacity_bytes)
        if cap > 0:
            return cap
    except Exception:
        pass
    return 128 * 1024 * 1024


def _pick_tile(dim, target, mult):
    """Tile size (multiple of `mult`, <= `target`) for a 'parallel' grid axis.

    Minimizes padding waste; on megacore parts (v7x: 2 TensorCores) prefers >=2 grid
    steps whenever the split introduces no extra padding.
    """
    padded = _round_up(max(dim, 1), mult)
    target = _round_up(max(min(target, padded), mult), mult)
    n_steps = pl.cdiv(padded, target)
    tile = _round_up(pl.cdiv(padded, n_steps), mult)
    if n_steps == 1 and padded >= 2 * mult and (padded // 2) % mult == 0:
        tile = padded // 2
    return tile


def _pad_axis(x, axis, mult):
    pad = (-x.shape[axis]) % mult
    if pad:
        widths = [(0, 0)] * x.ndim
        widths[axis] = (0, pad)
        x = jnp.pad(x, widths)
    return x


def _l2_normalize(x, out_dtype=None):
    """x / max(||x||, eps) via rsqrt (EUP) instead of sqrt + vector divide (VPU)."""
    ssq = jnp.sum(x * x, axis=-1, keepdims=True)
    y = x * lax.rsqrt(jnp.maximum(ssq, _EPS_SQ))
    return y if out_dtype is None else y.astype(out_dtype)


def _text_proj_onepass_kernel(inv_s, th_ref, w_ref, te_ref):
    """Single-pass text ProjectionLayer: mean over full (layer*seq) -> norm -> @W -> norm."""
    # upcast fused into the reduction (no materialized f32 copy of the block)
    feat = jnp.sum(th_ref[...], axis=1, dtype=jnp.float32) * inv_s
    tn = _l2_normalize(feat, jnp.bfloat16)                   # bf16 into the MXU
    te = jnp.dot(tn, w_ref[...], preferred_element_type=jnp.float32)
    te_ref[...] = _l2_normalize(te, te_ref.dtype)


def _text_proj_acc_kernel(inv_s, th_ref, w_ref, te_ref, acc_ref):
    """Chunked text ProjectionLayer: accumulate (layer*seq) chunks, finalize on the last."""
    s_idx = pl.program_id(1)

    @pl.when(s_idx == 0)
    def _init():
        acc_ref[...] = jnp.zeros_like(acc_ref)

    acc_ref[...] += jnp.sum(th_ref[...], axis=1, dtype=jnp.float32)

    @pl.when(s_idx == pl.num_programs(1) - 1)
    def _finalize():
        feat = acc_ref[...] * inv_s                          # mean == sum * (1/S)
        tn = _l2_normalize(feat, jnp.bfloat16)
        te = jnp.dot(tn, w_ref[...], preferred_element_type=jnp.float32)
        te_ref[...] = _l2_normalize(te, te_ref.dtype)


def _vision_logits_kernel(n_text, scale_ref, vf_ref, w_ref, tet_ref, probs_ref, logits_ref):
    """Vision ProjectionLayer + compute_logits + softmax over the (lane-padded) text axis.

    scale_ref: SMEM (1,) f32 scalar-prefetch ref holding the raw logit_scale parameter.
    tet_ref:   VMEM-resident transposed text embeddings (proj_dim, Bt padded to 128).
    """
    vn = _l2_normalize(vf_ref[...].astype(jnp.float32), jnp.bfloat16)
    ve = jnp.dot(vn, w_ref[...], preferred_element_type=jnp.float32)
    ve = _l2_normalize(ve, jnp.bfloat16)

    # clamp(0, 4.6052) then exp, on the SMEM scalar (off the vector critical path).
    scale = jnp.exp(jnp.clip(scale_ref[0], 0.0, _LOGIT_SCALE_MAX))

    # logits_per_image = ve @ te.T * scale; te.T was formed once in the wrapper, so this
    # is a plain (bi_tile,512)@(512,Bt128) MXU matmul with no per-tile transpose handling.
    logits = jnp.dot(ve, tet_ref[...], preferred_element_type=jnp.float32) * scale

    # Mask lane-padded text columns so they carry no probability mass in the softmax.
    col = lax.broadcasted_iota(jnp.int32, logits.shape, 1)
    masked = jnp.where(col < n_text, logits, _NEG_BIG)
    m = jnp.max(masked, axis=-1, keepdims=True)
    e = jnp.exp(masked - m)
    # approx reciprocal (EUP): rows sum to 1 within ~1e-3; use approx=False if exact needed.
    probs = e * pl.reciprocal(jnp.sum(e, axis=-1, keepdims=True), approx=True)

    # NOTE(v5e): if store-slot pressure ever matters, logits could be emitted in bf16.
    logits_ref[...] = logits
    probs_ref[...] = probs


def clipr_forward(vision_feats, text_hidden_states, w_vis, w_txt, logit_scale,
                  *, bt_tile=None, s_tile=None, bi_tile=None):
    """vision_feats: (Bi, 1024); text_hidden_states: (Bt, 3, L, 768);
    w_vis: (1024, 512); w_txt: (768, 512); logit_scale: (1, 1).
    Returns (probs, logits) of shape (Bi, Bt)."""
    Bi, v_dim = vision_feats.shape
    Bt, n_layers, L, t_dim = text_hidden_states.shape
    p_dim = w_txt.shape[1]
    S = n_layers * L

    # ---- per-generation VMEM budgets (v5e/v6e 128 MiB, v7x 64 MiB) ----
    vmem_cap = _vmem_capacity_bytes()
    vmem_limit = min(vmem_cap * 3 // 4, 96 * 1024 * 1024)
    th_budget = max(2 * 1024 * 1024, vmem_cap // 8)   # per-buffer bf16 text block budget

    # bf16 for the dominant HBM streams and the MXU weight tiles.
    th = text_hidden_states.reshape(Bt, S, t_dim).astype(jnp.bfloat16)
    vf = vision_feats.astype(jnp.bfloat16)
    w_txt_bf = w_txt.astype(jnp.bfloat16)
    w_vis_bf = w_vis.astype(jnp.bfloat16)
    scale_flat = logit_scale.reshape(1).astype(jnp.float32)

    # ---- Kernel A tiling: collapse the seq axis when the full slab fits the budget ----
    row_bytes_full = S * t_dim * 2
    if s_tile is None:
        s_tile = S if 16 * row_bytes_full <= th_budget else 128
    s_tile = min(s_tile, S)
    if s_tile < S:
        s_tile = min(_round_up(s_tile, 16), _round_up(S, 16))
    single_pass = s_tile >= S
    if single_pass:
        s_tile = S

    block_row_bytes = s_tile * t_dim * 2
    bt_cap = _round_down(th_budget // max(block_row_bytes, 1), 16)
    if bt_tile is None:
        bt_tile = 256 if single_pass else 128           # M fed to the 256-wide MXU (v6e/v7x)
    bt_tile = _pick_tile(Bt, min(bt_tile, bt_cap), 16)

    th = _pad_axis(th, 0, bt_tile)
    if not single_pass:
        th = _pad_axis(th, 1, s_tile)                    # zero pad is safe (sum unchanged)
    bt_pad, s_pad = th.shape[0], th.shape[1]

    if single_pass:
        te_pad = pl.pallas_call(
            functools.partial(_text_proj_onepass_kernel, 1.0 / S),
            out_shape=jax.ShapeDtypeStruct((bt_pad, p_dim), jnp.bfloat16),
            grid=(bt_pad // bt_tile,),
            in_specs=[
                pl.BlockSpec((bt_tile, S, t_dim), lambda i: (i, 0, 0)),
                pl.BlockSpec((t_dim, p_dim), lambda i: (0, 0)),      # W_txt resident
            ],
            out_specs=pl.BlockSpec((bt_tile, p_dim), lambda i: (i, 0)),
            compiler_params=pltpu.CompilerParams(
                dimension_semantics=("parallel",),
                vmem_limit_bytes=vmem_limit),
        )(th, w_txt_bf)
    else:
        te_pad = pl.pallas_call(
            functools.partial(_text_proj_acc_kernel, 1.0 / S),
            out_shape=jax.ShapeDtypeStruct((bt_pad, p_dim), jnp.bfloat16),
            grid=(bt_pad // bt_tile, s_pad // s_tile),
            in_specs=[
                pl.BlockSpec((bt_tile, s_tile, t_dim), lambda i, s: (i, s, 0)),
                pl.BlockSpec((t_dim, p_dim), lambda i, s: (0, 0)),   # W_txt resident
            ],
            out_specs=pl.BlockSpec((bt_tile, p_dim), lambda i, s: (i, 0)),
            scratch_shapes=[pltpu.VMEM((bt_tile, t_dim), jnp.float32)],
            compiler_params=pltpu.CompilerParams(
                dimension_semantics=("parallel", "arbitrary"),
                vmem_limit_bytes=vmem_limit),
        )(th, w_txt_bf)

    # Lane-dense text axis for Kernel B: pad Bt to a multiple of 128 and transpose once in
    # the wrapper so the logits matmul RHS is already (proj_dim, Bt128).
    te_t = jnp.transpose(_pad_axis(te_pad[:Bt], 0, 128))            # (p_dim, bt128) bf16
    bt128 = te_t.shape[1]

    # ---- Kernel B tiling (vision batch) ----
    if bi_tile is None:
        bi_tile = 256                      # M=256 for the v6e/v7x MXU (v5e just runs 2 passes)
    bi_tile = _pick_tile(Bi, bi_tile, 16)
    vf = _pad_axis(vf, 0, bi_tile)
    bi_pad = vf.shape[0]

    grid_spec = pltpu.PrefetchScalarGridSpec(
        num_scalar_prefetch=1,                                       # logit_scale -> SMEM
        grid=(bi_pad // bi_tile,),
        in_specs=[
            pl.BlockSpec((bi_tile, v_dim), lambda i, s: (i, 0)),
            pl.BlockSpec((v_dim, p_dim), lambda i, s: (0, 0)),       # W_vis resident
            pl.BlockSpec((p_dim, bt128), lambda i, s: (0, 0)),       # te.T resident
        ],
        out_specs=[
            pl.BlockSpec((bi_tile, bt128), lambda i, s: (i, 0)),
            pl.BlockSpec((bi_tile, bt128), lambda i, s: (i, 0)),
        ],
    )
    probs_pad, logits_pad = pl.pallas_call(
        functools.partial(_vision_logits_kernel, Bt),
        out_shape=(jax.ShapeDtypeStruct((bi_pad, bt128), jnp.float32),   # probs
                   jax.ShapeDtypeStruct((bi_pad, bt128), jnp.float32)),  # logits
        grid_spec=grid_spec,
        compiler_params=pltpu.CompilerParams(
            dimension_semantics=("parallel",),
            vmem_limit_bytes=vmem_limit),
    )(scale_flat, vf, w_vis_bf, te_t)

    return probs_pad[:Bi, :Bt], logits_pad[:Bi, :Bt]


if __name__ == "__main__":
    # Module-implied dims: vision_dim=1024, text hidden=768, proj_dim=512.
    Bi, Bt, L = 2, 16, 8
    VDIM, TDIM, PDIM = 1024, 768, 512

    key = jax.random.PRNGKey(0)
    k1, k2, k3, k4 = jax.random.split(key, 4)

    vision_feats = jax.random.normal(k1, (Bi, VDIM), dtype=jnp.float32)
    text_hidden_states = jax.random.normal(k2, (Bt, 3, L, TDIM), dtype=jnp.float32)
    w_vis = jax.random.normal(k3, (VDIM, PDIM), dtype=jnp.float32) * 0.02
    w_txt = jax.random.normal(k4, (TDIM, PDIM), dtype=jnp.float32) * 0.02
    logit_scale = jnp.array([[jnp.log(1.0 / 0.07)]], dtype=jnp.float32)

    probs, logits = clipr_forward(vision_feats, text_hidden_states, w_vis, w_txt,
                                  logit_scale)
    jax.block_until_ready((probs, logits))

    # plain-JAX f32 reference (module semantics)
    def ref(vf, th, wv, wt, ls):
        tfeat = th.reshape(Bt, 3 * L, TDIM).mean(axis=1)
        tn = tfeat / jnp.linalg.norm(tfeat, axis=-1, keepdims=True)
        te = tn @ wt
        te = te / jnp.linalg.norm(te, axis=-1, keepdims=True)
        vn = vf / jnp.linalg.norm(vf, axis=-1, keepdims=True)
        ve = vn @ wv
        ve = ve / jnp.linalg.norm(ve, axis=-1, keepdims=True)
        scale = jnp.exp(jnp.clip(ls[0, 0], 0.0, 4.6052))
        logits_per_image = ve @ te.T * scale
        return jax.nn.softmax(logits_per_image, axis=-1), logits_per_image

    rp, rl = ref(vision_feats, text_hidden_states, w_vis, w_txt, logit_scale)
    assert probs.shape == (Bi, Bt) and logits.shape == (Bi, Bt)
    # bf16 MXU inputs -> slightly looser tolerances than a pure-f32 path (expected).
    assert jnp.allclose(logits, rl, atol=2e-1), "logits mismatch"
    assert jnp.allclose(probs, rp, atol=3e-2), "probs mismatch"

    print("KERNEL_OK")
</pallas_src>

<mosaic_0001>
module attributes {stable_mosaic.version = 11 : i64} {
  func.func @_text_proj_onepass_kernel(%arg0: i32, %arg1: memref<16x24x768xbf16, #tpu.memory_space<vmem>>, %arg2: memref<768x512xbf16, #tpu.memory_space<vmem>>, %arg3: memref<16x512xbf16, #tpu.memory_space<vmem>>) attributes {dimension_semantics = [#tpu.dimension_semantics<parallel>], iteration_bounds = array<i64: 1>, scalar_prefetch = 0 : i64, scratch_operands = 0 : i64, tpu.core_type = #tpu.core_type<tc>, window_params = [{transform_indices = @transform_0, window_bounds = array<i64: 16, 24, 768>}, {pipeline_mode = #tpu.pipeline_mode<synchronous>, transform_indices = @transform_1, window_bounds = array<i64: 768, 512>}, {transform_indices = @transform_2, window_bounds = array<i64: 16, 512>}]} {
    %c0 = arith.constant 0 : index
    %c0_0 = arith.constant 0 : index
    %c0_1 = arith.constant 0 : index
    %0 = vector.load %arg1[%c0, %c0_0, %c0_1] : memref<16x24x768xbf16, #tpu.memory_space<vmem>>, vector<16x24x768xbf16>
    %1 = arith.extf %0 : vector<16x24x768xbf16> to vector<16x24x768xf32>
    %cst = arith.constant dense<0.000000e+00> : vector<16x768xf32>
    %2 = vector.multi_reduction <add>, %1, %cst [1] : vector<16x24x768xf32> to vector<16x768xf32>
    %cst_2 = arith.constant 0.0416666679 : f32
    %3 = vector.broadcast %cst_2 : f32 to vector<16x768xf32>
    %4 = arith.mulf %2, %3 : vector<16x768xf32>
    %5 = arith.mulf %4, %4 : vector<16x768xf32>
    %cst_3 = arith.constant dense<0.000000e+00> : vector<16xf32>
    %6 = vector.multi_reduction <add>, %5, %cst_3 [1] : vector<16x768xf32> to vector<16xf32>
    %7 = vector.shape_cast %6 : vector<16xf32> to vector<16x1xf32>
    %cst_4 = arith.constant 1.000000e-24 : f32
    %8 = vector.broadcast %cst_4 : f32 to vector<16x1xf32>
    %9 = arith.maximumf %7, %8 : vector<16x1xf32>
    %10 = math.rsqrt %9 : vector<16x1xf32>
    %11 = vector.broadcast %10 : vector<16x1xf32> to vector<16x768xf32>
    %12 = arith.mulf %4, %11 : vector<16x768xf32>
    %13 = arith.truncf %12 : vector<16x768xf32> to vector<16x768xbf16>
    %c0_5 = arith.constant 0 : index
    %c0_6 = arith.constant 0 : index
    %14 = vector.load %arg2[%c0_5, %c0_6] : memref<768x512xbf16, #tpu.memory_space<vmem>>, vector<768x512xbf16>
    %cst_7 = arith.constant dense<0.000000e+00> : vector<16x512xf32>
    %15 = tpu.matmul %13, %14, %cst_7 {dimension_numbers = #tpu.dot_dimension_numbers<[1], [0], [0], [1], [0, 0, 1, 1], [], []>} : vector<16x768xbf16>, vector<768x512xbf16>, vector<16x512xf32> -> vector<16x512xf32>
    %16 = arith.mulf %15, %15 : vector<16x512xf32>
    %cst_8 = arith.constant dense<0.000000e+00> : vector<16xf32>
    %17 = vector.multi_reduction <add>, %16, %cst_8 [1] : vector<16x512xf32> to vector<16xf32>
    %18 = vector.shape_cast %17 : vector<16xf32> to vector<16x1xf32>
    %cst_9 = arith.constant 1.000000e-24 : f32
    %19 = vector.broadcast %cst_9 : f32 to vector<16x1xf32>
    %20 = arith.maximumf %18, %19 : vector<16x1xf32>
    %21 = math.rsqrt %20 : vector<16x1xf32>
    %22 = vector.broadcast %21 : vector<16x1xf32> to vector<16x512xf32>
    %23 = arith.mulf %15, %22 : vector<16x512xf32>
    %24 = arith.truncf %23 : vector<16x512xf32> to vector<16x512xbf16>
    %c0_10 = arith.constant 0 : index
    %c0_11 = arith.constant 0 : index
    %25 = vector.load %arg3[%c0_10, %c0_11] : memref<16x512xbf16, #tpu.memory_space<vmem>>, vector<16x512xbf16>
    tpu.vector_store %arg3[%c0_10, %c0_11], %24 {strides = array<i32>} : memref<16x512xbf16, #tpu.memory_space<vmem>>, vector<16x512xbf16>,
    return
  }
  func.func @transform_0(%arg0: i32) -> (i32, i32, i32) {
    %c0_i32 = arith.constant 0 : i32
    %c0_i32_0 = arith.constant 0 : i32
    %c0_i32_1 = arith.constant 0 : i32
    return %arg0, %c0_i32, %c0_i32_0 : i32, i32, i32
  }
  func.func @transform_1(%arg0: i32) -> (i32, i32) {
    %c0_i32 = arith.constant 0 : i32
    %c0_i32_0 = arith.constant 0 : i32
    %c0_i32_1 = arith.constant 0 : i32
    return %c0_i32, %c0_i32_0 : i32, i32
  }
  func.func @transform_2(%arg0: i32) -> (i32, i32) {
    %c0_i32 = arith.constant 0 : i32
    %c0_i32_0 = arith.constant 0 : i32
    return %arg0, %c0_i32 : i32, i32
  }
}

</mosaic_0001>

<llo_original>
// kernel: tpu_custom_call.1
$region0: #{tpu_custom_call.1}
  #allocation0 [shape = 'u32[]', space=smem, size = 0x4, offset = 0x4, fixed_abs, tag = 'smem constant byte address 0x4 - core index']
  #allocation1 [shape = 'u32[144,128]{1,0:T(1,128)}', space=vmem, size = 0x12000, scoped, tag = 'internal scratch']
  %s0 = inlined_call_operand.hbm [shape: bf16[16,24,768], index: 0, kind: input, shape index: {}]
  %s1 = inlined_call_operand.hbm [shape: bf16[768,512], index: 1, kind: input, shape index: {}]
  %s2 = inlined_call_operand.hbm [shape: bf16[16,512], index: 2, kind: output, shape index: {}]
  %s3 = sld [smem:[#allocation0]]
  $region26: #{tpu_custom_call.1} parent=0
    _
  %s5 = ssub.s32 1, %s3
  %s6 = scalar_select 0, %s5, %s3
  $region1: #{tpu_custom_call.1} parent=0
    #allocation2 [shape = 'u8[589824]{0}', space=vmem, size = 0x90000, scoped, tag = 'input window, operand 0, single buffered']
    #allocation3 [shape = 's32[1]{0}', space=sflag, size = 0x4, scoped, tag = 'scoped memory for tpu_custom_call.1']
    #allocation4 [shape = 's32[1]{0}', space=sflag, size = 0x4, scoped, tag = 'scoped memory for tpu_custom_call.1']
    #allocation5 [shape = 'u8[786432]{0}', space=vmem, size = 0xc0000, scoped, tag = 'input window, operand 1, single buffered']
    #allocation6 [shape = 's32[1]{0}', space=sflag, size = 0x4, scoped, tag = 'scoped memory for tpu_custom_call.1']
    #allocation7 [shape = 'u8[16384]{0}', space=vmem, size = 0x4000, scoped, tag = 'output window, operand 0, single buffered']
    %7 = vsyncpa [#allocation3], 0
    %8 = vsyncpa [#allocation6], 0
    %9 = vsyncpa [#allocation4], 0
    // Predicated region
    $region2: #{tpu_custom_call.1} parent=1 // pred_check
      _
    $region3: #{tpu_custom_call.1} parent=1 // pred_check_branch
      %11 = sbr.rel (0) target = $region5
    $region4: #{tpu_custom_call.1} parent=1 // pred_region
      %s13 = ssub.s32 18432, 18432
      %14 = vsyncadd [#allocation3], %s13
      %s15 = sshll.u32 [#allocation2], 4
      %s16 = int_to_ptr.vmem [resolvable:$true] %s15
      %21 = dma.hbm_to_vmem [thread:$0]  %s0, 18432, %s16, [#allocation3], 384, 384, 24
    $region5: #{tpu_custom_call.1} parent=1 // pred_fallthru
      _
    // Predicated region
    $region6: #{tpu_custom_call.1} parent=1 // pred_check
      _
    $region7: #{tpu_custom_call.1} parent=1 // pred_check_branch
      %23 = sbr.rel (0) target = $region9
    $region8: #{tpu_custom_call.1} parent=1 // pred_region
      %s25 = ssub.s32 24576, 24576
      %26 = vsyncadd [#allocation6], %s25
      %s27 = sshll.u32 [#allocation5], 4
      %s28 = int_to_ptr.vmem [resolvable:$true] %s27
      %33 = dma.hbm_to_vmem [thread:$0]  %s1, 24576, %s28, [#allocation6], 256, 256, 16
    $region9: #{tpu_custom_call.1} parent=1 // pred_fallthru
      _
    // Predicated region
    $region10: #{tpu_custom_call.1} parent=1 // pred_check
      _
    $region11: #{tpu_custom_call.1} parent=1 // pred_check_branch
      %35 = sbr.rel (0) target = $region13
    $region12: #{tpu_custom_call.1} parent=1 // pred_region
      %36 = dma.done [#allocation3], 18432
    $region13: #{tpu_custom_call.1} parent=1 // pred_fallthru
      _
    // Predicated region
    $region14: #{tpu_custom_call.1} parent=1 // pred_check
      _
    $region15: #{tpu_custom_call.1} parent=1 // pred_check_branch
      %38 = sbr.rel (0) target = $region17
    $region16: #{tpu_custom_call.1} parent=1 // pred_region
      %39 = dma.done [#allocation6], 24576
    $region17: #{tpu_custom_call.1} parent=1 // pred_fallthru
      _
    %v40 = vld [vmem:[#allocation2] sm:$0xff]
    %v41 = vld [vmem:[#allocation2 + $0x8] sm:$0xff]
    %v42 = vld [vmem:[#allocation2 + $0x10] sm:$0xff]
    %v43 = vld [vmem:[#allocation2 + $0x18] sm:$0xff]
    %v44 = vld [vmem:[#allocation2 + $0x20] sm:$0xff]
    %v45 = vld [vmem:[#allocation2 + $0x28] sm:$0xff]
    %v46 = vld [vmem:[#allocation2 + $0x30] sm:$0xff]
    %v47 = vld [vmem:[#allocation2 + $0x38] sm:$0xff]
    %v48 = vld [vmem:[#allocation2 + $0x40] sm:$0xff]
    %v49 = vld [vmem:[#allocation2 + $0x48] sm:$0xff]
    %v50 = vld [vmem:[#allocation2 + $0x50] sm:$0xff]
    %v51 = vld [vmem:[#allocation2 + $0x58] sm:$0xff]
    %v52 = vld [vmem:[#allocation2 + $0x60] sm:$0xff]
    %v53 = vld [vmem:[#allocation2 + $0x68] sm:$0xff]
    %v54 = vld [vmem:[#allocation2 + $0x70] sm:$0xff]
    %v55 = vld [vmem:[#allocation2 + $0x78] sm:$0xff]
    %v56 = vld [vmem:[#allocation2 + $0x80] sm:$0xff]
    %v57 = vld [vmem:[#allocation2 + $0x88] sm:$0xff]
    %v58 = vld [vmem:[#allocation2 + $0x90] sm:$0xff]
    %v59 = vld [vmem:[#allocation2 + $0x98] sm:$0xff]
    %v60 = vld [vmem:[#allocation2 + $0xa0] sm:$0xff]
    %v61 = vld [vmem:[#allocation2 + $0xa8] sm:$0xff]
    %v62 = vld [vmem:[#allocation2 + $0xb0] sm:$0xff]
    %v63 = vld [vmem:[#allocation2 + $0xb8] sm:$0xff]
    %v64 = vld [vmem:[#allocation2 + $0xc0] sm:$0xff]
    %v65 = vld [vmem:[#allocation2 + $0xc8] sm:$0xff]
    %v66 = vld [vmem:[#allocation2 + $0xd0] sm:$0xff]
    %v67 = vld [vmem:[#allocation2 + $0xd8] sm:$0xff]
    %v68 = vld [vmem:[#allocation2 + $0xe0] sm:$0xff]
    %v69 = vld [vmem:[#allocation2 + $0xe8] sm:$0xff]
    %v70 = vld [vmem:[#allocation2 + $0xf0] sm:$0xff]
    %v71 = vld [vmem:[#allocation2 + $0xf8] sm:$0xff]
    %v72 = vld [vmem:[#allocation2 + $0x100] sm:$0xff]
    %v73 = vld [vmem:[#allocation2 + $0x108] sm:$0xff]
    %v74 = vld [vmem:[#allocation2 + $0x110] sm:$0xff]
    %v75 = vld [vmem:[#allocation2 + $0x118] sm:$0xff]
    %v76 = vld [vmem:[#allocation2 + $0x120] sm:$0xff]
    %v77 = vld [vmem:[#allocation2 + $0x128] sm:$0xff]
    %v78 = vld [vmem:[#allocation2 + $0x130] sm:$0xff]
    %v79 = vld [vmem:[#allocation2 + $0x138] sm:$0xff]
    %v80 = vld [vmem:[#allocation2 + $0x140] sm:$0xff]
    %v81 = vld [vmem:[#allocation2 + $0x148] sm:$0xff]
    %v82 = vld [vmem:[#allocation2 + $0x150] sm:$0xff]
    %v83 = vld [vmem:[#allocation2 + $0x158] sm:$0xff]
    %v84 = vld [vmem:[#allocation2 + $0x160] sm:$0xff]
    %v85 = vld [vmem:[#allocation2 + $0x168] sm:$0xff]
    %v86 = vld [vmem:[#allocation2 + $0x170] sm:$0xff]
    %v87 = vld [vmem:[#allocation2 + $0x178] sm:$0xff]
    %v88 = vld [vmem:[#allocation2 + $0x180] sm:$0xff]
    %v89 = vld [vmem:[#allocation2 + $0x188] sm:$0xff]
    %v90 = vld [vmem:[#allocation2 + $0x190] sm:$0xff]
    %v91 = vld [vmem:[#allocation2 + $0x198] sm:$0xff]
    %v92 = vld [vmem:[#allocation2 + $0x1a0] sm:$0xff]
    %v93 = vld [vmem:[#allocation2 + $0x1a8] sm:$0xff]
    %v94 = vld [vmem:[#allocation2 + $0x1b0] sm:$0xff]
    %v95 = vld [vmem:[#allocation2 + $0x1b8] sm:$0xff]
    %v96 = vld [vmem:[#allocation2 + $0x1c0] sm:$0xff]
    %v97 = vld [vmem:[#allocation2 + $0x1c8] sm:$0xff]
    %v98 = vld [vmem:[#allocation2 + $0x1d0] sm:$0xff]
    %v99 = vld [vmem:[#allocation2 + $0x1d8] sm:$0xff]
    %v100 = vld [vmem:[#allocation2 + $0x1e0] sm:$0xff]
    %v101 = vld [vmem:[#allocation2 + $0x1e8] sm:$0xff]
    %v102 = vld [vmem:[#allocation2 + $0x1f0] sm:$0xff]
    %v103 = vld [vmem:[#allocation2 + $0x1f8] sm:$0xff]
    %v104 = vld [vmem:[#allocation2 + $0x200] sm:$0xff]
    %v105 = vld [vmem:[#allocation2 + $0x208] sm:$0xff]
    %v106 = vld [vmem:[#allocation2 + $0x210] sm:$0xff]
    %v107 = vld [vmem:[#allocation2 + $0x218] sm:$0xff]
    %v108 = vld [vmem:[#allocation2 + $0x220] sm:$0xff]
    %v109 = vld [vmem:[#allocation2 + $0x228] sm:$0xff]
    %v110 = vld [vmem:[#allocation2 + $0x230] sm:$0xff]
    %v111 = vld [vmem:[#allocation2 + $0x238] sm:$0xff]
    %v112 = vld [vmem:[#allocation2 + $0x240] sm:$0xff]
    %v113 = vld [vmem:[#allocation2 + $0x248] sm:$0xff]
    %v114 = vld [vmem:[#allocation2 + $0x250] sm:$0xff]
    %v115 = vld [vmem:[#allocation2 + $0x258] sm:$0xff]
    %v116 = vld [vmem:[#allocation2 + $0x260] sm:$0xff]
    %v117 = vld [vmem:[#allocation2 + $0x268] sm:$0xff]
    %v118 = vld [vmem:[#allocation2 + $0x270] sm:$0xff]
    %v119 = vld [vmem:[#allocation2 + $0x278] sm:$0xff]
    %v120 = vld [vmem:[#allocation2 + $0x280] sm:$0xff]
    %v121 = vld [vmem:[#allocation2 + $0x288] sm:$0xff]
    %v122 = vld [vmem:[#allocation2 + $0x290] sm:$0xff]
    %v123 = vld [vmem:[#allocation2 + $0x298] sm:$0xff]
    %v124 = vld [vmem:[#allocation2 + $0x2a0] sm:$0xff]
    %v125 = vld [vmem:[#allocation2 + $0x2a8] sm:$0xff]
    %v126 = vld [vmem:[#allocation2 + $0x2b0] sm:$0xff]
    %v127 = vld [vmem:[#allocation2 + $0x2b8] sm:$0xff]
    %v128 = vld [vmem:[#allocation2 + $0x2c0] sm:$0xff]
    %v129 = vld [vmem:[#allocation2 + $0x2c8] sm:$0xff]
    %v130 = vld [vmem:[#allocation2 + $0x2d0] sm:$0xff]
    %v131 = vld [vmem:[#allocation2 + $0x2d8] sm:$0xff]
    %v132 = vld [vmem:[#allocation2 + $0x2e0] sm:$0xff]
    %v133 = vld [vmem:[#allocation2 + $0x2e8] sm:$0xff]
    %v134 = vld [vmem:[#allocation2 + $0x2f0] sm:$0xff]
    %v135 = vld [vmem:[#allocation2 + $0x2f8] sm:$0xff]
    %v136 = vld [vmem:[#allocation2 + $0x300] sm:$0xff]
    %v137 = vld [vmem:[#allocation2 + $0x308] sm:$0xff]
    %v138 = vld [vmem:[#allocation2 + $0x310] sm:$0xff]
    %v139 = vld [vmem:[#allocation2 + $0x318] sm:$0xff]
    %v140 = vld [vmem:[#allocation2 + $0x320] sm:$0xff]
    %v141 = vld [vmem:[#allocation2 + $0x328] sm:$0xff]
    %v142 = vld [vmem:[#allocation2 + $0x330] sm:$0xff]
    %v143 = vld [vmem:[#allocation2 + $0x338] sm:$0xff]
    %v144 = vld [vmem:[#allocation2 + $0x340] sm:$0xff]
    %v145 = vld [vmem:[#allocation2 + $0x348] sm:$0xff]
    %v146 = vld [vmem:[#allocation2 + $0x350] sm:$0xff]
    %v147 = vld [vmem:[#allocation2 + $0x358] sm:$0xff]
    %v148 = vld [vmem:[#allocation2 + $0x360] sm:$0xff]
    %v149 = vld [vmem:[#allocation2 + $0x368] sm:$0xff]
    %v150 = vld [vmem:[#allocation2 + $0x370] sm:$0xff]
    %v151 = vld [vmem:[#allocation2 + $0x378] sm:$0xff]
    %v152 = vld [vmem:[#allocation2 + $0x380] sm:$0xff]
    %v153 = vld [vmem:[#allocation2 + $0x388] sm:$0xff]
    %v154 = vld [vmem:[#allocation2 + $0x390] sm:$0xff]
    %v155 = vld [vmem:[#allocation2 + $0x398] sm:$0xff]
    %v156 = vld [vmem:[#allocation2 + $0x3a0] sm:$0xff]
    %v157 = vld [vmem:[#allocation2 + $0x3a8] sm:$0xff]
    %v158 = vld [vmem:[#allocation2 + $0x3b0] sm:$0xff]
    %v159 = vld [vmem:[#allocation2 + $0x3b8] sm:$0xff]
    %v160 = vld [vmem:[#allocation2 + $0x3c0] sm:$0xff]
    %v161 = vld [vmem:[#allocation2 + $0x3c8] sm:$0xff]
    %v162 = vld [vmem:[#allocation2 + $0x3d0] sm:$0xff]
    %v163 = vld [vmem:[#allocation2 + $0x3d8] sm:$0xff]
    %v164 = vld [vmem:[#allocation2 + $0x3e0] sm:$0xff]
    %v165 = vld [vmem:[#allocation2 + $0x3e8] sm:$0xff]
    %v166 = vld [vmem:[#allocation2 + $0x3f0] sm:$0xff]
    %v167 = vld [vmem:[#allocation2 + $0x3f8] sm:$0xff]
    %v168 = vld [vmem:[#allocation2 + $0x400] sm:$0xff]
    %v169 = vld [vmem:[#allocation2 + $0x408] sm:$0xff]
    %v170 = vld [vmem:[#allocation2 + $0x410] sm:$0xff]
    %v171 = vld [vmem:[#allocation2 + $0x418] sm:$0xff]
    %v172 = vld [vmem:[#allocation2 + $0x420] sm:$0xff]
    %v173 = vld [vmem:[#allocation2 + $0x428] sm:$0xff]
    %v174 = vld [vmem:[#allocation2 + $0x430] sm:$0xff]
    %v175 = vld [vmem:[#allocation2 + $0x438] sm:$0xff]
    %v176 = vld [vmem:[#allocation2 + $0x440] sm:$0xff]
    %v177 = vld [vmem:[#allocation2 + $0x448] sm:$0xff]
    %v178 = vld [vmem:[#allocation2 + $0x450] sm:$0xff]
    %v179 = vld [vmem:[#allocation2 + $0x458] sm:$0xff]
    %v180 = vld [vmem:[#allocation2 + $0x460] sm:$0xff]
    %v181 = vld [vmem:[#allocation2 + $0x468] sm:$0xff]
    %v182 = vld [vmem:[#allocation2 + $0x470] sm:$0xff]
    %v183 = vld [vmem:[#allocation2 + $0x478] sm:$0xff]
    %v184 = vunpack.c.l.bf16 %v40
    %v185 = vunpack.c.h.bf16 %v40
    %v186 = vunpack.c.l.bf16 %v41
    %v187 = vunpack.c.h.bf16 %v41
    %v188 = vunpack.c.l.bf16 %v42
    %v189 = vunpack.c.h.bf16 %v42
    %v190 = vunpack.c.l.bf16 %v43
    %v191 = vunpack.c.h.bf16 %v43
    %v192 = vunpack.c.l.bf16 %v44
    %v193 = vunpack.c.h.bf16 %v44
    %v194 = vunpack.c.l.bf16 %v45
    %v195 = vunpack.c.h.bf16 %v45
    %v196 = vunpack.c.l.bf16 %v46
    %v197 = vunpack.c.h.bf16 %v46
    %v198 = vunpack.c.l.bf16 %v47
    %v199 = vunpack.c.h.bf16 %v47
    %v200 = vunpack.c.l.bf16 %v48
    %v201 = vunpack.c.h.bf16 %v48
    %v202 = vunpack.c.l.bf16 %v49
    %v203 = vunpack.c.h.bf16 %v49
    %v204 = vunpack.c.l.bf16 %v50
    %v205 = vunpack.c.h.bf16 %v50
    %v206 = vunpack.c.l.bf16 %v51
    %v207 = vunpack.c.h.bf16 %v51
    %v208 = vunpack.c.l.bf16 %v52
    %v209 = vunpack.c.h.bf16 %v52
    %v210 = vunpack.c.l.bf16 %v53
    %v211 = vunpack.c.h.bf16 %v53
    %v212 = vunpack.c.l.bf16 %v54
    %v213 = vunpack.c.h.bf16 %v54
    %v214 = vunpack.c.l.bf16 %v55
    %v215 = vunpack.c.h.bf16 %v55
    %v216 = vunpack.c.l.bf16 %v56
    %v217 = vunpack.c.h.bf16 %v56
    %v218 = vunpack.c.l.bf16 %v57
    %v219 = vunpack.c.h.bf16 %v57
    %v220 = vunpack.c.l.bf16 %v58
    %v221 = vunpack.c.h.bf16 %v58
    %v222 = vunpack.c.l.bf16 %v59
    %v223 = vunpack.c.h.bf16 %v59
    %v224 = vunpack.c.l.bf16 %v60
    %v225 = vunpack.c.h.bf16 %v60
    %v226 = vunpack.c.l.bf16 %v61
    %v227 = vunpack.c.h.bf16 %v61
    %v228 = vunpack.c.l.bf16 %v62
    %v229 = vunpack.c.h.bf16 %v62
    %v230 = vunpack.c.l.bf16 %v63
    %v231 = vunpack.c.h.bf16 %v63
    %v232 = vunpack.c.l.bf16 %v64
    %v233 = vunpack.c.h.bf16 %v64
    %v234 = vunpack.c.l.bf16 %v65
    %v235 = vunpack.c.h.bf16 %v65
    %v236 = vunpack.c.l.bf16 %v66
    %v237 = vunpack.c.h.bf16 %v66
    %v238 = vunpack.c.l.bf16 %v67
    %v239 = vunpack.c.h.bf16 %v67
    %v240 = vunpack.c.l.bf16 %v68
    %v241 = vunpack.c.h.bf16 %v68
    %v242 = vunpack.c.l.bf16 %v69
    %v243 = vunpack.c.h.bf16 %v69
    %v244 = vunpack.c.l.bf16 %v70
    %v245 = vunpack.c.h.bf16 %v70
    %v246 = vunpack.c.l.bf16 %v71
    %v247 = vunpack.c.h.bf16 %v71
    %v248 = vunpack.c.l.bf16 %v72
    %v249 = vunpack.c.h.bf16 %v72
    %v250 = vunpack.c.l.bf16 %v73
    %v251 = vunpack.c.h.bf16 %v73
    %v252 = vunpack.c.l.bf16 %v74
    %v253 = vunpack.c.h.bf16 %v74
    %v254 = vunpack.c.l.bf16 %v75
    %v255 = vunpack.c.h.bf16 %v75
    %v256 = vunpack.c.l.bf16 %v76
    %v257 = vunpack.c.h.bf16 %v76
    %v258 = vunpack.c.l.bf16 %v77
    %v259 = vunpack.c.h.bf16 %v77
    %v260 = vunpack.c.l.bf16 %v78
    %v261 = vunpack.c.h.bf16 %v78
    %v262 = vunpack.c.l.bf16 %v79
    %v263 = vunpack.c.h.bf16 %v79
    %v264 = vunpack.c.l.bf16 %v80
    %v265 = vunpack.c.h.bf16 %v80
    %v266 = vunpack.c.l.bf16 %v81
    %v267 = vunpack.c.h.bf16 %v81
    %v268 = vunpack.c.l.bf16 %v82
    %v269 = vunpack.c.h.bf16 %v82
    %v270 = vunpack.c.l.bf16 %v83
    %v271 = vunpack.c.h.bf16 %v83
    %v272 = vunpack.c.l.bf16 %v84
    %v273 = vunpack.c.h.bf16 %v84
    %v274 = vunpack.c.l.bf16 %v85
    %v275 = vunpack.c.h.bf16 %v85
    %v276 = vunpack.c.l.bf16 %v86
    %v277 = vunpack.c.h.bf16 %v86
    %v278 = vunpack.c.l.bf16 %v87
    %v279 = vunpack.c.h.bf16 %v87
    %v280 = vunpack.c.l.bf16 %v88
    %v281 = vunpack.c.h.bf16 %v88
    %v282 = vunpack.c.l.bf16 %v89
    %v283 = vunpack.c.h.bf16 %v89
    %v284 = vunpack.c.l.bf16 %v90
    %v285 = vunpack.c.h.bf16 %v90
    %v286 = vunpack.c.l.bf16 %v91
    %v287 = vunpack.c.h.bf16 %v91
    %v288 = vunpack.c.l.bf16 %v92
    %v289 = vunpack.c.h.bf16 %v92
    %v290 = vunpack.c.l.bf16 %v93
    %v291 = vunpack.c.h.bf16 %v93
    %v292 = vunpack.c.l.bf16 %v94
    %v293 = vunpack.c.h.bf16 %v94
    %v294 = vunpack.c.l.bf16 %v95
    %v295 = vunpack.c.h.bf16 %v95
    %v296 = vunpack.c.l.bf16 %v96
    %v297 = vunpack.c.h.bf16 %v96
    %v298 = vunpack.c.l.bf16 %v97
    %v299 = vunpack.c.h.bf16 %v97
    %v300 = vunpack.c.l.bf16 %v98
    %v301 = vunpack.c.h.bf16 %v98
    %v302 = vunpack.c.l.bf16 %v99
    %v303 = vunpack.c.h.bf16 %v99
    %v304 = vunpack.c.l.bf16 %v100
    %v305 = vunpack.c.h.bf16 %v100
    %v306 = vunpack.c.l.bf16 %v101
    %v307 = vunpack.c.h.bf16 %v101
    %v308 = vunpack.c.l.bf16 %v102
    %v309 = vunpack.c.h.bf16 %v102
    %v310 = vunpack.c.l.bf16 %v103
    %v311 = vunpack.c.h.bf16 %v103
    %v312 = vunpack.c.l.bf16 %v104
    %v313 = vunpack.c.h.bf16 %v104
    %v314 = vunpack.c.l.bf16 %v105
    %v315 = vunpack.c.h.bf16 %v105
    %v316 = vunpack.c.l.bf16 %v106
    %v317 = vunpack.c.h.bf16 %v106
    %v318 = vunpack.c.l.bf16 %v107
    %v319 = vunpack.c.h.bf16 %v107
    %v320 = vunpack.c.l.bf16 %v108
    %v321 = vunpack.c.h.bf16 %v108
    %v322 = vunpack.c.l.bf16 %v109
    %v323 = vunpack.c.h.bf16 %v109
    %v324 = vunpack.c.l.bf16 %v110
    %v325 = vunpack.c.h.bf16 %v110
    %v326 = vunpack.c.l.bf16 %v111
    %v327 = vunpack.c.h.bf16 %v111
    %v328 = vunpack.c.l.bf16 %v112
    %v329 = vunpack.c.h.bf16 %v112
    %v330 = vunpack.c.l.bf16 %v113
    %v331 = vunpack.c.h.bf16 %v113
    %v332 = vunpack.c.l.bf16 %v114
    %v333 = vunpack.c.h.bf16 %v114
    %v334 = vunpack.c.l.bf16 %v115
    %v335 = vunpack.c.h.bf16 %v115
    %v336 = vunpack.c.l.bf16 %v116
    %v337 = vunpack.c.h.bf16 %v116
    %v338 = vunpack.c.l.bf16 %v117
    %v339 = vunpack.c.h.bf16 %v117
    %v340 = vunpack.c.l.bf16 %v118
    %v341 = vunpack.c.h.bf16 %v118
    %v342 = vunpack.c.l.bf16 %v119
    %v343 = vunpack.c.h.bf16 %v119
    %v344 = vunpack.c.l.bf16 %v120
    %v345 = vunpack.c.h.bf16 %v120
    %v346 = vunpack.c.l.bf16 %v121
    %v347 = vunpack.c.h.bf16 %v121
    %v348 = vunpack.c.l.bf16 %v122
    %v349 = vunpack.c.h.bf16 %v122
    %v350 = vunpack.c.l.bf16 %v123
    %v351 = vunpack.c.h.bf16 %v123
    %v352 = vunpack.c.l.bf16 %v124
    %v353 = vunpack.c.h.bf16 %v124
    %v354 = vunpack.c.l.bf16 %v125
    %v355 = vunpack.c.h.bf16 %v125
    %v356 = vunpack.c.l.bf16 %v126
    %v357 = vunpack.c.h.bf16 %v126
    %v358 = vunpack.c.l.bf16 %v127
    %v359 = vunpack.c.h.bf16 %v127
    %v360 = vunpack.c.l.bf16 %v128
    %v361 = vunpack.c.h.bf16 %v128
    %v362 = vunpack.c.l.bf16 %v129
    %v363 = vunpack.c.h.bf16 %v129
    %v364 = vunpack.c.l.bf16 %v130
    %v365 = vunpack.c.h.bf16 %v130
    %v366 = vunpack.c.l.bf16 %v131
    %v367 = vunpack.c.h.bf16 %v131
    %v368 = vunpack.c.l.bf16 %v132
    %v369 = vunpack.c.h.bf16 %v132
    %v370 = vunpack.c.l.bf16 %v133
    %v371 = vunpack.c.h.bf16 %v133
    %v372 = vunpack.c.l.bf16 %v134
    %v373 = vunpack.c.h.bf16 %v134
    %v374 = vunpack.c.l.bf16 %v135
    %v375 = vunpack.c.h.bf16 %v135
    %v376 = vunpack.c.l.bf16 %v136
    %v377 = vunpack.c.h.bf16 %v136
    %v378 = vunpack.c.l.bf16 %v137
    %v379 = vunpack.c.h.bf16 %v137
    %v380 = vunpack.c.l.bf16 %v138
    %v381 = vunpack.c.h.bf16 %v138
    %v382 = vunpack.c.l.bf16 %v139
    %v383 = vunpack.c.h.bf16 %v139
    %v384 = vunpack.c.l.bf16 %v140
    %v385 = vunpack.c.h.bf16 %v140
    %v386 = vunpack.c.l.bf16 %v141
    %v387 = vunpack.c.h.bf16 %v141
    %v388 = vunpack.c.l.bf16 %v142
    %v389 = vunpack.c.h.bf16 %v142
    %v390 = vunpack.c.l.bf16 %v143
    %v391 = vunpack.c.h.bf16 %v143
    %v392 = vunpack.c.l.bf16 %v144
    %v393 = vunpack.c.h.bf16 %v144
    %v394 = vunpack.c.l.bf16 %v145
    %v395 = vunpack.c.h.bf16 %v145
    %v396 = vunpack.c.l.bf16 %v146
    %v397 = vunpack.c.h.bf16 %v146
    %v398 = vunpack.c.l.bf16 %v147
    %v399 = vunpack.c.h.bf16 %v147
    %v400 = vunpack.c.l.bf16 %v148
    %v401 = vunpack.c.h.bf16 %v148
    %v402 = vunpack.c.l.bf16 %v149
    %v403 = vunpack.c.h.bf16 %v149
    %v404 = vunpack.c.l.bf16 %v150
    %v405 = vunpack.c.h.bf16 %v150
    %v406 = vunpack.c.l.bf16 %v151
    %v407 = vunpack.c.h.bf16 %v151
    %v408 = vunpack.c.l.bf16 %v152
    %v409 = vunpack.c.h.bf16 %v152
    %v410 = vunpack.c.l.bf16 %v153
    %v411 = vunpack.c.h.bf16 %v153
    %v412 = vunpack.c.l.bf16 %v154
    %v413 = vunpack.c.h.bf16 %v154
    %v414 = vunpack.c.l.bf16 %v155
    %v415 = vunpack.c.h.bf16 %v155
    %v416 = vunpack.c.l.bf16 %v156
    %v417 = vunpack.c.h.bf16 %v156
    %v418 = vunpack.c.l.bf16 %v157
    %v419 = vunpack.c.h.bf16 %v157
    %v420 = vunpack.c.l.bf16 %v158
    %v421 = vunpack.c.h.bf16 %v158
    %v422 = vunpack.c.l.bf16 %v159
    %v423 = vunpack.c.h.bf16 %v159
    %v424 = vunpack.c.l.bf16 %v160
    %v425 = vunpack.c.h.bf16 %v160
    %v426 = vunpack.c.l.bf16 %v161
    %v427 = vunpack.c.h.bf16 %v161
    %v428 = vunpack.c.l.bf16 %v162
    %v429 = vunpack.c.h.bf16 %v162
    %v430 = vunpack.c.l.bf16 %v163
    %v431 = vunpack.c.h.bf16 %v163
    %v432 = vunpack.c.l.bf16 %v164
    %v433 = vunpack.c.h.bf16 %v164
    %v434 = vunpack.c.l.bf16 %v165
    %v435 = vunpack.c.h.bf16 %v165
    %v436 = vunpack.c.l.bf16 %v166
    %v437 = vunpack.c.h.bf16 %v166
    %v438 = vunpack.c.l.bf16 %v167
    %v439 = vunpack.c.h.bf16 %v167
    %v440 = vunpack.c.l.bf16 %v168
    %v441 = vunpack.c.h.bf16 %v168
    %v442 = vunpack.c.l.bf16 %v169
    %v443 = vunpack.c.h.bf16 %v169
    %v444 = vunpack.c.l.bf16 %v170
    %v445 = vunpack.c.h.bf16 %v170
    %v446 = vunpack.c.l.bf16 %v171
    %v447 = vunpack.c.h.bf16 %v171
    %v448 = vunpack.c.l.bf16 %v172
    %v449 = vunpack.c.h.bf16 %v172
    %v450 = vunpack.c.l.bf16 %v173
    %v451 = vunpack.c.h.bf16 %v173
    %v452 = vunpack.c.l.bf16 %v174
    %v453 = vunpack.c.h.bf16 %v174
    %v454 = vunpack.c.l.bf16 %v175
    %v455 = vunpack.c.h.bf16 %v175
    %v456 = vunpack.c.l.bf16 %v176
    %v457 = vunpack.c.h.bf16 %v176
    %v458 = vunpack.c.l.bf16 %v177
    %v459 = vunpack.c.h.bf16 %v177
    %v460 = vunpack.c.l.bf16 %v178
    %v461 = vunpack.c.h.bf16 %v178
    %v462 = vunpack.c.l.bf16 %v179
    %v463 = vunpack.c.h.bf16 %v179
    %v464 = vunpack.c.l.bf16 %v180
    %v465 = vunpack.c.h.bf16 %v180
    %v466 = vunpack.c.l.bf16 %v181
    %v467 = vunpack.c.h.bf16 %v181
    %v468 = vunpack.c.l.bf16 %v182
    %v469 = vunpack.c.h.bf16 %v182
    %v470 = vunpack.c.l.bf16 %v183
    %v471 = vunpack.c.h.bf16 %v183
    %v472 = vadd.f32 %v184, %v190
    %v473 = vadd.f32 %v472, %v196
    %v474 = vrot.slane %v473, 4
    %v475 = vadd.f32 %v473, %v474
    %v476 = vrot.slane %v475, 2
    %v477 = vadd.f32 %v475, %v476
    %v478 = vrot.slane %v477, 1
    %v479 = vadd.f32 %v477, %v478
    %v480 = vadd.f32 %v185, %v191
    %v481 = vadd.f32 %v480, %v197
    %v482 = vrot.slane %v481, 4
    %v483 = vadd.f32 %v481, %v482
    %v484 = vrot.slane %v483, 2
    %v485 = vadd.f32 %v483, %v484
    %v486 = vrot.slane %v485, 1
    %v487 = vadd.f32 %v485, %v486
    %v488 = vadd.f32 %v186, %v192
    %v489 = vadd.f32 %v488, %v198
    %v490 = vrot.slane %v489, 4
    %v491 = vadd.f32 %v489, %v490
    %v492 = vrot.slane %v491, 2
    %v493 = vadd.f32 %v491, %v492
    %v494 = vrot.slane %v493, 1
    %v495 = vadd.f32 %v493, %v494
    %v496 = vadd.f32 %v187, %v193
    %v497 = vadd.f32 %v496, %v199
    %v498 = vrot.slane %v497, 4
    %v499 = vadd.f32 %v497, %v498
    %v500 = vrot.slane %v499, 2
    %v501 = vadd.f32 %v499, %v500
    %v502 = vrot.slane %v501, 1
    %v503 = vadd.f32 %v501, %v502
    %v504 = vadd.f32 %v188, %v194
    %v505 = vadd.f32 %v504, %v200
    %v506 = vrot.slane %v505, 4
    %v507 = vadd.f32 %v505, %v506
    %v508 = vrot.slane %v507, 2
    %v509 = vadd.f32 %v507, %v508
    %v510 = vrot.slane %v509, 1
    %v511 = vadd.f32 %v509, %v510
    %v512 = vadd.f32 %v189, %v195
    %v513 = vadd.f32 %v512, %v201
    %v514 = vrot.slane %v513, 4
    %v515 = vadd.f32 %v513, %v514
    %v516 = vrot.slane %v515, 2
    %v517 = vadd.f32 %v515, %v516
    %v518 = vrot.slane %v517, 1
    %v519 = vadd.f32 %v517, %v518
    %v520 = vadd.f32 %v202, %v208
    %v521 = vadd.f32 %v520, %v214
    %v522 = vrot.slane %v521, 4
    %v523 = vadd.f32 %v521, %v522
    %v524 = vrot.slane %v523, 2
    %v525 = vadd.f32 %v523, %v524
    %v526 = vrot.slane %v525, 1
    %v527 = vadd.f32 %v525, %v526
    %v528 = vadd.f32 %v203, %v209
    %v529 = vadd.f32 %v528, %v215
    %v530 = vrot.slane %v529, 4
    %v531 = vadd.f32 %v529, %v530
    %v532 = vrot.slane %v531, 2
    %v533 = vadd.f32 %v531, %v532
    %v534 = vrot.slane %v533, 1
    %v535 = vadd.f32 %v533, %v534
    %v536 = vadd.f32 %v204, %v210
    %v537 = vadd.f32 %v536, %v216
    %v538 = vrot.slane %v537, 4
    %v539 = vadd.f32 %v537, %v538
    %v540 = vrot.slane %v539, 2
    %v541 = vadd.f32 %v539, %v540
    %v542 = vrot.slane %v541, 1
    %v543 = vadd.f32 %v541, %v542
    %v544 = vadd.f32 %v205, %v211
    %v545 = vadd.f32 %v544, %v217
    %v546 = vrot.slane %v545, 4
    %v547 = vadd.f32 %v545, %v546
    %v548 = vrot.slane %v547, 2
    %v549 = vadd.f32 %v547, %v548
    %v550 = vrot.slane %v549, 1
    %v551 = vadd.f32 %v549, %v550
    %v552 = vadd.f32 %v206, %v212
    %v553 = vadd.f32 %v552, %v218
    %v554 = vrot.slane %v553, 4
    %v555 = vadd.f32 %v553, %v554
    %v556 = vrot.slane %v555, 2
    %v557 = vadd.f32 %v555, %v556
    %v558 = vrot.slane %v557, 1
    %v559 = vadd.f32 %v557, %v558
    %v560 = vadd.f32 %v207, %v213
    %v561 = vadd.f32 %v560, %v219
    %v562 = vrot.slane %v561, 4
    %v563 = vadd.f32 %v561, %v562
    %v564 = vrot.slane %v563, 2
    %v565 = vadd.f32 %v563, %v564
    %v566 = vrot.slane %v565, 1
    %v567 = vadd.f32 %v565, %v566
    %v568 = vadd.f32 %v220, %v226
    %v569 = vadd.f32 %v568, %v232
    %v570 = vrot.slane %v569, 4
    %v571 = vadd.f32 %v569, %v570
    %v572 = vrot.slane %v571, 2
    %v573 = vadd.f32 %v571, %v572
    %v574 = vrot.slane %v573, 1
    %v575 = vadd.f32 %v573, %v574
    %v576 = vadd.f32 %v221, %v227
    %v577 = vadd.f32 %v576, %v233
    %v578 = vrot.slane %v577, 4
    %v579 = vadd.f32 %v577, %v578
    %v580 = vrot.slane %v579, 2
    %v581 = vadd.f32 %v579, %v580
    %v582 = vrot.slane %v581, 1
    %v583 = vadd.f32 %v581, %v582
    %v584 = vadd.f32 %v222, %v228
    %v585 = vadd.f32 %v584, %v234
    %v586 = vrot.slane %v585, 4
    %v587 = vadd.f32 %v585, %v586
    %v588 = vrot.slane %v587, 2
    %v589 = vadd.f32 %v587, %v588
    %v590 = vrot.slane %v589, 1
    %v591 = vadd.f32 %v589, %v590
    %v592 = vadd.f32 %v223, %v229
    %v593 = vadd.f32 %v592, %v235
    %v594 = vrot.slane %v593, 4
    %v595 = vadd.f32 %v593, %v594
    %v596 = vrot.slane %v595, 2
    %v597 = vadd.f32 %v595, %v596
    %v598 = vrot.slane %v597, 1
    %v599 = vadd.f32 %v597, %v598
    %v600 = vadd.f32 %v224, %v230
    %v601 = vadd.f32 %v600, %v236
    %v602 = vrot.slane %v601, 4
    %v603 = vadd.f32 %v601, %v602
    %v604 = vrot.slane %v603, 2
    %v605 = vadd.f32 %v603, %v604
    %v606 = vrot.slane %v605, 1
    %v607 = vadd.f32 %v605, %v606
    %v608 = vadd.f32 %v225, %v231
    %v609 = vadd.f32 %v608, %v237
    %v610 = vrot.slane %v609, 4
    %v611 = vadd.f32 %v609, %v610
    %v612 = vrot.slane %v611, 2
    %v613 = vadd.f32 %v611, %v612
    %v614 = vrot.slane %v613, 1
    %v615 = vadd.f32 %v613, %v614
    %v616 = vadd.f32 %v238, %v244
    %v617 = vadd.f32 %v616, %v250
    %v618 = vrot.slane %v617, 4
    %v619 = vadd.f32 %v617, %v618
    %v620 = vrot.slane %v619, 2
    %v621 = vadd.f32 %v619, %v620
    %v622 = vrot.slane %v621, 1
    %v623 = vadd.f32 %v621, %v622
    %v624 = vadd.f32 %v239, %v245
    %v625 = vadd.f32 %v624, %v251
    %v626 = vrot.slane %v625, 4
    %v627 = vadd.f32 %v625, %v626
    %v628 = vrot.slane %v627, 2
    %v629 = vadd.f32 %v627, %v628
    %v630 = vrot.slane %v629, 1
    %v631 = vadd.f32 %v629, %v630
    %v632 = vadd.f32 %v240, %v246
    %v633 = vadd.f32 %v632, %v252
    %v634 = vrot.slane %v633, 4
    %v635 = vadd.f32 %v633, %v634
    %v636 = vrot.slane %v635, 2
    %v637 = vadd.f32 %v635, %v636
    %v638 = vrot.slane %v637, 1
    %v639 = vadd.f32 %v637, %v638
    %v640 = vadd.f32 %v241, %v247
    %v641 = vadd.f32 %v640, %v253
    %v642 = vrot.slane %v641, 4
    %v643 = vadd.f32 %v641, %v642
    %v644 = vrot.slane %v643, 2
    %v645 = vadd.f32 %v643, %v644
    %v646 = vrot.slane %v645, 1
    %v647 = vadd.f32 %v645, %v646
    %v648 = vadd.f32 %v242, %v248
    %v649 = vadd.f32 %v648, %v254
    %v650 = vrot.slane %v649, 4
    %v651 = vadd.f32 %v649, %v650
    %v652 = vrot.slane %v651, 2
    %v653 = vadd.f32 %v651, %v652
    %v654 = vrot.slane %v653, 1
    %v655 = vadd.f32 %v653, %v654
    %v656 = vadd.f32 %v243, %v249
    %v657 = vadd.f32 %v656, %v255
    %v658 = vrot.slane %v657, 4
    %v659 = vadd.f32 %v657, %v658
    %v660 = vrot.slane %v659, 2
    %v661 = vadd.f32 %v659, %v660
    %v662 = vrot.slane %v661, 1
    %v663 = vadd.f32 %v661, %v662
    %v664 = vadd.f32 %v256, %v262
    %v665 = vadd.f32 %v664, %v268
    %v666 = vrot.slane %v665, 4
    %v667 = vadd.f32 %v665, %v666
    %v668 = vrot.slane %v667, 2
    %v669 = vadd.f32 %v667, %v668
    %v670 = vrot.slane %v669, 1
    %v671 = vadd.f32 %v669, %v670
    %v672 = vadd.f32 %v257, %v263
    %v673 = vadd.f32 %v672, %v269
    %v674 = vrot.slane %v673, 4
    %v675 = vadd.f32 %v673, %v674
    %v676 = vrot.slane %v675, 2
    %v677 = vadd.f32 %v675, %v676
    %v678 = vrot.slane %v677, 1
    %v679 = vadd.f32 %v677, %v678
    %v680 = vadd.f32 %v258, %v264
    %v681 = vadd.f32 %v680, %v270
    %v682 = vrot.slane %v681, 4
    %v683 = vadd.f32 %v681, %v682
    %v684 = vrot.slane %v683, 2
    %v685 = vadd.f32 %v683, %v684
    %v686 = vrot.slane %v685, 1
    %v687 = vadd.f32 %v685, %v686
    %v688 = vadd.f32 %v259, %v265
    %v689 = vadd.f32 %v688, %v271
    %v690 = vrot.slane %v689, 4
    %v691 = vadd.f32 %v689, %v690
    %v692 = vrot.slane %v691, 2
    %v693 = vadd.f32 %v691, %v692
    %v694 = vrot.slane %v693, 1
    %v695 = vadd.f32 %v693, %v694
    %v696 = vadd.f32 %v260, %v266
    %v697 = vadd.f32 %v696, %v272
    %v698 = vrot.slane %v697, 4
    %v699 = vadd.f32 %v697, %v698
    %v700 = vrot.slane %v699, 2
    %v701 = vadd.f32 %v699, %v700
    %v702 = vrot.slane %v701, 1
    %v703 = vadd.f32 %v701, %v702
    %v704 = vadd.f32 %v261, %v267
    %v705 = vadd.f32 %v704, %v273
    %v706 = vrot.slane %v705, 4
    %v707 = vadd.f32 %v705, %v706
    %v708 = vrot.slane %v707, 2
    %v709 = vadd.f32 %v707, %v708
    %v710 = vrot.slane %v709, 1
    %v711 = vadd.f32 %v709, %v710
    %v712 = vadd.f32 %v274, %v280
    %v713 = vadd.f32 %v712, %v286
    %v714 = vrot.slane %v713, 4
    %v715 = vadd.f32 %v713, %v714
    %v716 = vrot.slane %v715, 2
    %v717 = vadd.f32 %v715, %v716
    %v718 = vrot.slane %v717, 1
    %v719 = vadd.f32 %v717, %v718
    %v720 = vadd.f32 %v275, %v281
    %v721 = vadd.f32 %v720, %v287
    %v722 = vrot.slane %v721, 4
    %v723 = vadd.f32 %v721, %v722
    %v724 = vrot.slane %v723, 2
    %v725 = vadd.f32 %v723, %v724
    %v726 = vrot.slane %v725, 1
    %v727 = vadd.f32 %v725, %v726
    %v728 = vadd.f32 %v276, %v282
    %v729 = vadd.f32 %v728, %v288
    %v730 = vrot.slane %v729, 4
    %v731 = vadd.f32 %v729, %v730
    %v732 = vrot.slane %v731, 2
    %v733 = vadd.f32 %v731, %v732
    %v734 = vrot.slane %v733, 1
    %v735 = vadd.f32 %v733, %v734
    %v736 = vadd.f32 %v277, %v283
    %v737 = vadd.f32 %v736, %v289
    %v738 = vrot.slane %v737, 4
    %v739 = vadd.f32 %v737, %v738
    %v740 = vrot.slane %v739, 2
    %v741 = vadd.f32 %v739, %v740
    %v742 = vrot.slane %v741, 1
    %v743 = vadd.f32 %v741, %v742
    %v744 = vadd.f32 %v278, %v284
    %v745 = vadd.f32 %v744, %v290
    %v746 = vrot.slane %v745, 4
    %v747 = vadd.f32 %v745, %v746
    %v748 = vrot.slane %v747, 2
    %v749 = vadd.f32 %v747, %v748
    %v750 = vrot.slane %v749, 1
    %v751 = vadd.f32 %v749, %v750
    %v752 = vadd.f32 %v279, %v285
    %v753 = vadd.f32 %v752, %v291
    %v754 = vrot.slane %v753, 4
    %v755 = vadd.f32 %v753, %v754
    %v756 = vrot.slane %v755, 2
    %v757 = vadd.f32 %v755, %v756
    %v758 = vrot.slane %v757, 1
    %v759 = vadd.f32 %v757, %v758
    %v760 = vadd.f32 %v292, %v298
    %v761 = vadd.f32 %v760, %v304
    %v762 = vrot.slane %v761, 4
    %v763 = vadd.f32 %v761, %v762
    %v764 = vrot.slane %v763, 2
    %v765 = vadd.f32 %v763, %v764
    %v766 = vrot.slane %v765, 1
    %v767 = vadd.f32 %v765, %v766
    %v768 = vadd.f32 %v293, %v299
    %v769 = vadd.f32 %v768, %v305
    %v770 = vrot.slane %v769, 4
    %v771 = vadd.f32 %v769, %v770
    %v772 = vrot.slane %v771, 2
    %v773 = vadd.f32 %v771, %v772
    %v774 = vrot.slane %v773, 1
    %v775 = vadd.f32 %v773, %v774
    %v776 = vadd.f32 %v294, %v300
    %v777 = vadd.f32 %v776, %v306
    %v778 = vrot.slane %v777, 4
    %v779 = vadd.f32 %v777, %v778
    %v780 = vrot.slane %v779, 2
    %v781 = vadd.f32 %v779, %v780
    %v782 = vrot.slane %v781, 1
    %v783 = vadd.f32 %v781, %v782
    %v784 = vadd.f32 %v295, %v301
    %v785 = vadd.f32 %v784, %v307
    %v786 = vrot.slane %v785, 4
    %v787 = vadd.f32 %v785, %v786
    %v788 = vrot.slane %v787, 2
    %v789 = vadd.f32 %v787, %v788
    %v790 = vrot.slane %v789, 1
    %v791 = vadd.f32 %v789, %v790
    %v792 = vadd.f32 %v296, %v302
    %v793 = vadd.f32 %v792, %v308
    %v794 = vrot.slane %v793, 4
    %v795 = vadd.f32 %v793, %v794
    %v796 = vrot.slane %v795, 2
    %v797 = vadd.f32 %v795, %v796
    %v798 = vrot.slane %v797, 1
    %v799 = vadd.f32 %v797, %v798
    %v800 = vadd.f32 %v297, %v303
    %v801 = vadd.f32 %v800, %v309
    %v802 = vrot.slane %v801, 4
    %v803 = vadd.f32 %v801, %v802
    %v804 = vrot.slane %v803, 2
    %v805 = vadd.f32 %v803, %v804
    %v806 = vrot.slane %v805, 1
    %v807 = vadd.f32 %v805, %v806
    %v808 = vadd.f32 %v310, %v316
    %v809 = vadd.f32 %v808, %v322
    %v810 = vrot.slane %v809, 4
    %v811 = vadd.f32 %v809, %v810
    %v812 = vrot.slane %v811, 2
    %v813 = vadd.f32 %v811, %v812
    %v814 = vrot.slane %v813, 1
    %v815 = vadd.f32 %v813, %v814
    %v816 = vadd.f32 %v311, %v317
    %v817 = vadd.f32 %v816, %v323
    %v818 = vrot.slane %v817, 4
    %v819 = vadd.f32 %v817, %v818
    %v820 = vrot.slane %v819, 2
    %v821 = vadd.f32 %v819, %v820
    %v822 = vrot.slane %v821, 1
    %v823 = vadd.f32 %v821, %v822
    %v824 = vadd.f32 %v312, %v318
    %v825 = vadd.f32 %v824, %v324
    %v826 = vrot.slane %v825, 4
    %v827 = vadd.f32 %v825, %v826
    %v828 = vrot.slane %v827, 2
    %v829 = vadd.f32 %v827, %v828
    %v830 = vrot.slane %v829, 1
    %v831 = vadd.f32 %v829, %v830
    %v832 = vadd.f32 %v313, %v319
    %v833 = vadd.f32 %v832, %v325
    %v834 = vrot.slane %v833, 4
    %v835 = vadd.f32 %v833, %v834
    %v836 = vrot.slane %v835, 2
    %v837 = vadd.f32 %v835, %v836
    %v838 = vrot.slane %v837, 1
    %v839 = vadd.f32 %v837, %v838
    %v840 = vadd.f32 %v314, %v320
    %v841 = vadd.f32 %v840, %v326
    %v842 = vrot.slane %v841, 4
    %v843 = vadd.f32 %v841, %v842
    %v844 = vrot.slane %v843, 2
    %v845 = vadd.f32 %v843, %v844
    %v846 = vrot.slane %v845, 1
    %v847 = vadd.f32 %v845, %v846
    %v848 = vadd.f32 %v315, %v321
    %v849 = vadd.f32 %v848, %v327
    %v850 = vrot.slane %v849, 4
    %v851 = vadd.f32 %v849, %v850
    %v852 = vrot.slane %v851, 2
    %v853 = vadd.f32 %v851, %v852
    %v854 = vrot.slane %v853, 1
    %v855 = vadd.f32 %v853, %v854
    %v856 = vadd.f32 %v328, %v334
    %v857 = vadd.f32 %v856, %v340
    %v858 = vrot.slane %v857, 4
    %v859 = vadd.f32 %v857, %v858
    %v860 = vrot.slane %v859, 2
    %v861 = vadd.f32 %v859, %v860
    %v862 = vrot.slane %v861, 1
    %v863 = vadd.f32 %v861, %v862
    %v864 = vadd.f32 %v329, %v335
    %v865 = vadd.f32 %v864, %v341
    %v866 = vrot.slane %v865, 4
    %v867 = vadd.f32 %v865, %v866
    %v868 = vrot.slane %v867, 2
    %v869 = vadd.f32 %v867, %v868
    %v870 = vrot.slane %v869, 1
    %v871 = vadd.f32 %v869, %v870
    %v872 = vadd.f32 %v330, %v336
    %v873 = vadd.f32 %v872, %v342
    %v874 = vrot.slane %v873, 4
    %v875 = vadd.f32 %v873, %v874
    %v876 = vrot.slane %v875, 2
    %v877 = vadd.f32 %v875, %v876
    %v878 = vrot.slane %v877, 1
    %v879 = vadd.f32 %v877, %v878
    %v880 = vadd.f32 %v331, %v337
    %v881 = vadd.f32 %v880, %v343
    %v882 = vrot.slane %v881, 4
    %v883 = vadd.f32 %v881, %v882
    %v884 = vrot.slane %v883, 2
    %v885 = vadd.f32 %v883, %v884
    %v886 = vrot.slane %v885, 1
    %v887 = vadd.f32 %v885, %v886
    %v888 = vadd.f32 %v332, %v338
    %v889 = vadd.f32 %v888, %v344
    %v890 = vrot.slane %v889, 4
    %v891 = vadd.f32 %v889, %v890
    %v892 = vrot.slane %v891, 2
    %v893 = vadd.f32 %v891, %v892
    %v894 = vrot.slane %v893, 1
    %v895 = vadd.f32 %v893, %v894
    %v896 = vadd.f32 %v333, %v339
    %v897 = vadd.f32 %v896, %v345
    %v898 = vrot.slane %v897, 4
    %v899 = vadd.f32 %v897, %v898
    %v900 = vrot.slane %v899, 2
    %v901 = vadd.f32 %v899, %v900
    %v902 = vrot.slane %v901, 1
    %v903 = vadd.f32 %v901, %v902
    %v904 = vadd.f32 %v346, %v352
    %v905 = vadd.f32 %v904, %v358
    %v906 = vrot.slane %v905, 4
    %v907 = vadd.f32 %v905, %v906
    %v908 = vrot.slane %v907, 2
    %v909 = vadd.f32 %v907, %v908
    %v910 = vrot.slane %v909, 1
    %v911 = vadd.f32 %v909, %v910
    %v912 = vadd.f32 %v347, %v353
    %v913 = vadd.f32 %v912, %v359
    %v914 = vrot.slane %v913, 4
    %v915 = vadd.f32 %v913, %v914
    %v916 = vrot.slane %v915, 2
    %v917 = vadd.f32 %v915, %v916
    %v918 = vrot.slane %v917, 1
    %v919 = vadd.f32 %v917, %v918
    %v920 = vadd.f32 %v348, %v354
    %v921 = vadd.f32 %v920, %v360
    %v922 = vrot.slane %v921, 4
    %v923 = vadd.f32 %v921, %v922
    %v924 = vrot.slane %v923, 2
    %v925 = vadd.f32 %v923, %v924
    %v926 = vrot.slane %v925, 1
    %v927 = vadd.f32 %v925, %v926
    %v928 = vadd.f32 %v349, %v355
    %v929 = vadd.f32 %v928, %v361
    %v930 = vrot.slane %v929, 4
    %v931 = vadd.f32 %v929, %v930
    %v932 = vrot.slane %v931, 2
    %v933 = vadd.f32 %v931, %v932
    %v934 = vrot.slane %v933, 1
    %v935 = vadd.f32 %v933, %v934
    %v936 = vadd.f32 %v350, %v356
    %v937 = vadd.f32 %v936, %v362
    %v938 = vrot.slane %v937, 4
    %v939 = vadd.f32 %v937, %v938
    %v940 = vrot.slane %v939, 2
    %v941 = vadd.f32 %v939, %v940
    %v942 = vrot.slane %v941, 1
    %v943 = vadd.f32 %v941, %v942
    %v944 = vadd.f32 %v351, %v357
    %v945 = vadd.f32 %v944, %v363
    %v946 = vrot.slane %v945, 4
    %v947 = vadd.f32 %v945, %v946
    %v948 = vrot.slane %v947, 2
    %v949 = vadd.f32 %v947, %v948
    %v950 = vrot.slane %v949, 1
    %v951 = vadd.f32 %v949, %v950
    %v952 = vadd.f32 %v364, %v370
    %v953 = vadd.f32 %v952, %v376
    %v954 = vrot.slane %v953, 4
    %v955 = vadd.f32 %v953, %v954
    %v956 = vrot.slane %v955, 2
    %v957 = vadd.f32 %v955, %v956
    %v958 = vrot.slane %v957, 1
    %v959 = vadd.f32 %v957, %v958
    %v960 = vadd.f32 %v365, %v371
    %v961 = vadd.f32 %v960, %v377
    %v962 = vrot.slane %v961, 4
    %v963 = vadd.f32 %v961, %v962
    %v964 = vrot.slane %v963, 2
    %v965 = vadd.f32 %v963, %v964
    %v966 = vrot.slane %v965, 1
    %v967 = vadd.f32 %v965, %v966
    %v968 = vadd.f32 %v366, %v372
    %v969 = vadd.f32 %v968, %v378
    %v970 = vrot.slane %v969, 4
    %v971 = vadd.f32 %v969, %v970
    %v972 = vrot.slane %v971, 2
    %v973 = vadd.f32 %v971, %v972
    %v974 = vrot.slane %v973, 1
    %v975 = vadd.f32 %v973, %v974
    %v976 = vadd.f32 %v367, %v373
    %v977 = vadd.f32 %v976, %v379
    %v978 = vrot.slane %v977, 4
    %v979 = vadd.f32 %v977, %v978
    %v980 = vrot.slane %v979, 2
    %v981 = vadd.f32 %v979, %v980
    %v982 = vrot.slane %v981, 1
    %v983 = vadd.f32 %v981, %v982
    %v984 = vadd.f32 %v368, %v374
    %v985 = vadd.f32 %v984, %v380
    %v986 = vrot.slane %v985, 4
    %v987 = vadd.f32 %v985, %v986
    %v988 = vrot.slane %v987, 2
    %v989 = vadd.f32 %v987, %v988
    %v990 = vrot.slane %v989, 1
    %v991 = vadd.f32 %v989, %v990
    %v992 = vadd.f32 %v369, %v375
    %v993 = vadd.f32 %v992, %v381
    %v994 = vrot.slane %v993, 4
    %v995 = vadd.f32 %v993, %v994
    %v996 = vrot.slane %v995, 2
    %v997 = vadd.f32 %v995, %v996
    %v998 = vrot.slane %v997, 1
    %v999 = vadd.f32 %v997, %v998
    %v1000 = vadd.f32 %v382, %v388
    %v1001 = vadd.f32 %v1000, %v394
    %v1002 = vrot.slane %v1001, 4
    %v1003 = vadd.f32 %v1001, %v1002
    %v1004 = vrot.slane %v1003, 2
    %v1005 = vadd.f32 %v1003, %v1004
    %v1006 = vrot.slane %v1005, 1
    %v1007 = vadd.f32 %v1005, %v1006
    %v1008 = vadd.f32 %v383, %v389
    %v1009 = vadd.f32 %v1008, %v395
    %v1010 = vrot.slane %v1009, 4
    %v1011 = vadd.f32 %v1009, %v1010
    %v1012 = vrot.slane %v1011, 2
    %v1013 = vadd.f32 %v1011, %v1012
    %v1014 = vrot.slane %v1013, 1
    %v1015 = vadd.f32 %v1013, %v1014
    %v1016 = vadd.f32 %v384, %v390
    %v1017 = vadd.f32 %v1016, %v396
    %v1018 = vrot.slane %v1017, 4
    %v1019 = vadd.f32 %v1017, %v1018
    %v1020 = vrot.slane %v1019, 2
    %v1021 = vadd.f32 %v1019, %v1020
    %v1022 = vrot.slane %v1021, 1
    %v1023 = vadd.f32 %v1021, %v1022
    %v1024 = vadd.f32 %v385, %v391
    %v1025 = vadd.f32 %v1024, %v397
    %v1026 = vrot.slane %v1025, 4
    %v1027 = vadd.f32 %v1025, %v1026
    %v1028 = vrot.slane %v1027, 2
    %v1029 = vadd.f32 %v1027, %v1028
    %v1030 = vrot.slane %v1029, 1
    %v1031 = vadd.f32 %v1029, %v1030
    %v1032 = vadd.f32 %v386, %v392
    %v1033 = vadd.f32 %v1032, %v398
    %v1034 = vrot.slane %v1033, 4
    %v1035 = vadd.f32 %v1033, %v1034
    %v1036 = vrot.slane %v1035, 2
    %v1037 = vadd.f32 %v1035, %v1036
    %v1038 = vrot.slane %v1037, 1
    %v1039 = vadd.f32 %v1037, %v1038
    %v1040 = vadd.f32 %v387, %v393
    %v1041 = vadd.f32 %v1040, %v399
    %v1042 = vrot.slane %v1041, 4
    %v1043 = vadd.f32 %v1041, %v1042
    %v1044 = vrot.slane %v1043, 2
    %v1045 = vadd.f32 %v1043, %v1044
    %v1046 = vrot.slane %v1045, 1
    %v1047 = vadd.f32 %v1045, %v1046
    %v1048 = vadd.f32 %v400, %v406
    %v1049 = vadd.f32 %v1048, %v412
    %v1050 = vrot.slane %v1049, 4
    %v1051 = vadd.f32 %v1049, %v1050
    %v1052 = vrot.slane %v1051, 2
    %v1053 = vadd.f32 %v1051, %v1052
    %v1054 = vrot.slane %v1053, 1
    %v1055 = vadd.f32 %v1053, %v1054
    %v1056 = vadd.f32 %v401, %v407
    %v1057 = vadd.f32 %v1056, %v413
    %v1058 = vrot.slane %v1057, 4
    %v1059 = vadd.f32 %v1057, %v1058
    %v1060 = vrot.slane %v1059, 2
    %v1061 = vadd.f32 %v1059, %v1060
    %v1062 = vrot.slane %v1061, 1
    %v1063 = vadd.f32 %v1061, %v1062
    %v1064 = vadd.f32 %v402, %v408
    %v1065 = vadd.f32 %v1064, %v414
    %v1066 = vrot.slane %v1065, 4
    %v1067 = vadd.f32 %v1065, %v1066
    %v1068 = vrot.slane %v1067, 2
    %v1069 = vadd.f32 %v1067, %v1068
    %v1070 = vrot.slane %v1069, 1
    %v1071 = vadd.f32 %v1069, %v1070
    %v1072 = vadd.f32 %v403, %v409
    %v1073 = vadd.f32 %v1072, %v415
    %v1074 = vrot.slane %v1073, 4
    %v1075 = vadd.f32 %v1073, %v1074
    %v1076 = vrot.slane %v1075, 2
    %v1077 = vadd.f32 %v1075, %v1076
    %v1078 = vrot.slane %v1077, 1
    %v1079 = vadd.f32 %v1077, %v1078
    %v1080 = vadd.f32 %v404, %v410
    %v1081 = vadd.f32 %v1080, %v416
    %v1082 = vrot.slane %v1081, 4
    %v1083 = vadd.f32 %v1081, %v1082
    %v1084 = vrot.slane %v1083, 2
    %v1085 = vadd.f32 %v1083, %v1084
    %v1086 = vrot.slane %v1085, 1
    %v1087 = vadd.f32 %v1085, %v1086
    %v1088 = vadd.f32 %v405, %v411
    %v1089 = vadd.f32 %v1088, %v417
    %v1090 = vrot.slane %v1089, 4
    %v1091 = vadd.f32 %v1089, %v1090
    %v1092 = vrot.slane %v1091, 2
    %v1093 = vadd.f32 %v1091, %v1092
    %v1094 = vrot.slane %v1093, 1
    %v1095 = vadd.f32 %v1093, %v1094
    %v1096 = vadd.f32 %v418, %v424
    %v1097 = vadd.f32 %v1096, %v430
    %v1098 = vrot.slane %v1097, 4
    %v1099 = vadd.f32 %v1097, %v1098
    %v1100 = vrot.slane %v1099, 2
    %v1101 = vadd.f32 %v1099, %v1100
    %v1102 = vrot.slane %v1101, 1
    %v1103 = vadd.f32 %v1101, %v1102
    %v1104 = vadd.f32 %v419, %v425
    %v1105 = vadd.f32 %v1104, %v431
    %v1106 = vrot.slane %v1105, 4
    %v1107 = vadd.f32 %v1105, %v1106
    %v1108 = vrot.slane %v1107, 2
    %v1109 = vadd.f32 %v1107, %v1108
    %v1110 = vrot.slane %v1109, 1
    %v1111 = vadd.f32 %v1109, %v1110
    %v1112 = vadd.f32 %v420, %v426
    %v1113 = vadd.f32 %v1112, %v432
    %v1114 = vrot.slane %v1113, 4
    %v1115 = vadd.f32 %v1113, %v1114
    %v1116 = vrot.slane %v1115, 2
    %v1117 = vadd.f32 %v1115, %v1116
    %v1118 = vrot.slane %v1117, 1
    %v1119 = vadd.f32 %v1117, %v1118
    %v1120 = vadd.f32 %v421, %v427
    %v1121 = vadd.f32 %v1120, %v433
    %v1122 = vrot.slane %v1121, 4
    %v1123 = vadd.f32 %v1121, %v1122
    %v1124 = vrot.slane %v1123, 2
    %v1125 = vadd.f32 %v1123, %v1124
    %v1126 = vrot.slane %v1125, 1
    %v1127 = vadd.f32 %v1125, %v1126
    %v1128 = vadd.f32 %v422, %v428
    %v1129 = vadd.f32 %v1128, %v434
    %v1130 = vrot.slane %v1129, 4
    %v1131 = vadd.f32 %v1129, %v1130
    %v1132 = vrot.slane %v1131, 2
    %v1133 = vadd.f32 %v1131, %v1132
    %v1134 = vrot.slane %v1133, 1
    %v1135 = vadd.f32 %v1133, %v1134
    %v1136 = vadd.f32 %v423, %v429
    %v1137 = vadd.f32 %v1136, %v435
    %v1138 = vrot.slane %v1137, 4
    %v1139 = vadd.f32 %v1137, %v1138
    %v1140 = vrot.slane %v1139, 2
    %v1141 = vadd.f32 %v1139, %v1140
    %v1142 = vrot.slane %v1141, 1
    %v1143 = vadd.f32 %v1141, %v1142
    %v1144 = vadd.f32 %v436, %v442
    %v1145 = vadd.f32 %v1144, %v448
    %v1146 = vrot.slane %v1145, 4
    %v1147 = vadd.f32 %v1145, %v1146
    %v1148 = vrot.slane %v1147, 2
    %v1149 = vadd.f32 %v1147, %v1148
    %v1150 = vrot.slane %v1149, 1
    %v1151 = vadd.f32 %v1149, %v1150
    %v1152 = vadd.f32 %v437, %v443
    %v1153 = vadd.f32 %v1152, %v449
    %v1154 = vrot.slane %v1153, 4
    %v1155 = vadd.f32 %v1153, %v1154
    %v1156 = vrot.slane %v1155, 2
    %v1157 = vadd.f32 %v1155, %v1156
    %v1158 = vrot.slane %v1157, 1
    %v1159 = vadd.f32 %v1157, %v1158
    %v1160 = vadd.f32 %v438, %v444
    %v1161 = vadd.f32 %v1160, %v450
    %v1162 = vrot.slane %v1161, 4
    %v1163 = vadd.f32 %v1161, %v1162
    %v1164 = vrot.slane %v1163, 2
    %v1165 = vadd.f32 %v1163, %v1164
    %v1166 = vrot.slane %v1165, 1
    %v1167 = vadd.f32 %v1165, %v1166
    %v1168 = vadd.f32 %v439, %v445
    %v1169 = vadd.f32 %v1168, %v451
    %v1170 = vrot.slane %v1169, 4
    %v1171 = vadd.f32 %v1169, %v1170
    %v1172 = vrot.slane %v1171, 2
    %v1173 = vadd.f32 %v1171, %v1172
    %v1174 = vrot.slane %v1173, 1
    %v1175 = vadd.f32 %v1173, %v1174
    %v1176 = vadd.f32 %v440, %v446
    %v1177 = vadd.f32 %v1176, %v452
    %v1178 = vrot.slane %v1177, 4
    %v1179 = vadd.f32 %v1177, %v1178
    %v1180 = vrot.slane %v1179, 2
    %v1181 = vadd.f32 %v1179, %v1180
    %v1182 = vrot.slane %v1181, 1
    %v1183 = vadd.f32 %v1181, %v1182
    %v1184 = vadd.f32 %v441, %v447
    %v1185 = vadd.f32 %v1184, %v453
    %v1186 = vrot.slane %v1185, 4
    %v1187 = vadd.f32 %v1185, %v1186
    %v1188 = vrot.slane %v1187, 2
    %v1189 = vadd.f32 %v1187, %v1188
    %v1190 = vrot.slane %v1189, 1
    %v1191 = vadd.f32 %v1189, %v1190
    %v1192 = vadd.f32 %v454, %v460
    %v1193 = vadd.f32 %v1192, %v466
    %v1194 = vrot.slane %v1193, 4
    %v1195 = vadd.f32 %v1193, %v1194
    %v1196 = vrot.slane %v1195, 2
    %v1197 = vadd.f32 %v1195, %v1196
    %v1198 = vrot.slane %v1197, 1
    %v1199 = vadd.f32 %v1197, %v1198
    %v1200 = vadd.f32 %v455, %v461
    %v1201 = vadd.f32 %v1200, %v467
    %v1202 = vrot.slane %v1201, 4
    %v1203 = vadd.f32 %v1201, %v1202
    %v1204 = vrot.slane %v1203, 2
    %v1205 = vadd.f32 %v1203, %v1204
    %v1206 = vrot.slane %v1205, 1
    %v1207 = vadd.f32 %v1205, %v1206
    %v1208 = vadd.f32 %v456, %v462
    %v1209 = vadd.f32 %v1208, %v468
    %v1210 = vrot.slane %v1209, 4
    %v1211 = vadd.f32 %v1209, %v1210
    %v1212 = vrot.slane %v1211, 2
    %v1213 = vadd.f32 %v1211, %v1212
    %v1214 = vrot.slane %v1213, 1
    %v1215 = vadd.f32 %v1213, %v1214
    %v1216 = vadd.f32 %v457, %v463
    %v1217 = vadd.f32 %v1216, %v469
    %v1218 = vrot.slane %v1217, 4
    %v1219 = vadd.f32 %v1217, %v1218
    %v1220 = vrot.slane %v1219, 2
    %v1221 = vadd.f32 %v1219, %v1220
    %v1222 = vrot.slane %v1221, 1
    %v1223 = vadd.f32 %v1221, %v1222
    %v1224 = vadd.f32 %v458, %v464
    %v1225 = vadd.f32 %v1224, %v470
    %v1226 = vrot.slane %v1225, 4
    %v1227 = vadd.f32 %v1225, %v1226
    %v1228 = vrot.slane %v1227, 2
    %v1229 = vadd.f32 %v1227, %v1228
    %v1230 = vrot.slane %v1229, 1
    %v1231 = vadd.f32 %v1229, %v1230
    %v1232 = vadd.f32 %v459, %v465
    %v1233 = vadd.f32 %v1232, %v471
    %v1234 = vrot.slane %v1233, 4
    %v1235 = vadd.f32 %v1233, %v1234
    %v1236 = vrot.slane %v1235, 2
    %v1237 = vadd.f32 %v1235, %v1236
    %v1238 = vrot.slane %v1237, 1
    %v1239 = vadd.f32 %v1237, %v1238
    %v1240 = vmul.f32 %v479, 0.041666668
    %v1241 = vmul.f32 %v487, 0.041666668
    %v1242 = vmul.f32 %v495, 0.041666668
    %v1243 = vmul.f32 %v503, 0.041666668
    %v1244 = vmul.f32 %v511, 0.041666668
    %v1245 = vmul.f32 %v519, 0.041666668
    %v1246 = vmul.f32 %v527, 0.041666668
    %v1247 = vmul.f32 %v535, 0.041666668
    %v1248 = vmul.f32 %v543, 0.041666668
    %v1249 = vmul.f32 %v551, 0.041666668
    %v1250 = vmul.f32 %v559, 0.041666668
    %v1251 = vmul.f32 %v567, 0.041666668
    %v1252 = vmul.f32 %v575, 0.041666668
    %v1253 = vmul.f32 %v583, 0.041666668
    %v1254 = vmul.f32 %v591, 0.041666668
    %v1255 = vmul.f32 %v599, 0.041666668
    %v1256 = vmul.f32 %v607, 0.041666668
    %v1257 = vmul.f32 %v615, 0.041666668
    %v1258 = vmul.f32 %v623, 0.041666668
    %v1259 = vmul.f32 %v631, 0.041666668
    %v1260 = vmul.f32 %v639, 0.041666668
    %v1261 = vmul.f32 %v647, 0.041666668
    %v1262 = vmul.f32 %v655, 0.041666668
    %v1263 = vmul.f32 %v663, 0.041666668
    %v1264 = vmul.f32 %v671, 0.041666668
    %v1265 = vmul.f32 %v679, 0.041666668
    %v1266 = vmul.f32 %v687, 0.041666668
    %v1267 = vmul.f32 %v695, 0.041666668
    %v1268 = vmul.f32 %v703, 0.041666668
    %v1269 = vmul.f32 %v711, 0.041666668
    %v1270 = vmul.f32 %v719, 0.041666668
    %v1271 = vmul.f32 %v727, 0.041666668
    %v1272 = vmul.f32 %v735, 0.041666668
    %v1273 = vmul.f32 %v743, 0.041666668
    %v1274 = vmul.f32 %v751, 0.041666668
    %v1275 = vmul.f32 %v759, 0.041666668
    %v1276 = vmul.f32 %v767, 0.041666668
    %v1277 = vmul.f32 %v775, 0.041666668
    %v1278 = vmul.f32 %v783, 0.041666668
    %v1279 = vmul.f32 %v791, 0.041666668
    %v1280 = vmul.f32 %v799, 0.041666668
    %v1281 = vmul.f32 %v807, 0.041666668
    %v1282 = vmul.f32 %v815, 0.041666668
    %v1283 = vmul.f32 %v823, 0.041666668
    %v1284 = vmul.f32 %v831, 0.041666668
    %v1285 = vmul.f32 %v839, 0.041666668
    %v1286 = vmul.f32 %v847, 0.041666668
    %v1287 = vmul.f32 %v855, 0.041666668
    %v1288 = vmul.f32 %v863, 0.041666668
    %v1289 = vmul.f32 %v871, 0.041666668
    %v1290 = vmul.f32 %v879, 0.041666668
    %v1291 = vmul.f32 %v887, 0.041666668
    %v1292 = vmul.f32 %v895, 0.041666668
    %v1293 = vmul.f32 %v903, 0.041666668
    %v1294 = vmul.f32 %v911, 0.041666668
    %v1295 = vmul.f32 %v919, 0.041666668
    %v1296 = vmul.f32 %v927, 0.041666668
    %v1297 = vmul.f32 %v935, 0.041666668
    %v1298 = vmul.f32 %v943, 0.041666668
    %v1299 = vmul.f32 %v951, 0.041666668
    %v1300 = vmul.f32 %v959, 0.041666668
    %v1301 = vmul.f32 %v967, 0.041666668
    %v1302 = vmul.f32 %v975, 0.041666668
    %v1303 = vmul.f32 %v983, 0.041666668
    %v1304 = vmul.f32 %v991, 0.041666668
    %v1305 = vmul.f32 %v999, 0.041666668
    %v1306 = vmul.f32 %v1007, 0.041666668
    %v1307 = vmul.f32 %v1015, 0.041666668
    %v1308 = vmul.f32 %v1023, 0.041666668
    %v1309 = vmul.f32 %v1031, 0.041666668
    %v1310 = vmul.f32 %v1039, 0.041666668
    %v1311 = vmul.f32 %v1047, 0.041666668
    %v1312 = vmul.f32 %v1055, 0.041666668
    %v1313 = vmul.f32 %v1063, 0.041666668
    %v1314 = vmul.f32 %v1071, 0.041666668
    %v1315 = vmul.f32 %v1079, 0.041666668
    %v1316 = vmul.f32 %v1087, 0.041666668
    %v1317 = vmul.f32 %v1095, 0.041666668
    %v1318 = vmul.f32 %v1103, 0.041666668
    %v1319 = vmul.f32 %v1111, 0.041666668
    %v1320 = vmul.f32 %v1119, 0.041666668
    %v1321 = vmul.f32 %v1127, 0.041666668
    %v1322 = vmul.f32 %v1135, 0.041666668
    %v1323 = vmul.f32 %v1143, 0.041666668
    %v1324 = vmul.f32 %v1151, 0.041666668
    %v1325 = vmul.f32 %v1159, 0.041666668
    %v1326 = vmul.f32 %v1167, 0.041666668
    %v1327 = vmul.f32 %v1175, 0.041666668
    %v1328 = vmul.f32 %v1183, 0.041666668
    %v1329 = vmul.f32 %v1191, 0.041666668
    %v1330 = vmul.f32 %v1199, 0.041666668
    %v1331 = vmul.f32 %v1207, 0.041666668
    %v1332 = vmul.f32 %v1215, 0.041666668
    %v1333 = vmul.f32 %v1223, 0.041666668
    %v1334 = vmul.f32 %v1231, 0.041666668
    %v1335 = vmul.f32 %v1239, 0.041666668
    %v1336 = vmul.f32 %v1240, %v1240
    %v1337 = vmul.f32 %v1241, %v1241
    %v1338 = vmul.f32 %v1242, %v1242
    %v1339 = vmul.f32 %v1243, %v1243
    %v1340 = vmul.f32 %v1244, %v1244
    %v1341 = vmul.f32 %v1245, %v1245
    %v1342 = vmul.f32 %v1246, %v1246
    %v1343 = vmul.f32 %v1247, %v1247
    %v1344 = vmul.f32 %v1248, %v1248
    %v1345 = vmul.f32 %v1249, %v1249
    %v1346 = vmul.f32 %v1250, %v1250
    %v1347 = vmul.f32 %v1251, %v1251
    %v1348 = vmul.f32 %v1252, %v1252
    %v1349 = vmul.f32 %v1253, %v1253
    %v1350 = vmul.f32 %v1254, %v1254
    %v1351 = vmul.f32 %v1255, %v1255
    %v1352 = vmul.f32 %v1256, %v1256
    %v1353 = vmul.f32 %v1257, %v1257
    %v1354 = vmul.f32 %v1258, %v1258
    %v1355 = vmul.f32 %v1259, %v1259
    %v1356 = vmul.f32 %v1260, %v1260
    %v1357 = vmul.f32 %v1261, %v1261
    %v1358 = vmul.f32 %v1262, %v1262
    %v1359 = vmul.f32 %v1263, %v1263
    %v1360 = vmul.f32 %v1264, %v1264
    %v1361 = vmul.f32 %v1265, %v1265
    %v1362 = vmul.f32 %v1266, %v1266
    %v1363 = vmul.f32 %v1267, %v1267
    %v1364 = vmul.f32 %v1268, %v1268
    %v1365 = vmul.f32 %v1269, %v1269
    %v1366 = vmul.f32 %v1270, %v1270
    %v1367 = vmul.f32 %v1271, %v1271
    %v1368 = vmul.f32 %v1272, %v1272
    %v1369 = vmul.f32 %v1273, %v1273
    %v1370 = vmul.f32 %v1274, %v1274
    %v1371 = vmul.f32 %v1275, %v1275
    %v1372 = vmul.f32 %v1276, %v1276
    %v1373 = vmul.f32 %v1277, %v1277
    %v1374 = vmul.f32 %v1278, %v1278
    %v1375 = vmul.f32 %v1279, %v1279
    %v1376 = vmul.f32 %v1280, %v1280
    %v1377 = vmul.f32 %v1281, %v1281
    %v1378 = vmul.f32 %v1282, %v1282
    %v1379 = vmul.f32 %v1283, %v1283
    %v1380 = vmul.f32 %v1284, %v1284
    %v1381 = vmul.f32 %v1285, %v1285
    %v1382 = vmul.f32 %v1286, %v1286
    %v1383 = vmul.f32 %v1287, %v1287
    %v1384 = vmul.f32 %v1288, %v1288
    %v1385 = vmul.f32 %v1289, %v1289
    %v1386 = vmul.f32 %v1290, %v1290
    %v1387 = vmul.f32 %v1291, %v1291
    %v1388 = vmul.f32 %v1292, %v1292
    %v1389 = vmul.f32 %v1293, %v1293
    %v1390 = vmul.f32 %v1294, %v1294
    %v1391 = vmul.f32 %v1295, %v1295
    %v1392 = vmul.f32 %v1296, %v1296
    %v1393 = vmul.f32 %v1297, %v1297
    %v1394 = vmul.f32 %v1298, %v1298
    %v1395 = vmul.f32 %v1299, %v1299
    %v1396 = vmul.f32 %v1300, %v1300
    %v1397 = vmul.f32 %v1301, %v1301
    %v1398 = vmul.f32 %v1302, %v1302
    %v1399 = vmul.f32 %v1303, %v1303
    %v1400 = vmul.f32 %v1304, %v1304
    %v1401 = vmul.f32 %v1305, %v1305
    %v1402 = vmul.f32 %v1306, %v1306
    %v1403 = vmul.f32 %v1307, %v1307
    %v1404 = vmul.f32 %v1308, %v1308
    %v1405 = vmul.f32 %v1309, %v1309
    %v1406 = vmul.f32 %v1310, %v1310
    %v1407 = vmul.f32 %v1311, %v1311
    %v1408 = vmul.f32 %v1312, %v1312
    %v1409 = vmul.f32 %v1313, %v1313
    %v1410 = vmul.f32 %v1314, %v1314
    %v1411 = vmul.f32 %v1315, %v1315
    %v1412 = vmul.f32 %v1316, %v1316
    %v1413 = vmul.f32 %v1317, %v1317
    %v1414 = vmul.f32 %v1318, %v1318
    %v1415 = vmul.f32 %v1319, %v1319
    %v1416 = vmul.f32 %v1320, %v1320
    %v1417 = vmul.f32 %v1321, %v1321
    %v1418 = vmul.f32 %v1322, %v1322
    %v1419 = vmul.f32 %v1323, %v1323
    %v1420 = vmul.f32 %v1324, %v1324
    %v1421 = vmul.f32 %v1325, %v1325
    %v1422 = vmul.f32 %v1326, %v1326
    %v1423 = vmul.f32 %v1327, %v1327
    %v1424 = vmul.f32 %v1328, %v1328
    %v1425 = vmul.f32 %v1329, %v1329
    %v1426 = vmul.f32 %v1330, %v1330
    %v1427 = vmul.f32 %v1331, %v1331
    %v1428 = vmul.f32 %v1332, %v1332
    %v1429 = vmul.f32 %v1333, %v1333
    %v1430 = vmul.f32 %v1334, %v1334
    %v1431 = vmul.f32 %v1335, %v1335
    %vm1528 = vcmask 1041409
    %v1529 = vsel %vm1528, %v1342, %v1336
    %vm1530 = vcmask 1042434
    %v1531 = vsel %vm1530, %v1348, %v1529
    %vm1532 = vcmask 1043459
    %v1533 = vsel %vm1532, %v1354, %v1531
    %vm1534 = vcmask 1044484
    %v1535 = vsel %vm1534, %v1360, %v1533
    %vm1536 = vcmask 1045509
    %v1537 = vsel %vm1536, %v1366, %v1535
    %vm1538 = vcmask 1046534
    %v1539 = vsel %vm1538, %v1372, %v1537
    %vm1540 = vcmask 1047559
    %v1541 = vsel %vm1540, %v1378, %v1539
    %v1542 = vsel %vm1528, %v1343, %v1337
    %v1543 = vsel %vm1530, %v1349, %v1542
    %v1544 = vsel %vm1532, %v1355, %v1543
    %v1545 = vsel %vm1534, %v1361, %v1544
    %v1546 = vsel %vm1536, %v1367, %v1545
    %v1547 = vsel %vm1538, %v1373, %v1546
    %v1548 = vsel %vm1540, %v1379, %v1547
    %v1549 = vsel %vm1528, %v1344, %v1338
    %v1550 = vsel %vm1530, %v1350, %v1549
    %v1551 = vsel %vm1532, %v1356, %v1550
    %v1552 = vsel %vm1534, %v1362, %v1551
    %v1553 = vsel %vm1536, %v1368, %v1552
    %v1554 = vsel %vm1538, %v1374, %v1553
    %v1555 = vsel %vm1540, %v1380, %v1554
    %v1556 = vsel %vm1528, %v1345, %v1339
    %v1557 = vsel %vm1530, %v1351, %v1556
    %v1558 = vsel %vm1532, %v1357, %v1557
    %v1559 = vsel %vm1534, %v1363, %v1558
    %v1560 = vsel %vm1536, %v1369, %v1559
    %v1561 = vsel %vm1538, %v1375, %v1560
    %v1562 = vsel %vm1540, %v1381, %v1561
    %v1563 = vsel %vm1528, %v1346, %v1340
    %v1564 = vsel %vm1530, %v1352, %v1563
    %v1565 = vsel %vm1532, %v1358, %v1564
    %v1566 = vsel %vm1534, %v1364, %v1565
    %v1567 = vsel %vm1536, %v1370, %v1566
    %v1568 = vsel %vm1538, %v1376, %v1567
    %v1569 = vsel %vm1540, %v1382, %v1568
    %v1570 = vsel %vm1528, %v1347, %v1341
    %v1571 = vsel %vm1530, %v1353, %v1570
    %v1572 = vsel %vm1532, %v1359, %v1571
    %v1573 = vsel %vm1534, %v1365, %v1572
    %v1574 = vsel %vm1536, %v1371, %v1573
    %v1575 = vsel %vm1538, %v1377, %v1574
    %v1576 = vsel %vm1540, %v1383, %v1575
    %v1577 = vsel %vm1528, %v1390, %v1384
    %v1578 = vsel %vm1530, %v1396, %v1577
    %v1579 = vsel %vm1532, %v1402, %v1578
    %v1580 = vsel %vm1534, %v1408, %v1579
    %v1581 = vsel %vm1536, %v1414, %v1580
    %v1582 = vsel %vm1538, %v1420, %v1581
    %v1583 = vsel %vm1540, %v1426, %v1582
    %v1584 = vsel %vm1528, %v1391, %v1385
    %v1585 = vsel %vm1530, %v1397, %v1584
    %v1586 = vsel %vm1532, %v1403, %v1585
    %v1587 = vsel %vm1534, %v1409, %v1586
    %v1588 = vsel %vm1536, %v1415, %v1587
    %v1589 = vsel %vm1538, %v1421, %v1588
    %v1590 = vsel %vm1540, %v1427, %v1589
    %v1591 = vsel %vm1528, %v1392, %v1386
    %v1592 = vsel %vm1530, %v1398, %v1591
    %v1593 = vsel %vm1532, %v1404, %v1592
    %v1594 = vsel %vm1534, %v1410, %v1593
    %v1595 = vsel %vm1536, %v1416, %v1594
    %v1596 = vsel %vm1538, %v1422, %v1595
    %v1597 = vsel %vm1540, %v1428, %v1596
    %v1598 = vsel %vm1528, %v1393, %v1387
    %v1599 = vsel %vm1530, %v1399, %v1598
    %v1600 = vsel %vm1532, %v1405, %v1599
    %v1601 = vsel %vm1534, %v1411, %v1600
    %v1602 = vsel %vm1536, %v1417, %v1601
    %v1603 = vsel %vm1538, %v1423, %v1602
    %v1604 = vsel %vm1540, %v1429, %v1603
    %v1605 = vsel %vm1528, %v1394, %v1388
    %v1606 = vsel %vm1530, %v1400, %v1605
    %v1607 = vsel %vm1532, %v1406, %v1606
    %v1608 = vsel %vm1534, %v1412, %v1607
    %v1609 = vsel %vm1536, %v1418, %v1608
    %v1610 = vsel %vm1538, %v1424, %v1609
    %v1611 = vsel %vm1540, %v1430, %v1610
    %v1612 = vsel %vm1528, %v1395, %v1389
    %v1613 = vsel %vm1530, %v1401, %v1612
    %v1614 = vsel %vm1532, %v1407, %v1613
    %v1615 = vsel %vm1534, %v1413, %v1614
    %v1616 = vsel %vm1536, %v1419, %v1615
    %v1617 = vsel %vm1538, %v1425, %v1616
    %v1618 = vsel %vm1540, %v1431, %v1617
    %v1631 = vadd.f32 %v1541, %v1548
    %v1632 = vadd.f32 %v1631, %v1555
    %v1633 = vadd.f32 %v1632, %v1562
    %v1634 = vadd.f32 %v1633, %v1569
    %v1635 = vadd.f32 %v1634, %v1576
    %1636 = vadd.xlane.f32.xlu0 %v1635
    %v1637 = vpop.xlane.xlu0 %1636
    %v1638 = vadd.f32 %v1583, %v1590
    %v1639 = vadd.f32 %v1638, %v1597
    %v1640 = vadd.f32 %v1639, %v1604
    %v1641 = vadd.f32 %v1640, %v1611
    %v1642 = vadd.f32 %v1641, %v1618
    %1643 = vadd.xlane.f32.xlu0 %v1642
    %v1644 = vpop.xlane.xlu0 %1643
    %v1645 = vmax.f32 %v1637, 1e-24
    %v1646 = vmax.f32 %v1644, 1e-24
    %v1647 = vrsqrt.pop %v1645
    %v1648 = vrsqrt.pop %v1646
    %v1651 = vrot.slane %v1647, 1
    %v1652 = vrot.slane %v1647, 2
    %v1653 = vrot.slane %v1647, 3
    %v1654 = vrot.slane %v1647, 4
    %v1655 = vrot.slane %v1647, 5
    %v1656 = vrot.slane %v1647, 6
    %v1657 = vrot.slane %v1647, 7
    %v1658 = vrot.slane %v1648, 1
    %v1659 = vrot.slane %v1648, 2
    %v1660 = vrot.slane %v1648, 3
    %v1661 = vrot.slane %v1648, 4
    %v1662 = vrot.slane %v1648, 5
    %v1663 = vrot.slane %v1648, 6
    %v1664 = vrot.slane %v1648, 7
    %v1681 = vmul.f32 %v1240, %v1647
    %v1682 = vmul.f32 %v1241, %v1647
    %v1683 = vmul.f32 %v1242, %v1647
    %v1684 = vmul.f32 %v1243, %v1647
    %v1685 = vmul.f32 %v1244, %v1647
    %v1686 = vmul.f32 %v1245, %v1647
    %v1687 = vmul.f32 %v1246, %v1651
    %v1688 = vmul.f32 %v1247, %v1651
    %v1689 = vmul.f32 %v1248, %v1651
    %v1690 = vmul.f32 %v1249, %v1651
    %v1691 = vmul.f32 %v1250, %v1651
    %v1692 = vmul.f32 %v1251, %v1651
    %v1693 = vmul.f32 %v1252, %v1652
    %v1694 = vmul.f32 %v1253, %v1652
    %v1695 = vmul.f32 %v1254, %v1652
    %v1696 = vmul.f32 %v1255, %v1652
    %v1697 = vmul.f32 %v1256, %v1652
    %v1698 = vmul.f32 %v1257, %v1652
    %v1699 = vmul.f32 %v1258, %v1653
    %v1700 = vmul.f32 %v1259, %v1653
    %v1701 = vmul.f32 %v1260, %v1653
    %v1702 = vmul.f32 %v1261, %v1653
    %v1703 = vmul.f32 %v1262, %v1653
    %v1704 = vmul.f32 %v1263, %v1653
    %v1705 = vmul.f32 %v1264, %v1654
    %v1706 = vmul.f32 %v1265, %v1654
    %v1707 = vmul.f32 %v1266, %v1654
    %v1708 = vmul.f32 %v1267, %v1654
    %v1709 = vmul.f32 %v1268, %v1654
    %v1710 = vmul.f32 %v1269, %v1654
    %v1711 = vmul.f32 %v1270, %v1655
    %v1712 = vmul.f32 %v1271, %v1655
    %v1713 = vmul.f32 %v1272, %v1655
    %v1714 = vmul.f32 %v1273, %v1655
    %v1715 = vmul.f32 %v1274, %v1655
    %v1716 = vmul.f32 %v1275, %v1655
    %v1717 = vmul.f32 %v1276, %v1656
    %v1718 = vmul.f32 %v1277, %v1656
    %v1719 = vmul.f32 %v1278, %v1656
    %v1720 = vmul.f32 %v1279, %v1656
    %v1721 = vmul.f32 %v1280, %v1656
    %v1722 = vmul.f32 %v1281, %v1656
    %v1723 = vmul.f32 %v1282, %v1657
    %v1724 = vmul.f32 %v1283, %v1657
    %v1725 = vmul.f32 %v1284, %v1657
    %v1726 = vmul.f32 %v1285, %v1657
    %v1727 = vmul.f32 %v1286, %v1657
    %v1728 = vmul.f32 %v1287, %v1657
    %v1729 = vmul.f32 %v1288, %v1648
    %v1730 = vmul.f32 %v1289, %v1648
    %v1731 = vmul.f32 %v1290, %v1648
    %v1732 = vmul.f32 %v1291, %v1648
    %v1733 = vmul.f32 %v1292, %v1648
    %v1734 = vmul.f32 %v1293, %v1648
    %v1735 = vmul.f32 %v1294, %v1658
    %v1736 = vmul.f32 %v1295, %v1658
    %v1737 = vmul.f32 %v1296, %v1658
    %v1738 = vmul.f32 %v1297, %v1658
    %v1739 = vmul.f32 %v1298, %v1658
    %v1740 = vmul.f32 %v1299, %v1658
    %v1741 = vmul.f32 %v1300, %v1659
    %v1742 = vmul.f32 %v1301, %v1659
    %v1743 = vmul.f32 %v1302, %v1659
    %v1744 = vmul.f32 %v1303, %v1659
    %v1745 = vmul.f32 %v1304, %v1659
    %v1746 = vmul.f32 %v1305, %v1659
    %v1747 = vmul.f32 %v1306, %v1660
    %v1748 = vmul.f32 %v1307, %v1660
    %v1749 = vmul.f32 %v1308, %v1660
    %v1750 = vmul.f32 %v1309, %v1660
    %v1751 = vmul.f32 %v1310, %v1660
    %v1752 = vmul.f32 %v1311, %v1660
    %v1753 = vmul.f32 %v1312, %v1661
    %v1754 = vmul.f32 %v1313, %v1661
    %v1755 = vmul.f32 %v1314, %v1661
    %v1756 = vmul.f32 %v1315, %v1661
    %v1757 = vmul.f32 %v1316, %v1661
    %v1758 = vmul.f32 %v1317, %v1661
    %v1759 = vmul.f32 %v1318, %v1662
    %v1760 = vmul.f32 %v1319, %v1662
    %v1761 = vmul.f32 %v1320, %v1662
    %v1762 = vmul.f32 %v1321, %v1662
    %v1763 = vmul.f32 %v1322, %v1662
    %v1764 = vmul.f32 %v1323, %v1662
    %v1765 = vmul.f32 %v1324, %v1663
    %v1766 = vmul.f32 %v1325, %v1663
    %v1767 = vmul.f32 %v1326, %v1663
    %v1768 = vmul.f32 %v1327, %v1663
    %v1769 = vmul.f32 %v1328, %v1663
    %v1770 = vmul.f32 %v1329, %v1663
    %v1771 = vmul.f32 %v1330, %v1664
    %v1772 = vmul.f32 %v1331, %v1664
    %v1773 = vmul.f32 %v1332, %v1664
    %v1774 = vmul.f32 %v1333, %v1664
    %v1775 = vmul.f32 %v1334, %v1664
    %v1776 = vmul.f32 %v1335, %v1664
    %v1777 = vpack.c.bf16 %v1681, %v1681
    %v1778 = vpack.c.bf16 %v1682, %v1682
    %v1779 = vpack.c.bf16 %v1683, %v1683
    %v1780 = vpack.c.bf16 %v1684, %v1684
    %v1781 = vpack.c.bf16 %v1685, %v1685
    %v1782 = vpack.c.bf16 %v1686, %v1686
    %v1783 = vpack.c.bf16 %v1687, %v1687
    %v1784 = vpack.c.bf16 %v1688, %v1688
    %v1785 = vpack.c.bf16 %v1689, %v1689
    %v1786 = vpack.c.bf16 %v1690, %v1690
    %v1787 = vpack.c.bf16 %v1691, %v1691
    %v1788 = vpack.c.bf16 %v1692, %v1692
    %v1789 = vpack.c.bf16 %v1693, %v1693
    %v1790 = vpack.c.bf16 %v1694, %v1694
    %v1791 = vpack.c.bf16 %v1695, %v1695
    %v1792 = vpack.c.bf16 %v1696, %v1696
    %v1793 = vpack.c.bf16 %v1697, %v1697
    %v1794 = vpack.c.bf16 %v1698, %v1698
    %v1795 = vpack.c.bf16 %v1699, %v1699
    %v1796 = vpack.c.bf16 %v1700, %v1700
    %v1797 = vpack.c.bf16 %v1701, %v1701
    %v1798 = vpack.c.bf16 %v1702, %v1702
    %v1799 = vpack.c.bf16 %v1703, %v1703
    %v1800 = vpack.c.bf16 %v1704, %v1704
    %v1801 = vpack.c.bf16 %v1705, %v1705
    %v1802 = vpack.c.bf16 %v1706, %v1706
    %v1803 = vpack.c.bf16 %v1707, %v1707
    %v1804 = vpack.c.bf16 %v1708, %v1708
    %v1805 = vpack.c.bf16 %v1709, %v1709
    %v1806 = vpack.c.bf16 %v1710, %v1710
    %v1807 = vpack.c.bf16 %v1711, %v1711
    %v1808 = vpack.c.bf16 %v1712, %v1712
    %v1809 = vpack.c.bf16 %v1713, %v1713
    %v1810 = vpack.c.bf16 %v1714, %v1714
    %v1811 = vpack.c.bf16 %v1715, %v1715
    %v1812 = vpack.c.bf16 %v1716, %v1716
    %v1813 = vpack.c.bf16 %v1717, %v1717
    %v1814 = vpack.c.bf16 %v1718, %v1718
    %v1815 = vpack.c.bf16 %v1719, %v1719
    %v1816 = vpack.c.bf16 %v1720, %v1720
    %v1817 = vpack.c.bf16 %v1721, %v1721
    %v1818 = vpack.c.bf16 %v1722, %v1722
    %v1819 = vpack.c.bf16 %v1723, %v1723
    %v1820 = vpack.c.bf16 %v1724, %v1724
    %v1821 = vpack.c.bf16 %v1725, %v1725
    %v1822 = vpack.c.bf16 %v1726, %v1726
    %v1823 = vpack.c.bf16 %v1727, %v1727
    %v1824 = vpack.c.bf16 %v1728, %v1728
    %v1825 = vpack.c.bf16 %v1729, %v1729
    %v1826 = vpack.c.bf16 %v1730, %v1730
    %v1827 = vpack.c.bf16 %v1731, %v1731
    %v1828 = vpack.c.bf16 %v1732, %v1732
    %v1829 = vpack.c.bf16 %v1733, %v1733
    %v1830 = vpack.c.bf16 %v1734, %v1734
    %v1831 = vpack.c.bf16 %v1735, %v1735
    %v1832 = vpack.c.bf16 %v1736, %v1736
    %v1833 = vpack.c.bf16 %v1737, %v1737
    %v1834 = vpack.c.bf16 %v1738, %v1738
    %v1835 = vpack.c.bf16 %v1739, %v1739
    %v1836 = vpack.c.bf16 %v1740, %v1740
    %v1837 = vpack.c.bf16 %v1741, %v1741
    %v1838 = vpack.c.bf16 %v1742, %v1742
    %v1839 = vpack.c.bf16 %v1743, %v1743
    %v1840 = vpack.c.bf16 %v1744, %v1744
    %v1841 = vpack.c.bf16 %v1745, %v1745
    %v1842 = vpack.c.bf16 %v1746, %v1746
    %v1843 = vpack.c.bf16 %v1747, %v1747
    %v1844 = vpack.c.bf16 %v1748, %v1748
    %v1845 = vpack.c.bf16 %v1749, %v1749
    %v1846 = vpack.c.bf16 %v1750, %v1750
    %v1847 = vpack.c.bf16 %v1751, %v1751
    %v1848 = vpack.c.bf16 %v1752, %v1752
    %v1849 = vpack.c.bf16 %v1753, %v1753
    %v1850 = vpack.c.bf16 %v1754, %v1754
    %v1851 = vpack.c.bf16 %v1755, %v1755
    %v1852 = vpack.c.bf16 %v1756, %v1756
    %v1853 = vpack.c.bf16 %v1757, %v1757
    %v1854 = vpack.c.bf16 %v1758, %v1758
    %v1855 = vpack.c.bf16 %v1759, %v1759
    %v1856 = vpack.c.bf16 %v1760, %v1760
    %v1857 = vpack.c.bf16 %v1761, %v1761
    %v1858 = vpack.c.bf16 %v1762, %v1762
    %v1859 = vpack.c.bf16 %v1763, %v1763
    %v1860 = vpack.c.bf16 %v1764, %v1764
    %v1861 = vpack.c.bf16 %v1765, %v1765
    %v1862 = vpack.c.bf16 %v1766, %v1766
    %v1863 = vpack.c.bf16 %v1767, %v1767
    %v1864 = vpack.c.bf16 %v1768, %v1768
    %v1865 = vpack.c.bf16 %v1769, %v1769
    %v1866 = vpack.c.bf16 %v1770, %v1770
    %v1867 = vpack.c.bf16 %v1771, %v1771
    %v1868 = vpack.c.bf16 %v1772, %v1772
    %v1869 = vpack.c.bf16 %v1773, %v1773
    %v1870 = vpack.c.bf16 %v1774, %v1774
    %v1871 = vpack.c.bf16 %v1775, %v1775
    %v1872 = vpack.c.bf16 %v1776, %v1776
    %v1873 = vld [vmem:[#allocation5] sm:$0xff]
    %v1874 = vld [vmem:[#allocation5 + $0x8] sm:$0xff]
    %v1875 = vld [vmem:[#allocation5 + $0x10] sm:$0xff]
    %v1876 = vld [vmem:[#allocation5 + $0x18] sm:$0xff]
    %v1877 = vld [vmem:[#allocation5 + $0x20] sm:$0xff]
    %v1878 = vld [vmem:[#allocation5 + $0x28] sm:$0xff]
    %v1879 = vld [vmem:[#allocation5 + $0x30] sm:$0xff]
    %v1880 = vld [vmem:[#allocation5 + $0x38] sm:$0xff]
    %v1881 = vld [vmem:[#allocation5 + $0x40] sm:$0xff]
    %v1882 = vld [vmem:[#allocation5 + $0x48] sm:$0xff]
    %v1883 = vld [vmem:[#allocation5 + $0x50] sm:$0xff]
    %v1884 = vld [vmem:[#allocation5 + $0x58] sm:$0xff]
    %v1885 = vld [vmem:[#allocation5 + $0x60] sm:$0xff]
    %v1886 = vld [vmem:[#allocation5 + $0x68] sm:$0xff]
    %v1887 = vld [vmem:[#allocation5 + $0x70] sm:$0xff]
    %v1888 = vld [vmem:[#allocation5 + $0x78] sm:$0xff]
    %v1889 = vld [vmem:[#allocation5 + $0x80] sm:$0xff]
    %v1890 = vld [vmem:[#allocation5 + $0x88] sm:$0xff]
    %v1891 = vld [vmem:[#allocation5 + $0x90] sm:$0xff]
    %v1892 = vld [vmem:[#allocation5 + $0x98] sm:$0xff]
    %v1893 = vld [vmem:[#allocation5 + $0xa0] sm:$0xff]
    %v1894 = vld [vmem:[#allocation5 + $0xa8] sm:$0xff]
    %v1895 = vld [vmem:[#allocation5 + $0xb0] sm:$0xff]
    %v1896 = vld [vmem:[#allocation5 + $0xb8] sm:$0xff]
    %v1897 = vld [vmem:[#allocation5 + $0xc0] sm:$0xff]
    %v1898 = vld [vmem:[#allocation5 + $0xc8] sm:$0xff]
    %v1899 = vld [vmem:[#allocation5 + $0xd0] sm:$0xff]
    %v1900 = vld [vmem:[#allocation5 + $0xd8] sm:$0xff]
    %v1901 = vld [vmem:[#allocation5 + $0xe0] sm:$0xff]
    %v1902 = vld [vmem:[#allocation5 + $0xe8] sm:$0xff]
    %v1903 = vld [vmem:[#allocation5 + $0xf0] sm:$0xff]
    %v1904 = vld [vmem:[#allocation5 + $0xf8] sm:$0xff]
    %v1905 = vld [vmem:[#allocation5 + $0x100] sm:$0xff]
    %v1906 = vld [vmem:[#allocation5 + $0x108] sm:$0xff]
    %v1907 = vld [vmem:[#allocation5 + $0x110] sm:$0xff]
    %v1908 = vld [vmem:[#allocation5 + $0x118] sm:$0xff]
    %v1909 = vld [vmem:[#allocation5 + $0x120] sm:$0xff]
    %v1910 = vld [vmem:[#allocation5 + $0x128] sm:$0xff]
    %v1911 = vld [vmem:[#allocation5 + $0x130] sm:$0xff]
    %v1912 = vld [vmem:[#allocation5 + $0x138] sm:$0xff]
    %v1913 = vld [vmem:[#allocation5 + $0x140] sm:$0xff]
    %v1914 = vld [vmem:[#allocation5 + $0x148] sm:$0xff]
    %v1915 = vld [vmem:[#allocation5 + $0x150] sm:$0xff]
    %v1916 = vld [vmem:[#allocation5 + $0x158] sm:$0xff]
    %v1917 = vld [vmem:[#allocation5 + $0x160] sm:$0xff]
    %v1918 = vld [vmem:[#allocation5 + $0x168] sm:$0xff]
    %v1919 = vld [vmem:[#allocation5 + $0x170] sm:$0xff]
    %v1920 = vld [vmem:[#allocation5 + $0x178] sm:$0xff]
    %v1921 = vld [vmem:[#allocation5 + $0x180] sm:$0xff]
    %v1922 = vld [vmem:[#allocation5 + $0x188] sm:$0xff]
    %v1923 = vld [vmem:[#allocation5 + $0x190] sm:$0xff]
    %v1924 = vld [vmem:[#allocation5 + $0x198] sm:$0xff]
    %v1925 = vld [vmem:[#allocation5 + $0x1a0] sm:$0xff]
    %v1926 = vld [vmem:[#allocation5 + $0x1a8] sm:$0xff]
    %v1927 = vld [vmem:[#allocation5 + $0x1b0] sm:$0xff]
    %v1928 = vld [vmem:[#allocation5 + $0x1b8] sm:$0xff]
    %v1929 = vld [vmem:[#allocation5 + $0x1c0] sm:$0xff]
    %v1930 = vld [vmem:[#allocation5 + $0x1c8] sm:$0xff]
    %v1931 = vld [vmem:[#allocation5 + $0x1d0] sm:$0xff]
    %v1932 = vld [vmem:[#allocation5 + $0x1d8] sm:$0xff]
    %v1933 = vld [vmem:[#allocation5 + $0x1e0] sm:$0xff]
    %v1934 = vld [vmem:[#allocation5 + $0x1e8] sm:$0xff]
    %v1935 = vld [vmem:[#allocation5 + $0x1f0] sm:$0xff]
    %v1936 = vld [vmem:[#allocation5 + $0x1f8] sm:$0xff]
    %v1937 = vld [vmem:[#allocation5 + $0x200] sm:$0xff]
    %v1938 = vld [vmem:[#allocation5 + $0x208] sm:$0xff]
    %v1939 = vld [vmem:[#allocation5 + $0x210] sm:$0xff]
    %v1940 = vld [vmem:[#allocation5 + $0x218] sm:$0xff]
    %v1941 = vld [vmem:[#allocation5 + $0x220] sm:$0xff]
    %v1942 = vld [vmem:[#allocation5 + $0x228] sm:$0xff]
    %v1943 = vld [vmem:[#allocation5 + $0x230] sm:$0xff]
    %v1944 = vld [vmem:[#allocation5 + $0x238] sm:$0xff]
    %v1945 = vld [vmem:[#allocation5 + $0x240] sm:$0xff]
    %v1946 = vld [vmem:[#allocation5 + $0x248] sm:$0xff]
    %v1947 = vld [vmem:[#allocation5 + $0x250] sm:$0xff]
    %v1948 = vld [vmem:[#allocation5 + $0x258] sm:$0xff]
    %v1949 = vld [vmem:[#allocation5 + $0x260] sm:$0xff]
    %v1950 = vld [vmem:[#allocation5 + $0x268] sm:$0xff]
    %v1951 = vld [vmem:[#allocation5 + $0x270] sm:$0xff]
    %v1952 = vld [vmem:[#allocation5 + $0x278] sm:$0xff]
    %v1953 = vld [vmem:[#allocation5 + $0x280] sm:$0xff]
    %v1954 = vld [vmem:[#allocation5 + $0x288] sm:$0xff]
    %v1955 = vld [vmem:[#allocation5 + $0x290] sm:$0xff]
    %v1956 = vld [vmem:[#allocation5 + $0x298] sm:$0xff]
    %v1957 = vld [vmem:[#allocation5 + $0x2a0] sm:$0xff]
    %v1958 = vld [vmem:[#allocation5 + $0x2a8] sm:$0xff]
    %v1959 = vld [vmem:[#allocation5 + $0x2b0] sm:$0xff]
    %v1960 = vld [vmem:[#allocation5 + $0x2b8] sm:$0xff]
    %v1961 = vld [vmem:[#allocation5 + $0x2c0] sm:$0xff]
    %v1962 = vld [vmem:[#allocation5 + $0x2c8] sm:$0xff]
    %v1963 = vld [vmem:[#allocation5 + $0x2d0] sm:$0xff]
    %v1964 = vld [vmem:[#allocation5 + $0x2d8] sm:$0xff]
    %v1965 = vld [vmem:[#allocation5 + $0x2e0] sm:$0xff]
    %v1966 = vld [vmem:[#allocation5 + $0x2e8] sm:$0xff]
    %v1967 = vld [vmem:[#allocation5 + $0x2f0] sm:$0xff]
    %v1968 = vld [vmem:[#allocation5 + $0x2f8] sm:$0xff]
    %v1969 = vld [vmem:[#allocation5 + $0x300] sm:$0xff]
    %v1970 = vld [vmem:[#allocation5 + $0x308] sm:$0xff]
    %v1971 = vld [vmem:[#allocation5 + $0x310] sm:$0xff]
    %v1972 = vld [vmem:[#allocation5 + $0x318] sm:$0xff]
    %v1973 = vld [vmem:[#allocation5 + $0x320] sm:$0xff]
    %v1974 = vld [vmem:[#allocation5 + $0x328] sm:$0xff]
    %v1975 = vld [vmem:[#allocation5 + $0x330] sm:$0xff]
    %v1976 = vld [vmem:[#allocation5 + $0x338] sm:$0xff]
    %v1977 = vld [vmem:[#allocation5 + $0x340] sm:$0xff]
    %v1978 = vld [vmem:[#allocation5 + $0x348] sm:$0xff]
    %v1979 = vld [vmem:[#allocation5 + $0x350] sm:$0xff]
    %v1980 = vld [vmem:[#allocation5 + $0x358] sm:$0xff]
    %v1981 = vld [vmem:[#allocation5 + $0x360] sm:$0xff]
    %v1982 = vld [vmem:[#allocation5 + $0x368] sm:$0xff]
    %v1983 = vld [vmem:[#allocation5 + $0x370] sm:$0xff]
    %v1984 = vld [vmem:[#allocation5 + $0x378] sm:$0xff]
    %v1985 = vld [vmem:[#allocation5 + $0x380] sm:$0xff]
    %v1986 = vld [vmem:[#allocation5 + $0x388] sm:$0xff]
    %v1987 = vld [vmem:[#allocation5 + $0x390] sm:$0xff]
    %v1988 = vld [vmem:[#allocation5 + $0x398] sm:$0xff]
    %v1989 = vld [vmem:[#allocation5 + $0x3a0] sm:$0xff]
    %v1990 = vld [vmem:[#allocation5 + $0x3a8] sm:$0xff]
    %v1991 = vld [vmem:[#allocation5 + $0x3b0] sm:$0xff]
    %v1992 = vld [vmem:[#allocation5 + $0x3b8] sm:$0xff]
    %v1993 = vld [vmem:[#allocation5 + $0x3c0] sm:$0xff]
    %v1994 = vld [vmem:[#allocation5 + $0x3c8] sm:$0xff]
    %v1995 = vld [vmem:[#allocation5 + $0x3d0] sm:$0xff]
    %v1996 = vld [vmem:[#allocation5 + $0x3d8] sm:$0xff]
    %v1997 = vld [vmem:[#allocation5 + $0x3e0] sm:$0xff]
    %v1998 = vld [vmem:[#allocation5 + $0x3e8] sm:$0xff]
    %v1999 = vld [vmem:[#allocation5 + $0x3f0] sm:$0xff]
    %v2000 = vld [vmem:[#allocation5 + $0x3f8] sm:$0xff]
    %v2001 = vld [vmem:[#allocation5 + $0x400] sm:$0xff]
    %v2002 = vld [vmem:[#allocation5 + $0x408] sm:$0xff]
    %v2003 = vld [vmem:[#allocation5 + $0x410] sm:$0xff]
    %v2004 = vld [vmem:[#allocation5 + $0x418] sm:$0xff]
    %v2005 = vld [vmem:[#allocation5 + $0x420] sm:$0xff]
    %v2006 = vld [vmem:[#allocation5 + $0x428] sm:$0xff]
    %v2007 = vld [vmem:[#allocation5 + $0x430] sm:$0xff]
    %v2008 = vld [vmem:[#allocation5 + $0x438] sm:$0xff]
    %v2009 = vld [vmem:[#allocation5 + $0x440] sm:$0xff]
    %v2010 = vld [vmem:[#allocation5 + $0x448] sm:$0xff]
    %v2011 = vld [vmem:[#allocation5 + $0x450] sm:$0xff]
    %v2012 = vld [vmem:[#allocation5 + $0x458] sm:$0xff]
    %v2013 = vld [vmem:[#allocation5 + $0x460] sm:$0xff]
    %v2014 = vld [vmem:[#allocation5 + $0x468] sm:$0xff]
    %v2015 = vld [vmem:[#allocation5 + $0x470] sm:$0xff]
    %v2016 = vld [vmem:[#allocation5 + $0x478] sm:$0xff]
    %v2017 = vld [vmem:[#allocation5 + $0x480] sm:$0xff]
    %v2018 = vld [vmem:[#allocation5 + $0x488] sm:$0xff]
    %v2019 = vld [vmem:[#allocation5 + $0x490] sm:$0xff]
    %v2020 = vld [vmem:[#allocation5 + $0x498] sm:$0xff]
    %v2021 = vld [vmem:[#allocation5 + $0x4a0] sm:$0xff]
    %v2022 = vld [vmem:[#allocation5 + $0x4a8] sm:$0xff]
    %v2023 = vld [vmem:[#allocation5 + $0x4b0] sm:$0xff]
    %v2024 = vld [vmem:[#allocation5 + $0x4b8] sm:$0xff]
    %v2025 = vld [vmem:[#allocation5 + $0x4c0] sm:$0xff]
    %v2026 = vld [vmem:[#allocation5 + $0x4c8] sm:$0xff]
    %v2027 = vld [vmem:[#allocation5 + $0x4d0] sm:$0xff]
    %v2028 = vld [vmem:[#allocation5 + $0x4d8] sm:$0xff]
    %v2029 = vld [vmem:[#allocation5 + $0x4e0] sm:$0xff]
    %v2030 = vld [vmem:[#allocation5 + $0x4e8] sm:$0xff]
    %v2031 = vld [vmem:[#allocation5 + $0x4f0] sm:$0xff]
    %v2032 = vld [vmem:[#allocation5 + $0x4f8] sm:$0xff]
    %v2033 = vld [vmem:[#allocation5 + $0x500] sm:$0xff]
    %v2034 = vld [vmem:[#allocation5 + $0x508] sm:$0xff]
    %v2035 = vld [vmem:[#allocation5 + $0x510] sm:$0xff]
    %v2036 = vld [vmem:[#allocation5 + $0x518] sm:$0xff]
    %v2037 = vld [vmem:[#allocation5 + $0x520] sm:$0xff]
    %v2038 = vld [vmem:[#allocation5 + $0x528] sm:$0xff]
    %v2039 = vld [vmem:[#allocation5 + $0x530] sm:$0xff]
    %v2040 = vld [vmem:[#allocation5 + $0x538] sm:$0xff]
    %v2041 = vld [vmem:[#allocation5 + $0x540] sm:$0xff]
    %v2042 = vld [vmem:[#allocation5 + $0x548] sm:$0xff]
    %v2043 = vld [vmem:[#allocation5 + $0x550] sm:$0xff]
    %v2044 = vld [vmem:[#allocation5 + $0x558] sm:$0xff]
    %v2045 = vld [vmem:[#allocation5 + $0x560] sm:$0xff]
    %v2046 = vld [vmem:[#allocation5 + $0x568] sm:$0xff]
    %v2047 = vld [vmem:[#allocation5 + $0x570] sm:$0xff]
    %v2048 = vld [vmem:[#allocation5 + $0x578] sm:$0xff]
    %v2049 = vld [vmem:[#allocation5 + $0x580] sm:$0xff]
    %v2050 = vld [vmem:[#allocation5 + $0x588] sm:$0xff]
    %v2051 = vld [vmem:[#allocation5 + $0x590] sm:$0xff]
    %v2052 = vld [vmem:[#allocation5 + $0x598] sm:$0xff]
    %v2053 = vld [vmem:[#allocation5 + $0x5a0] sm:$0xff]
    %v2054 = vld [vmem:[#allocation5 + $0x5a8] sm:$0xff]
    %v2055 = vld [vmem:[#allocation5 + $0x5b0] sm:$0xff]
    %v2056 = vld [vmem:[#allocation5 + $0x5b8] sm:$0xff]
    %v2057 = vld [vmem:[#allocation5 + $0x5c0] sm:$0xff]
    %v2058 = vld [vmem:[#allocation5 + $0x5c8] sm:$0xff]
    %v2059 = vld [vmem:[#allocation5 + $0x5d0] sm:$0xff]
    %v2060 = vld [vmem:[#allocation5 + $0x5d8] sm:$0xff]
    %v2061 = vld [vmem:[#allocation5 + $0x5e0] sm:$0xff]
    %v2062 = vld [vmem:[#allocation5 + $0x5e8] sm:$0xff]
    %v2063 = vld [vmem:[#allocation5 + $0x5f0] sm:$0xff]
    %v2064 = vld [vmem:[#allocation5 + $0x5f8] sm:$0xff]
    %v2161 = vunpack.c.l.b16 %v1777
    %v2162 = vunpack.c.l.b16 %v1778
    %v2163 = vunpack.c.l.b16 %v1779
    %v2164 = vunpack.c.l.b16 %v1780
    %v2165 = vunpack.c.l.b16 %v1781
    %v2166 = vunpack.c.l.b16 %v1782
    %v2167 = vunpack.c.l.b16 %v1783
    %v2168 = vunpack.c.l.b16 %v1784
    %v2169 = vunpack.c.l.b16 %v1785
    %v2170 = vunpack.c.l.b16 %v1786
    %v2171 = vunpack.c.l.b16 %v1787
    %v2172 = vunpack.c.l.b16 %v1788
    %v2173 = vunpack.c.l.b16 %v1789
    %v2174 = vunpack.c.l.b16 %v1790
    %v2175 = vunpack.c.l.b16 %v1791
    %v2176 = vunpack.c.l.b16 %v1792
    %v2177 = vunpack.c.l.b16 %v1793
    %v2178 = vunpack.c.l.b16 %v1794
    %v2179 = vunpack.c.l.b16 %v1795
    %v2180 = vunpack.c.l.b16 %v1796
    %v2181 = vunpack.c.l.b16 %v1797
    %v2182 = vunpack.c.l.b16 %v1798
    %v2183 = vunpack.c.l.b16 %v1799
    %v2184 = vunpack.c.l.b16 %v1800
    %v2185 = vunpack.c.l.b16 %v1801
    %v2186 = vunpack.c.l.b16 %v1802
    %v2187 = vunpack.c.l.b16 %v1803
    %v2188 = vunpack.c.l.b16 %v1804
    %v2189 = vunpack.c.l.b16 %v1805
    %v2190 = vunpack.c.l.b16 %v1806
    %v2191 = vunpack.c.l.b16 %v1807
    %v2192 = vunpack.c.l.b16 %v1808
    %v2193 = vunpack.c.l.b16 %v1809
    %v2194 = vunpack.c.l.b16 %v1810
    %v2195 = vunpack.c.l.b16 %v1811
    %v2196 = vunpack.c.l.b16 %v1812
    %v2197 = vunpack.c.l.b16 %v1813
    %v2198 = vunpack.c.l.b16 %v1814
    %v2199 = vunpack.c.l.b16 %v1815
    %v2200 = vunpack.c.l.b16 %v1816
    %v2201 = vunpack.c.l.b16 %v1817
    %v2202 = vunpack.c.l.b16 %v1818
    %v2203 = vunpack.c.l.b16 %v1819
    %v2204 = vunpack.c.l.b16 %v1820
    %v2205 = vunpack.c.l.b16 %v1821
    %v2206 = vunpack.c.l.b16 %v1822
    %v2207 = vunpack.c.l.b16 %v1823
    %v2208 = vunpack.c.l.b16 %v1824
    %v2209 = vunpack.c.l.b16 %v1825
    %v2210 = vunpack.c.l.b16 %v1826
    %v2211 = vunpack.c.l.b16 %v1827
    %v2212 = vunpack.c.l.b16 %v1828
    %v2213 = vunpack.c.l.b16 %v1829
    %v2214 = vunpack.c.l.b16 %v1830
    %v2215 = vunpack.c.l.b16 %v1831
    %v2216 = vunpack.c.l.b16 %v1832
    %v2217 = vunpack.c.l.b16 %v1833
    %v2218 = vunpack.c.l.b16 %v1834
    %v2219 = vunpack.c.l.b16 %v1835
    %v2220 = vunpack.c.l.b16 %v1836
    %v2221 = vunpack.c.l.b16 %v1837
    %v2222 = vunpack.c.l.b16 %v1838
    %v2223 = vunpack.c.l.b16 %v1839
    %v2224 = vunpack.c.l.b16 %v1840
    %v2225 = vunpack.c.l.b16 %v1841
    %v2226 = vunpack.c.l.b16 %v1842
    %v2227 = vunpack.c.l.b16 %v1843
    %v2228 = vunpack.c.l.b16 %v1844
    %v2229 = vunpack.c.l.b16 %v1845
    %v2230 = vunpack.c.l.b16 %v1846
    %v2231 = vunpack.c.l.b16 %v1847
    %v2232 = vunpack.c.l.b16 %v1848
    %v2233 = vunpack.c.l.b16 %v1849
    %v2234 = vunpack.c.l.b16 %v1850
    %v2235 = vunpack.c.l.b16 %v1851
    %v2236 = vunpack.c.l.b16 %v1852
    %v2237 = vunpack.c.l.b16 %v1853
    %v2238 = vunpack.c.l.b16 %v1854
    %v2239 = vunpack.c.l.b16 %v1855
    %v2240 = vunpack.c.l.b16 %v1856
    %v2241 = vunpack.c.l.b16 %v1857
    %v2242 = vunpack.c.l.b16 %v1858
    %v2243 = vunpack.c.l.b16 %v1859
    %v2244 = vunpack.c.l.b16 %v1860
    %v2245 = vunpack.c.l.b16 %v1861
    %v2246 = vunpack.c.l.b16 %v1862
    %v2247 = vunpack.c.l.b16 %v1863
    %v2248 = vunpack.c.l.b16 %v1864
    %v2249 = vunpack.c.l.b16 %v1865
    %v2250 = vunpack.c.l.b16 %v1866
    %v2251 = vunpack.c.l.b16 %v1867
    %v2252 = vunpack.c.l.b16 %v1868
    %v2253 = vunpack.c.l.b16 %v1869
    %v2254 = vunpack.c.l.b16 %v1870
    %v2255 = vunpack.c.l.b16 %v1871
    %v2256 = vunpack.c.l.b16 %v1872
    %v2257 = vrot.slane %v2167, 7
    %v2258 = vsel %vm1528, %v2257, %v2161
    %v2259 = vrot.slane %v2173, 6
    %v2260 = vsel %vm1530, %v2259, %v2258
    %v2261 = vrot.slane %v2179, 5
    %v2262 = vsel %vm1532, %v2261, %v2260
    %v2263 = vrot.slane %v2185, 4
    %v2264 = vsel %vm1534, %v2263, %v2262
    %v2265 = vrot.slane %v2191, 3
    %v2266 = vsel %vm1536, %v2265, %v2264
    %v2267 = vrot.slane %v2197, 2
    %v2268 = vsel %vm1538, %v2267, %v2266
    %v2269 = vrot.slane %v2203, 1
    %v2270 = vsel %vm1540, %v2269, %v2268
    %v2271 = vrot.slane %v2168, 7
    %v2272 = vsel %vm1528, %v2271, %v2162
    %v2273 = vrot.slane %v2174, 6
    %v2274 = vsel %vm1530, %v2273, %v2272
    %v2275 = vrot.slane %v2180, 5
    %v2276 = vsel %vm1532, %v2275, %v2274
    %v2277 = vrot.slane %v2186, 4
    %v2278 = vsel %vm1534, %v2277, %v2276
    %v2279 = vrot.slane %v2192, 3
    %v2280 = vsel %vm1536, %v2279, %v2278
    %v2281 = vrot.slane %v2198, 2
    %v2282 = vsel %vm1538, %v2281, %v2280
    %v2283 = vrot.slane %v2204, 1
    %v2284 = vsel %vm1540, %v2283, %v2282
    %v2285 = vrot.slane %v2169, 7
    %v2286 = vsel %vm1528, %v2285, %v2163
    %v2287 = vrot.slane %v2175, 6
    %v2288 = vsel %vm1530, %v2287, %v2286
    %v2289 = vrot.slane %v2181, 5
    %v2290 = vsel %vm1532, %v2289, %v2288
    %v2291 = vrot.slane %v2187, 4
    %v2292 = vsel %vm1534, %v2291, %v2290
    %v2293 = vrot.slane %v2193, 3
    %v2294 = vsel %vm1536, %v2293, %v2292
    %v2295 = vrot.slane %v2199, 2
    %v2296 = vsel %vm1538, %v2295, %v2294
    %v2297 = vrot.slane %v2205, 1
    %v2298 = vsel %vm1540, %v2297, %v2296
    %v2299 = vrot.slane %v2170, 7
    %v2300 = vsel %vm1528, %v2299, %v2164
    %v2301 = vrot.slane %v2176, 6
    %v2302 = vsel %vm1530, %v2301, %v2300
    %v2303 = vrot.slane %v2182, 5
    %v2304 = vsel %vm1532, %v2303, %v2302
    %v2305 = vrot.slane %v2188, 4
    %v2306 = vsel %vm1534, %v2305, %v2304
    %v2307 = vrot.slane %v2194, 3
    %v2308 = vsel %vm1536, %v2307, %v2306
    %v2309 = vrot.slane %v2200, 2
    %v2310 = vsel %vm1538, %v2309, %v2308
    %v2311 = vrot.slane %v2206, 1
    %v2312 = vsel %vm1540, %v2311, %v2310
    %v2313 = vrot.slane %v2171, 7
    %v2314 = vsel %vm1528, %v2313, %v2165
    %v2315 = vrot.slane %v2177, 6
    %v2316 = vsel %vm1530, %v2315, %v2314
    %v2317 = vrot.slane %v2183, 5
    %v2318 = vsel %vm1532, %v2317, %v2316
    %v2319 = vrot.slane %v2189, 4
    %v2320 = vsel %vm1534, %v2319, %v2318
    %v2321 = vrot.slane %v2195, 3
    %v2322 = vsel %vm1536, %v2321, %v2320
    %v2323 = vrot.slane %v2201, 2
    %v2324 = vsel %vm1538, %v2323, %v2322
    %v2325 = vrot.slane %v2207, 1
    %v2326 = vsel %vm1540, %v2325, %v2324
    %v2327 = vrot.slane %v2172, 7
    %v2328 = vsel %vm1528, %v2327, %v2166
    %v2329 = vrot.slane %v2178, 6
    %v2330 = vsel %vm1530, %v2329, %v2328
    %v2331 = vrot.slane %v2184, 5
    %v2332 = vsel %vm1532, %v2331, %v2330
    %v2333 = vrot.slane %v2190, 4
    %v2334 = vsel %vm1534, %v2333, %v2332
    %v2335 = vrot.slane %v2196, 3
    %v2336 = vsel %vm1536, %v2335, %v2334
    %v2337 = vrot.slane %v2202, 2
    %v2338 = vsel %vm1538, %v2337, %v2336
    %v2339 = vrot.slane %v2208, 1
    %v2340 = vsel %vm1540, %v2339, %v2338
    %v2341 = vrot.slane %v2215, 7
    %v2342 = vsel %vm1528, %v2341, %v2209
    %v2343 = vrot.slane %v2221, 6
    %v2344 = vsel %vm1530, %v2343, %v2342
    %v2345 = vrot.slane %v2227, 5
    %v2346 = vsel %vm1532, %v2345, %v2344
    %v2347 = vrot.slane %v2233, 4
    %v2348 = vsel %vm1534, %v2347, %v2346
    %v2349 = vrot.slane %v2239, 3
    %v2350 = vsel %vm1536, %v2349, %v2348
    %v2351 = vrot.slane %v2245, 2
    %v2352 = vsel %vm1538, %v2351, %v2350
    %v2353 = vrot.slane %v2251, 1
    %v2354 = vsel %vm1540, %v2353, %v2352
    %v2355 = vrot.slane %v2216, 7
    %v2356 = vsel %vm1528, %v2355, %v2210
    %v2357 = vrot.slane %v2222, 6
    %v2358 = vsel %vm1530, %v2357, %v2356
    %v2359 = vrot.slane %v2228, 5
    %v2360 = vsel %vm1532, %v2359, %v2358
    %v2361 = vrot.slane %v2234, 4
    %v2362 = vsel %vm1534, %v2361, %v2360
    %v2363 = vrot.slane %v2240, 3
    %v2364 = vsel %vm1536, %v2363, %v2362
    %v2365 = vrot.slane %v2246, 2
    %v2366 = vsel %vm1538, %v2365, %v2364
    %v2367 = vrot.slane %v2252, 1
    %v2368 = vsel %vm1540, %v2367, %v2366
    %v2369 = vrot.slane %v2217, 7
    %v2370 = vsel %vm1528, %v2369, %v2211
    %v2371 = vrot.slane %v2223, 6
    %v2372 = vsel %vm1530, %v2371, %v2370
    %v2373 = vrot.slane %v2229, 5
    %v2374 = vsel %vm1532, %v2373, %v2372
    %v2375 = vrot.slane %v2235, 4
    %v2376 = vsel %vm1534, %v2375, %v2374
    %v2377 = vrot.slane %v2241, 3
    %v2378 = vsel %vm1536, %v2377, %v2376
    %v2379 = vrot.slane %v2247, 2
    %v2380 = vsel %vm1538, %v2379, %v2378
    %v2381 = vrot.slane %v2253, 1
    %v2382 = vsel %vm1540, %v2381, %v2380
    %v2383 = vrot.slane %v2218, 7
    %v2384 = vsel %vm1528, %v2383, %v2212
    %v2385 = vrot.slane %v2224, 6
    %v2386 = vsel %vm1530, %v2385, %v2384
    %v2387 = vrot.slane %v2230, 5
    %v2388 = vsel %vm1532, %v2387, %v2386
    %v2389 = vrot.slane %v2236, 4
    %v2390 = vsel %vm1534, %v2389, %v2388
    %v2391 = vrot.slane %v2242, 3
    %v2392 = vsel %vm1536, %v2391, %v2390
    %v2393 = vrot.slane %v2248, 2
    %v2394 = vsel %vm1538, %v2393, %v2392
    %v2395 = vrot.slane %v2254, 1
    %v2396 = vsel %vm1540, %v2395, %v2394
    %v2397 = vrot.slane %v2219, 7
    %v2398 = vsel %vm1528, %v2397, %v2213
    %v2399 = vrot.slane %v2225, 6
    %v2400 = vsel %vm1530, %v2399, %v2398
    %v2401 = vrot.slane %v2231, 5
    %v2402 = vsel %vm1532, %v2401, %v2400
    %v2403 = vrot.slane %v2237, 4
    %v2404 = vsel %vm1534, %v2403, %v2402
    %v2405 = vrot.slane %v2243, 3
    %v2406 = vsel %vm1536, %v2405, %v2404
    %v2407 = vrot.slane %v2249, 2
    %v2408 = vsel %vm1538, %v2407, %v2406
    %v2409 = vrot.slane %v2255, 1
    %v2410 = vsel %vm1540, %v2409, %v2408
    %v2411 = vrot.slane %v2220, 7
    %v2412 = vsel %vm1528, %v2411, %v2214
    %v2413 = vrot.slane %v2226, 6
    %v2414 = vsel %vm1530, %v2413, %v2412
    %v2415 = vrot.slane %v2232, 5
    %v2416 = vsel %vm1532, %v2415, %v2414
    %v2417 = vrot.slane %v2238, 4
    %v2418 = vsel %vm1534, %v2417, %v2416
    %v2419 = vrot.slane %v2244, 3
    %v2420 = vsel %vm1536, %v2419, %v2418
    %v2421 = vrot.slane %v2250, 2
    %v2422 = vsel %vm1538, %v2421, %v2420
    %v2423 = vrot.slane %v2256, 1
    %v2424 = vsel %vm1540, %v2423, %v2422
    %v2425 = vpack.c.b16 %v2354, %v2270
    %v2426 = vpack.c.b16 %v2368, %v2284
    %v2427 = vpack.c.b16 %v2382, %v2298
    %v2428 = vpack.c.b16 %v2396, %v2312
    %v2429 = vpack.c.b16 %v2410, %v2326
    %v2430 = vpack.c.b16 %v2424, %v2340
    %v2629 = vunpack.c.l.b16 %v1873
    %v2630 = vunpack.c.h.b16 %v1873
    %v2631 = vunpack.c.l.b16 %v1874
    %v2632 = vunpack.c.h.b16 %v1874
    %v2633 = vunpack.c.l.b16 %v1875
    %v2634 = vunpack.c.h.b16 %v1875
    %v2635 = vunpack.c.l.b16 %v1876
    %v2636 = vunpack.c.h.b16 %v1876
    %v2637 = vunpack.c.l.b16 %v1877
    %v2638 = vunpack.c.h.b16 %v1877
    %v2639 = vunpack.c.l.b16 %v1878
    %v2640 = vunpack.c.h.b16 %v1878
    %v2641 = vunpack.c.l.b16 %v1879
    %v2642 = vunpack.c.h.b16 %v1879
    %v2643 = vunpack.c.l.b16 %v1880
    %v2644 = vunpack.c.h.b16 %v1880
    %v2645 = vunpack.c.l.b16 %v1881
    %v2646 = vunpack.c.h.b16 %v1881
    %v2647 = vunpack.c.l.b16 %v1882
    %v2648 = vunpack.c.h.b16 %v1882
    %v2649 = vunpack.c.l.b16 %v1883
    %v2650 = vunpack.c.h.b16 %v1883
    %v2651 = vunpack.c.l.b16 %v1884
    %v2652 = vunpack.c.h.b16 %v1884
    %v2653 = vunpack.c.l.b16 %v1885
    %v2654 = vunpack.c.h.b16 %v1885
    %v2655 = vunpack.c.l.b16 %v1886
    %v2656 = vunpack.c.h.b16 %v1886
    %v2657 = vunpack.c.l.b16 %v1887
    %v2658 = vunpack.c.h.b16 %v1887
    %v2659 = vunpack.c.l.b16 %v1888
    %v2660 = vunpack.c.h.b16 %v1888
    %v2661 = vunpack.c.l.b16 %v1889
    %v2662 = vunpack.c.h.b16 %v1889
    %v2663 = vunpack.c.l.b16 %v1890
    %v2664 = vunpack.c.h.b16 %v1890
    %v2665 = vunpack.c.l.b16 %v1891
    %v2666 = vunpack.c.h.b16 %v1891
    %v2667 = vunpack.c.l.b16 %v1892
    %v2668 = vunpack.c.h.b16 %v1892
    %v2669 = vunpack.c.l.b16 %v1893
    %v2670 = vunpack.c.h.b16 %v1893
    %v2671 = vunpack.c.l.b16 %v1894
    %v2672 = vunpack.c.h.b16 %v1894
    %v2673 = vunpack.c.l.b16 %v1895
    %v2674 = vunpack.c.h.b16 %v1895
    %v2675 = vunpack.c.l.b16 %v1896
    %v2676 = vunpack.c.h.b16 %v1896
    %v2677 = vunpack.c.l.b16 %v1897
    %v2678 = vunpack.c.h.b16 %v1897
    %v2679 = vunpack.c.l.b16 %v1898
    %v2680 = vunpack.c.h.b16 %v1898
    %v2681 = vunpack.c.l.b16 %v1899
    %v2682 = vunpack.c.h.b16 %v1899
    %v2683 = vunpack.c.l.b16 %v1900
    %v2684 = vunpack.c.h.b16 %v1900
    %v2685 = vunpack.c.l.b16 %v1901
    %v2686 = vunpack.c.h.b16 %v1901
    %v2687 = vunpack.c.l.b16 %v1902
    %v2688 = vunpack.c.h.b16 %v1902
    %v2689 = vunpack.c.l.b16 %v1903
    %v2690 = vunpack.c.h.b16 %v1903
    %v2691 = vunpack.c.l.b16 %v1904
    %v2692 = vunpack.c.h.b16 %v1904
    %v2693 = vunpack.c.l.b16 %v1905
    %v2694 = vunpack.c.h.b16 %v1905
    %v2695 = vunpack.c.l.b16 %v1906
    %v2696 = vunpack.c.h.b16 %v1906
    %v2697 = vunpack.c.l.b16 %v1907
    %v2698 = vunpack.c.h.b16 %v1907
    %v2699 = vunpack.c.l.b16 %v1908
    %v2700 = vunpack.c.h.b16 %v1908
    %v2701 = vunpack.c.l.b16 %v1909
    %v2702 = vunpack.c.h.b16 %v1909
    %v2703 = vunpack.c.l.b16 %v1910
    %v2704 = vunpack.c.h.b16 %v1910
    %v2705 = vunpack.c.l.b16 %v1911
    %v2706 = vunpack.c.h.b16 %v1911
    %v2707 = vunpack.c.l.b16 %v1912
    %v2708 = vunpack.c.h.b16 %v1912
    %v2709 = vunpack.c.l.b16 %v1913
    %v2710 = vunpack.c.h.b16 %v1913
    %v2711 = vunpack.c.l.b16 %v1914
    %v2712 = vunpack.c.h.b16 %v1914
    %v2713 = vunpack.c.l.b16 %v1915
    %v2714 = vunpack.c.h.b16 %v1915
    %v2715 = vunpack.c.l.b16 %v1916
    %v2716 = vunpack.c.h.b16 %v1916
    %v2717 = vunpack.c.l.b16 %v1917
    %v2718 = vunpack.c.h.b16 %v1917
    %v2719 = vunpack.c.l.b16 %v1918
    %v2720 = vunpack.c.h.b16 %v1918
    %v2721 = vunpack.c.l.b16 %v1919
    %v2722 = vunpack.c.h.b16 %v1919
    %v2723 = vunpack.c.l.b16 %v1920
    %v2724 = vunpack.c.h.b16 %v1920
    %v2725 = vunpack.c.l.b16 %v1921
    %v2726 = vunpack.c.h.b16 %v1921
    %v2727 = vunpack.c.l.b16 %v1922
    %v2728 = vunpack.c.h.b16 %v1922
    %v2729 = vunpack.c.l.b16 %v1923
    %v2730 = vunpack.c.h.b16 %v1923
    %v2731 = vunpack.c.l.b16 %v1924
    %v2732 = vunpack.c.h.b16 %v1924
    %v2733 = vunpack.c.l.b16 %v1925
    %v2734 = vunpack.c.h.b16 %v1925
    %v2735 = vunpack.c.l.b16 %v1926
    %v2736 = vunpack.c.h.b16 %v1926
    %v2737 = vunpack.c.l.b16 %v1927
    %v2738 = vunpack.c.h.b16 %v1927
    %v2739 = vunpack.c.l.b16 %v1928
    %v2740 = vunpack.c.h.b16 %v1928
    %v2741 = vunpack.c.l.b16 %v1929
    %v2742 = vunpack.c.h.b16 %v1929
    %v2743 = vunpack.c.l.b16 %v1930
    %v2744 = vunpack.c.h.b16 %v1930
    %v2745 = vunpack.c.l.b16 %v1931
    %v2746 = vunpack.c.h.b16 %v1931
    %v2747 = vunpack.c.l.b16 %v1932
    %v2748 = vunpack.c.h.b16 %v1932
    %v2749 = vunpack.c.l.b16 %v1933
    %v2750 = vunpack.c.h.b16 %v1933
    %v2751 = vunpack.c.l.b16 %v1934
    %v2752 = vunpack.c.h.b16 %v1934
    %v2753 = vunpack.c.l.b16 %v1935
    %v2754 = vunpack.c.h.b16 %v1935
    %v2755 = vunpack.c.l.b16 %v1936
    %v2756 = vunpack.c.h.b16 %v1936
    %v2757 = vunpack.c.l.b16 %v1937
    %v2758 = vunpack.c.h.b16 %v1937
    %v2759 = vunpack.c.l.b16 %v1938
    %v2760 = vunpack.c.h.b16 %v1938
    %v2761 = vunpack.c.l.b16 %v1939
    %v2762 = vunpack.c.h.b16 %v1939
    %v2763 = vunpack.c.l.b16 %v1940
    %v2764 = vunpack.c.h.b16 %v1940
    %v2765 = vunpack.c.l.b16 %v1941
    %v2766 = vunpack.c.h.b16 %v1941
    %v2767 = vunpack.c.l.b16 %v1942
    %v2768 = vunpack.c.h.b16 %v1942
    %v2769 = vunpack.c.l.b16 %v1943
    %v2770 = vunpack.c.h.b16 %v1943
    %v2771 = vunpack.c.l.b16 %v1944
    %v2772 = vunpack.c.h.b16 %v1944
    %v2773 = vunpack.c.l.b16 %v1945
    %v2774 = vunpack.c.h.b16 %v1945
    %v2775 = vunpack.c.l.b16 %v1946
    %v2776 = vunpack.c.h.b16 %v1946
    %v2777 = vunpack.c.l.b16 %v1947
    %v2778 = vunpack.c.h.b16 %v1947
    %v2779 = vunpack.c.l.b16 %v1948
    %v2780 = vunpack.c.h.b16 %v1948
    %v2781 = vunpack.c.l.b16 %v1949
    %v2782 = vunpack.c.h.b16 %v1949
    %v2783 = vunpack.c.l.b16 %v1950
    %v2784 = vunpack.c.h.b16 %v1950
    %v2785 = vunpack.c.l.b16 %v1951
    %v2786 = vunpack.c.h.b16 %v1951
    %v2787 = vunpack.c.l.b16 %v1952
    %v2788 = vunpack.c.h.b16 %v1952
    %v2789 = vunpack.c.l.b16 %v1953
    %v2790 = vunpack.c.h.b16 %v1953
    %v2791 = vunpack.c.l.b16 %v1954
    %v2792 = vunpack.c.h.b16 %v1954
    %v2793 = vunpack.c.l.b16 %v1955
    %v2794 = vunpack.c.h.b16 %v1955
    %v2795 = vunpack.c.l.b16 %v1956
    %v2796 = vunpack.c.h.b16 %v1956
    %v2797 = vunpack.c.l.b16 %v1957
    %v2798 = vunpack.c.h.b16 %v1957
    %v2799 = vunpack.c.l.b16 %v1958
    %v2800 = vunpack.c.h.b16 %v1958
    %v2801 = vunpack.c.l.b16 %v1959
    %v2802 = vunpack.c.h.b16 %v1959
    %v2803 = vunpack.c.l.b16 %v1960
    %v2804 = vunpack.c.h.b16 %v1960
    %v2805 = vunpack.c.l.b16 %v1961
    %v2806 = vunpack.c.h.b16 %v1961
    %v2807 = vunpack.c.l.b16 %v1962
    %v2808 = vunpack.c.h.b16 %v1962
    %v2809 = vunpack.c.l.b16 %v1963
    %v2810 = vunpack.c.h.b16 %v1963
    %v2811 = vunpack.c.l.b16 %v1964
    %v2812 = vunpack.c.h.b16 %v1964
    %v2813 = vunpack.c.l.b16 %v1965
    %v2814 = vunpack.c.h.b16 %v1965
    %v2815 = vunpack.c.l.b16 %v1966
    %v2816 = vunpack.c.h.b16 %v1966
    %v2817 = vunpack.c.l.b16 %v1967
    %v2818 = vunpack.c.h.b16 %v1967
    %v2819 = vunpack.c.l.b16 %v1968
    %v2820 = vunpack.c.h.b16 %v1968
    %v2821 = vunpack.c.l.b16 %v1969
    %v2822 = vunpack.c.h.b16 %v1969
    %v2823 = vunpack.c.l.b16 %v1970
    %v2824 = vunpack.c.h.b16 %v1970
    %v2825 = vunpack.c.l.b16 %v1971
    %v2826 = vunpack.c.h.b16 %v1971
    %v2827 = vunpack.c.l.b16 %v1972
    %v2828 = vunpack.c.h.b16 %v1972
    %v2829 = vunpack.c.l.b16 %v1973
    %v2830 = vunpack.c.h.b16 %v1973
    %v2831 = vunpack.c.l.b16 %v1974
    %v2832 = vunpack.c.h.b16 %v1974
    %v2833 = vunpack.c.l.b16 %v1975
    %v2834 = vunpack.c.h.b16 %v1975
    %v2835 = vunpack.c.l.b16 %v1976
    %v2836 = vunpack.c.h.b16 %v1976
    %v2837 = vunpack.c.l.b16 %v1977
    %v2838 = vunpack.c.h.b16 %v1977
    %v2839 = vunpack.c.l.b16 %v1978
    %v2840 = vunpack.c.h.b16 %v1978
    %v2841 = vunpack.c.l.b16 %v1979
    %v2842 = vunpack.c.h.b16 %v1979
    %v2843 = vunpack.c.l.b16 %v1980
    %v2844 = vunpack.c.h.b16 %v1980
    %v2845 = vunpack.c.l.b16 %v1981
    %v2846 = vunpack.c.h.b16 %v1981
    %v2847 = vunpack.c.l.b16 %v1982
    %v2848 = vunpack.c.h.b16 %v1982
    %v2849 = vunpack.c.l.b16 %v1983
    %v2850 = vunpack.c.h.b16 %v1983
    %v2851 = vunpack.c.l.b16 %v1984
    %v2852 = vunpack.c.h.b16 %v1984
    %v2853 = vunpack.c.l.b16 %v1985
    %v2854 = vunpack.c.h.b16 %v1985
    %v2855 = vunpack.c.l.b16 %v1986
    %v2856 = vunpack.c.h.b16 %v1986
    %v2857 = vunpack.c.l.b16 %v1987
    %v2858 = vunpack.c.h.b16 %v1987
    %v2859 = vunpack.c.l.b16 %v1988
    %v2860 = vunpack.c.h.b16 %v1988
    %v2861 = vunpack.c.l.b16 %v1989
    %v2862 = vunpack.c.h.b16 %v1989
    %v2863 = vunpack.c.l.b16 %v1990
    %v2864 = vunpack.c.h.b16 %v1990
    %v2865 = vunpack.c.l.b16 %v1991
    %v2866 = vunpack.c.h.b16 %v1991
    %v2867 = vunpack.c.l.b16 %v1992
    %v2868 = vunpack.c.h.b16 %v1992
    %v2869 = vunpack.c.l.b16 %v1993
    %v2870 = vunpack.c.h.b16 %v1993
    %v2871 = vunpack.c.l.b16 %v1994
    %v2872 = vunpack.c.h.b16 %v1994
    %v2873 = vunpack.c.l.b16 %v1995
    %v2874 = vunpack.c.h.b16 %v1995
    %v2875 = vunpack.c.l.b16 %v1996
    %v2876 = vunpack.c.h.b16 %v1996
    %v2877 = vunpack.c.l.b16 %v1997
    %v2878 = vunpack.c.h.b16 %v1997
    %v2879 = vunpack.c.l.b16 %v1998
    %v2880 = vunpack.c.h.b16 %v1998
    %v2881 = vunpack.c.l.b16 %v1999
    %v2882 = vunpack.c.h.b16 %v1999
    %v2883 = vunpack.c.l.b16 %v2000
    %v2884 = vunpack.c.h.b16 %v2000
    %v2885 = vunpack.c.l.b16 %v2001
    %v2886 = vunpack.c.h.b16 %v2001
    %v2887 = vunpack.c.l.b16 %v2002
    %v2888 = vunpack.c.h.b16 %v2002
    %v2889 = vunpack.c.l.b16 %v2003
    %v2890 = vunpack.c.h.b16 %v2003
    %v2891 = vunpack.c.l.b16 %v2004
    %v2892 = vunpack.c.h.b16 %v2004
    %v2893 = vunpack.c.l.b16 %v2005
    %v2894 = vunpack.c.h.b16 %v2005
    %v2895 = vunpack.c.l.b16 %v2006
    %v2896 = vunpack.c.h.b16 %v2006
    %v2897 = vunpack.c.l.b16 %v2007
    %v2898 = vunpack.c.h.b16 %v2007
    %v2899 = vunpack.c.l.b16 %v2008
    %v2900 = vunpack.c.h.b16 %v2008
    %v2901 = vunpack.c.l.b16 %v2009
    %v2902 = vunpack.c.h.b16 %v2009
    %v2903 = vunpack.c.l.b16 %v2010
    %v2904 = vunpack.c.h.b16 %v2010
    %v2905 = vunpack.c.l.b16 %v2011
    %v2906 = vunpack.c.h.b16 %v2011
    %v2907 = vunpack.c.l.b16 %v2012
    %v2908 = vunpack.c.h.b16 %v2012
    %v2909 = vunpack.c.l.b16 %v2013
    %v2910 = vunpack.c.h.b16 %v2013
    %v2911 = vunpack.c.l.b16 %v2014
    %v2912 = vunpack.c.h.b16 %v2014
    %v2913 = vunpack.c.l.b16 %v2015
    %v2914 = vunpack.c.h.b16 %v2015
    %v2915 = vunpack.c.l.b16 %v2016
    %v2916 = vunpack.c.h.b16 %v2016
    %v2917 = vunpack.c.l.b16 %v2017
    %v2918 = vunpack.c.h.b16 %v2017
    %v2919 = vunpack.c.l.b16 %v2018
    %v2920 = vunpack.c.h.b16 %v2018
    %v2921 = vunpack.c.l.b16 %v2019
    %v2922 = vunpack.c.h.b16 %v2019
    %v2923 = vunpack.c.l.b16 %v2020
    %v2924 = vunpack.c.h.b16 %v2020
    %v2925 = vunpack.c.l.b16 %v2021
    %v2926 = vunpack.c.h.b16 %v2021
    %v2927 = vunpack.c.l.b16 %v2022
    %v2928 = vunpack.c.h.b16 %v2022
    %v2929 = vunpack.c.l.b16 %v2023
    %v2930 = vunpack.c.h.b16 %v2023
    %v2931 = vunpack.c.l.b16 %v2024
    %v2932 = vunpack.c.h.b16 %v2024
    %v2933 = vunpack.c.l.b16 %v2025
    %v2934 = vunpack.c.h.b16 %v2025
    %v2935 = vunpack.c.l.b16 %v2026
    %v2936 = vunpack.c.h.b16 %v2026
    %v2937 = vunpack.c.l.b16 %v2027
    %v2938 = vunpack.c.h.b16 %v2027
    %v2939 = vunpack.c.l.b16 %v2028
    %v2940 = vunpack.c.h.b16 %v2028
    %v2941 = vunpack.c.l.b16 %v2029
    %v2942 = vunpack.c.h.b16 %v2029
    %v2943 = vunpack.c.l.b16 %v2030
    %v2944 = vunpack.c.h.b16 %v2030
    %v2945 = vunpack.c.l.b16 %v2031
    %v2946 = vunpack.c.h.b16 %v2031
    %v2947 = vunpack.c.l.b16 %v2032
    %v2948 = vunpack.c.h.b16 %v2032
    %v2949 = vunpack.c.l.b16 %v2033
    %v2950 = vunpack.c.h.b16 %v2033
    %v2951 = vunpack.c.l.b16 %v2034
    %v2952 = vunpack.c.h.b16 %v2034
    %v2953 = vunpack.c.l.b16 %v2035
    %v2954 = vunpack.c.h.b16 %v2035
    %v2955 = vunpack.c.l.b16 %v2036
    %v2956 = vunpack.c.h.b16 %v2036
    %v2957 = vunpack.c.l.b16 %v2037
    %v2958 = vunpack.c.h.b16 %v2037
    %v2959 = vunpack.c.l.b16 %v2038
    %v2960 = vunpack.c.h.b16 %v2038
    %v2961 = vunpack.c.l.b16 %v2039
    %v2962 = vunpack.c.h.b16 %v2039
    %v2963 = vunpack.c.l.b16 %v2040
    %v2964 = vunpack.c.h.b16 %v2040
    %v2965 = vunpack.c.l.b16 %v2041
    %v2966 = vunpack.c.h.b16 %v2041
    %v2967 = vunpack.c.l.b16 %v2042
    %v2968 = vunpack.c.h.b16 %v2042
    %v2969 = vunpack.c.l.b16 %v2043
    %v2970 = vunpack.c.h.b16 %v2043
    %v2971 = vunpack.c.l.b16 %v2044
    %v2972 = vunpack.c.h.b16 %v2044
    %v2973 = vunpack.c.l.b16 %v2045
    %v2974 = vunpack.c.h.b16 %v2045
    %v2975 = vunpack.c.l.b16 %v2046
    %v2976 = vunpack.c.h.b16 %v2046
    %v2977 = vunpack.c.l.b16 %v2047
    %v2978 = vunpack.c.h.b16 %v2047
    %v2979 = vunpack.c.l.b16 %v2048
    %v2980 = vunpack.c.h.b16 %v2048
    %v2981 = vunpack.c.l.b16 %v2049
    %v2982 = vunpack.c.h.b16 %v2049
    %v2983 = vunpack.c.l.b16 %v2050
    %v2984 = vunpack.c.h.b16 %v2050
    %v2985 = vunpack.c.l.b16 %v2051
    %v2986 = vunpack.c.h.b16 %v2051
    %v2987 = vunpack.c.l.b16 %v2052
    %v2988 = vunpack.c.h.b16 %v2052
    %v2989 = vunpack.c.l.b16 %v2053
    %v2990 = vunpack.c.h.b16 %v2053
    %v2991 = vunpack.c.l.b16 %v2054
    %v2992 = vunpack.c.h.b16 %v2054
    %v2993 = vunpack.c.l.b16 %v2055
    %v2994 = vunpack.c.h.b16 %v2055
    %v2995 = vunpack.c.l.b16 %v2056
    %v2996 = vunpack.c.h.b16 %v2056
    %v2997 = vunpack.c.l.b16 %v2057
    %v2998 = vunpack.c.h.b16 %v2057
    %v2999 = vunpack.c.l.b16 %v2058
    %v3000 = vunpack.c.h.b16 %v2058
    %v3001 = vunpack.c.l.b16 %v2059
    %v3002 = vunpack.c.h.b16 %v2059
    %v3003 = vunpack.c.l.b16 %v2060
    %v3004 = vunpack.c.h.b16 %v2060
    %v3005 = vunpack.c.l.b16 %v2061
    %v3006 = vunpack.c.h.b16 %v2061
    %v3007 = vunpack.c.l.b16 %v2062
    %v3008 = vunpack.c.h.b16 %v2062
    %v3009 = vunpack.c.l.b16 %v2063
    %v3010 = vunpack.c.h.b16 %v2063
    %v3011 = vunpack.c.l.b16 %v2064
    %v3012 = vunpack.c.h.b16 %v2064
    %v3013 = vpack.c.b16 %v2633, %v2629
    %v3014 = vpack.c.b16 %v2634, %v2630
    %v3015 = vpack.c.b16 %v2635, %v2631
    %v3016 = vpack.c.b16 %v2636, %v2632
    %v3017 = vpack.c.b16 %v2641, %v2637
    %v3018 = vpack.c.b16 %v2642, %v2638
    %v3019 = vpack.c.b16 %v2643, %v2639
    %v3020 = vpack.c.b16 %v2644, %v2640
    %v3021 = vpack.c.b16 %v2649, %v2645
    %v3022 = vpack.c.b16 %v2650, %v2646
    %v3023 = vpack.c.b16 %v2651, %v2647
    %v3024 = vpack.c.b16 %v2652, %v2648
    %v3025 = vpack.c.b16 %v2657, %v2653
    %v3026 = vpack.c.b16 %v2658, %v2654
    %v3027 = vpack.c.b16 %v2659, %v2655
    %v3028 = vpack.c.b16 %v2660, %v2656
    %v3029 = vpack.c.b16 %v2665, %v2661
    %v3030 = vpack.c.b16 %v2666, %v2662
    %v3031 = vpack.c.b16 %v2667, %v2663
    %v3032 = vpack.c.b16 %v2668, %v2664
    %v3033 = vpack.c.b16 %v2673, %v2669
    %v3034 = vpack.c.b16 %v2674, %v2670
    %v3035 = vpack.c.b16 %v2675, %v2671
    %v3036 = vpack.c.b16 %v2676, %v2672
    %v3037 = vpack.c.b16 %v2681, %v2677
    %v3038 = vpack.c.b16 %v2682, %v2678
    %v3039 = vpack.c.b16 %v2683, %v2679
    %v3040 = vpack.c.b16 %v2684, %v2680
    %v3041 = vpack.c.b16 %v2689, %v2685
    %v3042 = vpack.c.b16 %v2690, %v2686
    %v3043 = vpack.c.b16 %v2691, %v2687
    %v3044 = vpack.c.b16 %v2692, %v2688
    %v3045 = vpack.c.b16 %v2697, %v2693
    %v3046 = vpack.c.b16 %v2698, %v2694
    %v3047 = vpack.c.b16 %v2699, %v2695
    %v3048 = vpack.c.b16 %v2700, %v2696
    %v3049 = vpack.c.b16 %v2705, %v2701
    %v3050 = vpack.c.b16 %v2706, %v2702
    %v3051 = vpack.c.b16 %v2707, %v2703
    %v3052 = vpack.c.b16 %v2708, %v2704
    %v3053 = vpack.c.b16 %v2713, %v2709
    %v3054 = vpack.c.b16 %v2714, %v2710
    %v3055 = vpack.c.b16 %v2715, %v2711
    %v3056 = vpack.c.b16 %v2716, %v2712
    %v3057 = vpack.c.b16 %v2721, %v2717
    %v3058 = vpack.c.b16 %v2722, %v2718
    %v3059 = vpack.c.b16 %v2723, %v2719
    %v3060 = vpack.c.b16 %v2724, %v2720
    %v3061 = vpack.c.b16 %v2729, %v2725
    %v3062 = vpack.c.b16 %v2730, %v2726
    %v3063 = vpack.c.b16 %v2731, %v2727
    %v3064 = vpack.c.b16 %v2732, %v2728
    %v3065 = vpack.c.b16 %v2737, %v2733
    %v3066 = vpack.c.b16 %v2738, %v2734
    %v3067 = vpack.c.b16 %v2739, %v2735
    %v3068 = vpack.c.b16 %v2740, %v2736
    %v3069 = vpack.c.b16 %v2745, %v2741
    %v3070 = vpack.c.b16 %v2746, %v2742
    %v3071 = vpack.c.b16 %v2747, %v2743
    %v3072 = vpack.c.b16 %v2748, %v2744
    %v3073 = vpack.c.b16 %v2753, %v2749
    %v3074 = vpack.c.b16 %v2754, %v2750
    %v3075 = vpack.c.b16 %v2755, %v2751
    %v3076 = vpack.c.b16 %v2756, %v2752
    %v3077 = vpack.c.b16 %v2761, %v2757
    %v3078 = vpack.c.b16 %v2762, %v2758
    %v3079 = vpack.c.b16 %v2763, %v2759
    %v3080 = vpack.c.b16 %v2764, %v2760
    %v3081 = vpack.c.b16 %v2769, %v2765
    %v3082 = vpack.c.b16 %v2770, %v2766
    %v3083 = vpack.c.b16 %v2771, %v2767
    %v3084 = vpack.c.b16 %v2772, %v2768
    %v3085 = vpack.c.b16 %v2777, %v2773
    %v3086 = vpack.c.b16 %v2778, %v2774
    %v3087 = vpack.c.b16 %v2779, %v2775
    %v3088 = vpack.c.b16 %v2780, %v2776
    %v3089 = vpack.c.b16 %v2785, %v2781
    %v3090 = vpack.c.b16 %v2786, %v2782
    %v3091 = vpack.c.b16 %v2787, %v2783
    %v3092 = vpack.c.b16 %v2788, %v2784
    %v3093 = vpack.c.b16 %v2793, %v2789
    %v3094 = vpack.c.b16 %v2794, %v2790
    %v3095 = vpack.c.b16 %v2795, %v2791
    %v3096 = vpack.c.b16 %v2796, %v2792
    %v3097 = vpack.c.b16 %v2801, %v2797
    %v3098 = vpack.c.b16 %v2802, %v2798
    %v3099 = vpack.c.b16 %v2803, %v2799
    %v3100 = vpack.c.b16 %v2804, %v2800
    %v3101 = vpack.c.b16 %v2809, %v2805
    %v3102 = vpack.c.b16 %v2810, %v2806
    %v3103 = vpack.c.b16 %v2811, %v2807
    %v3104 = vpack.c.b16 %v2812, %v2808
    %v3105 = vpack.c.b16 %v2817, %v2813
    %v3106 = vpack.c.b16 %v2818, %v2814
    %v3107 = vpack.c.b16 %v2819, %v2815
    %v3108 = vpack.c.b16 %v2820, %v2816
    %v3109 = vpack.c.b16 %v2825, %v2821
    %v3110 = vpack.c.b16 %v2826, %v2822
    %v3111 = vpack.c.b16 %v2827, %v2823
    %v3112 = vpack.c.b16 %v2828, %v2824
    %v3113 = vpack.c.b16 %v2833, %v2829
    %v3114 = vpack.c.b16 %v2834, %v2830
    %v3115 = vpack.c.b16 %v2835, %v2831
    %v3116 = vpack.c.b16 %v2836, %v2832
    %v3117 = vpack.c.b16 %v2841, %v2837
    %v3118 = vpack.c.b16 %v2842, %v2838
    %v3119 = vpack.c.b16 %v2843, %v2839
    %v3120 = vpack.c.b16 %v2844, %v2840
    %v3121 = vpack.c.b16 %v2849, %v2845
    %v3122 = vpack.c.b16 %v2850, %v2846
    %v3123 = vpack.c.b16 %v2851, %v2847
    %v3124 = vpack.c.b16 %v2852, %v2848
    %v3125 = vpack.c.b16 %v2857, %v2853
    %v3126 = vpack.c.b16 %v2858, %v2854
    %v3127 = vpack.c.b16 %v2859, %v2855
    %v3128 = vpack.c.b16 %v2860, %v2856
    %v3129 = vpack.c.b16 %v2865, %v2861
    %v3130 = vpack.c.b16 %v2866, %v2862
    %v3131 = vpack.c.b16 %v2867, %v2863
    %v3132 = vpack.c.b16 %v2868, %v2864
    %v3133 = vpack.c.b16 %v2873, %v2869
    %v3134 = vpack.c.b16 %v2874, %v2870
    %v3135 = vpack.c.b16 %v2875, %v2871
    %v3136 = vpack.c.b16 %v2876, %v2872
    %v3137 = vpack.c.b16 %v2881, %v2877
    %v3138 = vpack.c.b16 %v2882, %v2878
    %v3139 = vpack.c.b16 %v2883, %v2879
    %v3140 = vpack.c.b16 %v2884, %v2880
    %v3141 = vpack.c.b16 %v2889, %v2885
    %v3142 = vpack.c.b16 %v2890, %v2886
    %v3143 = vpack.c.b16 %v2891, %v2887
    %v3144 = vpack.c.b16 %v2892, %v2888
    %v3145 = vpack.c.b16 %v2897, %v2893
    %v3146 = vpack.c.b16 %v2898, %v2894
    %v3147 = vpack.c.b16 %v2899, %v2895
    %v3148 = vpack.c.b16 %v2900, %v2896
    %v3149 = vpack.c.b16 %v2905, %v2901
    %v3150 = vpack.c.b16 %v2906, %v2902
    %v3151 = vpack.c.b16 %v2907, %v2903
    %v3152 = vpack.c.b16 %v2908, %v2904
    %v3153 = vpack.c.b16 %v2913, %v2909
    %v3154 = vpack.c.b16 %v2914, %v2910
    %v3155 = vpack.c.b16 %v2915, %v2911
    %v3156 = vpack.c.b16 %v2916, %v2912
    %v3157 = vpack.c.b16 %v2921, %v2917
    %v3158 = vpack.c.b16 %v2922, %v2918
    %v3159 = vpack.c.b16 %v2923, %v2919
    %v3160 = vpack.c.b16 %v2924, %v2920
    %v3161 = vpack.c.b16 %v2929, %v2925
    %v3162 = vpack.c.b16 %v2930, %v2926
    %v3163 = vpack.c.b16 %v2931, %v2927
    %v3164 = vpack.c.b16 %v2932, %v2928
    %v3165 = vpack.c.b16 %v2937, %v2933
    %v3166 = vpack.c.b16 %v2938, %v2934
    %v3167 = vpack.c.b16 %v2939, %v2935
    %v3168 = vpack.c.b16 %v2940, %v2936
    %v3169 = vpack.c.b16 %v2945, %v2941
    %v3170 = vpack.c.b16 %v2946, %v2942
    %v3171 = vpack.c.b16 %v2947, %v2943
    %v3172 = vpack.c.b16 %v2948, %v2944
    %v3173 = vpack.c.b16 %v2953, %v2949
    %v3174 = vpack.c.b16 %v2954, %v2950
    %v3175 = vpack.c.b16 %v2955, %v2951
    %v3176 = vpack.c.b16 %v2956, %v2952
    %v3177 = vpack.c.b16 %v2961, %v2957
    %v3178 = vpack.c.b16 %v2962, %v2958
    %v3179 = vpack.c.b16 %v2963, %v2959
    %v3180 = vpack.c.b16 %v2964, %v2960
    %v3181 = vpack.c.b16 %v2969, %v2965
    %v3182 = vpack.c.b16 %v2970, %v2966
    %v3183 = vpack.c.b16 %v2971, %v2967
    %v3184 = vpack.c.b16 %v2972, %v2968
    %v3185 = vpack.c.b16 %v2977, %v2973
    %v3186 = vpack.c.b16 %v2978, %v2974
    %v3187 = vpack.c.b16 %v2979, %v2975
    %v3188 = vpack.c.b16 %v2980, %v2976
    %v3189 = vpack.c.b16 %v2985, %v2981
    %v3190 = vpack.c.b16 %v2986, %v2982
    %v3191 = vpack.c.b16 %v2987, %v2983
    %v3192 = vpack.c.b16 %v2988, %v2984
    %v3193 = vpack.c.b16 %v2993, %v2989
    %v3194 = vpack.c.b16 %v2994, %v2990
    %v3195 = vpack.c.b16 %v2995, %v2991
    %v3196 = vpack.c.b16 %v2996, %v2992
    %v3197 = vpack.c.b16 %v3001, %v2997
    %v3198 = vpack.c.b16 %v3002, %v2998
    %v3199 = vpack.c.b16 %v3003, %v2999
    %v3200 = vpack.c.b16 %v3004, %v3000
    %v3201 = vpack.c.b16 %v3009, %v3005
    %v3202 = vpack.c.b16 %v3010, %v3006
    %v3203 = vpack.c.b16 %v3011, %v3007
    %v3204 = vpack.c.b16 %v3012, %v3008
    %3397 = vmatprep.subr.bf16.mxu0 %v3014
    %3398 = vmatpush1.bf16.msra.mxu0 %v3013
    %3399 = vmatprep.subr.bf16.mxu0 %v3018
    %3400 = vmatpush1.bf16.msra.mxu0 %v3017
    %3401 = vmatprep.subr.bf16.mxu0 %v3022
    %3402 = vmatpush1.bf16.msra.mxu0 %v3021
    %3403 = vmatprep.subr.bf16.mxu0 %v3026
    %3404 = vmatpush1.bf16.msra.mxu0 %v3025
    %3405 = vmatprep.subr.bf16.mxu0 %v3030
    %3406 = vmatpush1.bf16.msra.mxu0 %v3029
    %3407 = vmatprep.subr.bf16.mxu0 %v3034
    %3408 = vmatpush1.bf16.msra.mxu0 %v3033
    %3409 = vmatprep.subr.bf16.mxu0 %v3038
    %3410 = vmatpush1.bf16.msra.mxu0 %v3037
    %3411 = vmatprep.subr.bf16.mxu0 %v3042
    %3412 = vmatpush1.bf16.msra.mxu0 %v3041
    %3413 = vmatprep.subr.bf16.mxu0 %v3046
    %3414 = vmatpush1.bf16.msra.mxu0 %v3045
    %3415 = vmatprep.subr.bf16.mxu0 %v3050
    %3416 = vmatpush1.bf16.msra.mxu0 %v3049
    %3417 = vmatprep.subr.bf16.mxu0 %v3054
    %3418 = vmatpush1.bf16.msra.mxu0 %v3053
    %3419 = vmatprep.subr.bf16.mxu0 %v3058
    %3420 = vmatpush1.bf16.msra.mxu0 %v3057
    %3421 = vmatprep.subr.bf16.mxu0 %v3062
    %3422 = vmatpush1.bf16.msra.mxu0 %v3061
    %3423 = vmatprep.subr.bf16.mxu0 %v3066
    %3424 = vmatpush1.bf16.msra.mxu0 %v3065
    %3425 = vmatprep.subr.bf16.mxu0 %v3070
    %3426 = vmatpush1.bf16.msra.mxu0 %v3069
    %3427 = vmatprep.subr.bf16.mxu0 %v3074
    %3428 = vmatpush1.bf16.msra.mxu0 %v3073
    %3429 = vmatprep.mubr.bf16.mxu0 %v2426
    %3430 = vmatmul.mubr.bf16.gmra.mrb[0].mxu0 %v2425
    %v3431 = vpop.f32.mrb[0].mxu0
    %v3432 = vadd.f32 0.0, %v3431
    %v3433 = vpop.f32.mrb[0].mxu0
    %v3434 = vadd.f32 0.0, %v3433
    %v3435 = vpop.f32.mrb[0].mxu0
    %v3436 = vadd.f32 0.0, %v3435
    %v3437 = vpop.f32.mrb[0].mxu0
    %v3438 = vadd.f32 0.0, %v3437
    %3439 = vdwg.mxu0
    %3440 = vmatprep.subr.bf16.mxu0 %v3078
    %3441 = vmatpush1.bf16.msra.mxu0 %v3077
    %3442 = vmatprep.subr.bf16.mxu0 %v3082
    %3443 = vmatpush1.bf16.msra.mxu0 %v3081
    %3444 = vmatprep.subr.bf16.mxu0 %v3086
    %3445 = vmatpush1.bf16.msra.mxu0 %v3085
    %3446 = vmatprep.subr.bf16.mxu0 %v3090
    %3447 = vmatpush1.bf16.msra.mxu0 %v3089
    %3448 = vmatprep.subr.bf16.mxu0 %v3094
    %3449 = vmatpush1.bf16.msra.mxu0 %v3093
    %3450 = vmatprep.subr.bf16.mxu0 %v3098
    %3451 = vmatpush1.bf16.msra.mxu0 %v3097
    %3452 = vmatprep.subr.bf16.mxu0 %v3102
    %3453 = vmatpush1.bf16.msra.mxu0 %v3101
    %3454 = vmatprep.subr.bf16.mxu0 %v3106
    %3455 = vmatpush1.bf16.msra.mxu0 %v3105
    %3456 = vmatprep.subr.bf16.mxu0 %v3110
    %3457 = vmatpush1.bf16.msra.mxu0 %v3109
    %3458 = vmatprep.subr.bf16.mxu0 %v3114
    %3459 = vmatpush1.bf16.msra.mxu0 %v3113
    %3460 = vmatprep.subr.bf16.mxu0 %v3118
    %3461 = vmatpush1.bf16.msra.mxu0 %v3117
    %3462 = vmatprep.subr.bf16.mxu0 %v3122
    %3463 = vmatpush1.bf16.msra.mxu0 %v3121
    %3464 = vmatprep.subr.bf16.mxu0 %v3126
    %3465 = vmatpush1.bf16.msra.mxu0 %v3125
    %3466 = vmatprep.subr.bf16.mxu0 %v3130
    %3467 = vmatpush1.bf16.msra.mxu0 %v3129
    %3468 = vmatprep.subr.bf16.mxu0 %v3134
    %3469 = vmatpush1.bf16.msra.mxu0 %v3133
    %3470 = vmatprep.subr.bf16.mxu0 %v3138
    %3471 = vmatpush1.bf16.msra.mxu0 %v3137
    %3472 = vmatprep.mubr.bf16.mxu0 %v2428
    %3473 = vmatmul.mubr.bf16.gmra.mrb[0].mxu0 %v2427
    %v3474 = vpop.f32.mrb[0].mxu0
    %v3475 = vadd.f32 %v3432, %v3474
    %v3476 = vpop.f32.mrb[0].mxu0
    %v3477 = vadd.f32 %v3434, %v3476
    %v3478 = vpop.f32.mrb[0].mxu0
    %v3479 = vadd.f32 %v3436, %v3478
    %v3480 = vpop.f32.mrb[0].mxu0
    %v3481 = vadd.f32 %v3438, %v3480
    %3482 = vdwg.mxu0
    %3483 = vmatprep.subr.bf16.mxu0 %v3142
    %3484 = vmatpush1.bf16.msra.mxu0 %v3141
    %3485 = vmatprep.subr.bf16.mxu0 %v3146
    %3486 = vmatpush1.bf16.msra.mxu0 %v3145
    %3487 = vmatprep.subr.bf16.mxu0 %v3150
    %3488 = vmatpush1.bf16.msra.mxu0 %v3149
    %3489 = vmatprep.subr.bf16.mxu0 %v3154
    %3490 = vmatpush1.bf16.msra.mxu0 %v3153
    %3491 = vmatprep.subr.bf16.mxu0 %v3158
    %3492 = vmatpush1.bf16.msra.mxu0 %v3157
    %3493 = vmatprep.subr.bf16.mxu0 %v3162
    %3494 = vmatpush1.bf16.msra.mxu0 %v3161
    %3495 = vmatprep.subr.bf16.mxu0 %v3166
    %3496 = vmatpush1.bf16.msra.mxu0 %v3165
    %3497 = vmatprep.subr.bf16.mxu0 %v3170
    %3498 = vmatpush1.bf16.msra.mxu0 %v3169
    %3499 = vmatprep.subr.bf16.mxu0 %v3174
    %3500 = vmatpush1.bf16.msra.mxu0 %v3173
    %3501 = vmatprep.subr.bf16.mxu0 %v3178
    %3502 = vmatpush1.bf16.msra.mxu0 %v3177
    %3503 = vmatprep.subr.bf16.mxu0 %v3182
    %3504 = vmatpush1.bf16.msra.mxu0 %v3181
    %3505 = vmatprep.subr.bf16.mxu0 %v3186
    %3506 = vmatpush1.bf16.msra.mxu0 %v3185
    %3507 = vmatprep.subr.bf16.mxu0 %v3190
    %3508 = vmatpush1.bf16.msra.mxu0 %v3189
    %3509 = vmatprep.subr.bf16.mxu0 %v3194
    %3510 = vmatpush1.bf16.msra.mxu0 %v3193
    %3511 = vmatprep.subr.bf16.mxu0 %v3198
    %3512 = vmatpush1.bf16.msra.mxu0 %v3197
    %3513 = vmatprep.subr.bf16.mxu0 %v3202
    %3514 = vmatpush1.bf16.msra.mxu0 %v3201
    %3515 = vmatprep.mubr.bf16.mxu0 %v2430
    %3516 = vmatmul.mubr.bf16.gmra.mrb[0].mxu0 %v2429
    %v3517 = vpop.f32.mrb[0].mxu0
    %v3518 = vadd.f32 %v3475, %v3517
    %v3519 = vpop.f32.mrb[0].mxu0
    %v3520 = vadd.f32 %v3477, %v3519
    %v3521 = vpop.f32.mrb[0].mxu0
    %v3522 = vadd.f32 %v3479, %v3521
    %v3523 = vpop.f32.mrb[0].mxu0
    %v3524 = vadd.f32 %v3481, %v3523
    %3525 = vdwg.mxu0
    %3526 = vmatprep.subr.bf16.mxu0 %v3016
    %3527 = vmatpush1.bf16.msra.mxu0 %v3015
    %3528 = vmatprep.subr.bf16.mxu0 %v3020
    %3529 = vmatpush1.bf16.msra.mxu0 %v3019
    %3530 = vmatprep.subr.bf16.mxu0 %v3024
    %3531 = vmatpush1.bf16.msra.mxu0 %v3023
    %3532 = vmatprep.subr.bf16.mxu0 %v3028
    %3533 = vmatpush1.bf16.msra.mxu0 %v3027
    %3534 = vmatprep.subr.bf16.mxu0 %v3032
    %3535 = vmatpush1.bf16.msra.mxu0 %v3031
    %3536 = vmatprep.subr.bf16.mxu0 %v3036
    %3537 = vmatpush1.bf16.msra.mxu0 %v3035
    %3538 = vmatprep.subr.bf16.mxu0 %v3040
    %3539 = vmatpush1.bf16.msra.mxu0 %v3039
    %3540 = vmatprep.subr.bf16.mxu0 %v3044
    %3541 = vmatpush1.bf16.msra.mxu0 %v3043
    %3542 = vmatprep.subr.bf16.mxu0 %v3048
    %3543 = vmatpush1.bf16.msra.mxu0 %v3047
    %3544 = vmatprep.subr.bf16.mxu0 %v3052
    %3545 = vmatpush1.bf16.msra.mxu0 %v3051
    %3546 = vmatprep.subr.bf16.mxu0 %v3056
    %3547 = vmatpush1.bf16.msra.mxu0 %v3055
    %3548 = vmatprep.subr.bf16.mxu0 %v3060
    %3549 = vmatpush1.bf16.msra.mxu0 %v3059
    %3550 = vmatprep.subr.bf16.mxu0 %v3064
    %3551 = vmatpush1.bf16.msra.mxu0 %v3063
    %3552 = vmatprep.subr.bf16.mxu0 %v3068
    %3553 = vmatpush1.bf16.msra.mxu0 %v3067
    %3554 = vmatprep.subr.bf16.mxu0 %v3072
    %3555 = vmatpush1.bf16.msra.mxu0 %v3071
    %3556 = vmatprep.subr.bf16.mxu0 %v3076
    %3557 = vmatpush1.bf16.msra.mxu0 %v3075
    %3558 = vmatprep.mubr.bf16.mxu0 %v2426
    %3559 = vmatmul.mubr.bf16.gmra.mrb[0].mxu0 %v2425
    %v3560 = vpop.f32.mrb[0].mxu0
    %v3561 = vadd.f32 0.0, %v3560
    %v3562 = vpop.f32.mrb[0].mxu0
    %v3563 = vadd.f32 0.0, %v3562
    %v3564 = vpop.f32.mrb[0].mxu0
    %v3565 = vadd.f32 0.0, %v3564
    %v3566 = vpop.f32.mrb[0].mxu0
    %v3567 = vadd.f32 0.0, %v3566
    %3568 = vdwg.mxu0
    %3569 = vmatprep.subr.bf16.mxu0 %v3080
    %3570 = vmatpush1.bf16.msra.mxu0 %v3079
    %3571 = vmatprep.subr.bf16.mxu0 %v3084
    %3572 = vmatpush1.bf16.msra.mxu0 %v3083
    %3573 = vmatprep.subr.bf16.mxu0 %v3088
    %3574 = vmatpush1.bf16.msra.mxu0 %v3087
    %3575 = vmatprep.subr.bf16.mxu0 %v3092
    %3576 = vmatpush1.bf16.msra.mxu0 %v3091
    %3577 = vmatprep.subr.bf16.mxu0 %v3096
    %3578 = vmatpush1.bf16.msra.mxu0 %v3095
    %3579 = vmatprep.subr.bf16.mxu0 %v3100
    %3580 = vmatpush1.bf16.msra.mxu0 %v3099
    %3581 = vmatprep.subr.bf16.mxu0 %v3104
    %3582 = vmatpush1.bf16.msra.mxu0 %v3103
    %3583 = vmatprep.subr.bf16.mxu0 %v3108
    %3584 = vmatpush1.bf16.msra.mxu0 %v3107
    %3585 = vmatprep.subr.bf16.mxu0 %v3112
    %3586 = vmatpush1.bf16.msra.mxu0 %v3111
    %3587 = vmatprep.subr.bf16.mxu0 %v3116
    %3588 = vmatpush1.bf16.msra.mxu0 %v3115
    %3589 = vmatprep.subr.bf16.mxu0 %v3120
    %3590 = vmatpush1.bf16.msra.mxu0 %v3119
    %3591 = vmatprep.subr.bf16.mxu0 %v3124
    %3592 = vmatpush1.bf16.msra.mxu0 %v3123
    %3593 = vmatprep.subr.bf16.mxu0 %v3128
    %3594 = vmatpush1.bf16.msra.mxu0 %v3127
    %3595 = vmatprep.subr.bf16.mxu0 %v3132
    %3596 = vmatpush1.bf16.msra.mxu0 %v3131
    %3597 = vmatprep.subr.bf16.mxu0 %v3136
    %3598 = vmatpush1.bf16.msra.mxu0 %v3135
    %3599 = vmatprep.subr.bf16.mxu0 %v3140
    %3600 = vmatpush1.bf16.msra.mxu0 %v3139
    %3601 = vmatprep.mubr.bf16.mxu0 %v2428
    %3602 = vmatmul.mubr.bf16.gmra.mrb[0].mxu0 %v2427
    %v3603 = vpop.f32.mrb[0].mxu0
    %v3604 = vadd.f32 %v3561, %v3603
    %v3605 = vpop.f32.mrb[0].mxu0
    %v3606 = vadd.f32 %v3563, %v3605
    %v3607 = vpop.f32.mrb[0].mxu0
    %v3608 = vadd.f32 %v3565, %v3607
    %v3609 = vpop.f32.mrb[0].mxu0
    %v3610 = vadd.f32 %v3567, %v3609
    %3611 = vdwg.mxu0
    %3612 = vmatprep.subr.bf16.mxu0 %v3144
    %3613 = vmatpush1.bf16.msra.mxu0 %v3143
    %3614 = vmatprep.subr.bf16.mxu0 %v3148
    %3615 = vmatpush1.bf16.msra.mxu0 %v3147
    %3616 = vmatprep.subr.bf16.mxu0 %v3152
    %3617 = vmatpush1.bf16.msra.mxu0 %v3151
    %3618 = vmatprep.subr.bf16.mxu0 %v3156
    %3619 = vmatpush1.bf16.msra.mxu0 %v3155
    %3620 = vmatprep.subr.bf16.mxu0 %v3160
    %3621 = vmatpush1.bf16.msra.mxu0 %v3159
    %3622 = vmatprep.subr.bf16.mxu0 %v3164
    %3623 = vmatpush1.bf16.msra.mxu0 %v3163
    %3624 = vmatprep.subr.bf16.mxu0 %v3168
    %3625 = vmatpush1.bf16.msra.mxu0 %v3167
    %3626 = vmatprep.subr.bf16.mxu0 %v3172
    %3627 = vmatpush1.bf16.msra.mxu0 %v3171
    %3628 = vmatprep.subr.bf16.mxu0 %v3176
    %3629 = vmatpush1.bf16.msra.mxu0 %v3175
    %3630 = vmatprep.subr.bf16.mxu0 %v3180
    %3631 = vmatpush1.bf16.msra.mxu0 %v3179
    %3632 = vmatprep.subr.bf16.mxu0 %v3184
    %3633 = vmatpush1.bf16.msra.mxu0 %v3183
    %3634 = vmatprep.subr.bf16.mxu0 %v3188
    %3635 = vmatpush1.bf16.msra.mxu0 %v3187
    %3636 = vmatprep.subr.bf16.mxu0 %v3192
    %3637 = vmatpush1.bf16.msra.mxu0 %v3191
    %3638 = vmatprep.subr.bf16.mxu0 %v3196
    %3639 = vmatpush1.bf16.msra.mxu0 %v3195
    %3640 = vmatprep.subr.bf16.mxu0 %v3200
    %3641 = vmatpush1.bf16.msra.mxu0 %v3199
    %3642 = vmatprep.subr.bf16.mxu0 %v3204
    %3643 = vmatpush1.bf16.msra.mxu0 %v3203
    %3644 = vmatprep.mubr.bf16.mxu0 %v2430
    %3645 = vmatmul.mubr.bf16.gmra.mrb[0].mxu0 %v2429
    %v3646 = vpop.f32.mrb[0].mxu0
    %v3647 = vadd.f32 %v3604, %v3646
    %v3648 = vpop.f32.mrb[0].mxu0
    %v3649 = vadd.f32 %v3606, %v3648
    %v3650 = vpop.f32.mrb[0].mxu0
    %v3651 = vadd.f32 %v3608, %v3650
    %v3652 = vpop.f32.mrb[0].mxu0
    %v3653 = vadd.f32 %v3610, %v3652
    %3654 = vdwg.mxu0
    %v3655 = vmul.f32 %v3518, %v3518
    %v3656 = vmul.f32 %v3520, %v3520
    %v3657 = vmul.f32 %v3647, %v3647
    %v3658 = vmul.f32 %v3649, %v3649
    %v3659 = vmul.f32 %v3522, %v3522
    %v3660 = vmul.f32 %v3524, %v3524
    %v3661 = vmul.f32 %v3651, %v3651
    %v3662 = vmul.f32 %v3653, %v3653
    %v3663 = vadd.f32 %v3655, %v3656
    %v3664 = vadd.f32 %v3663, %v3657
    %v3665 = vadd.f32 %v3664, %v3658
    %3666 = vadd.xlane.f32.xlu0 %v3665
    %v3667 = vpop.xlane.xlu0 %3666
    %v3668 = vadd.f32 %v3659, %v3660
    %v3669 = vadd.f32 %v3668, %v3661
    %v3670 = vadd.f32 %v3669, %v3662
    %3671 = vadd.xlane.f32.xlu0 %v3670
    %v3672 = vpop.xlane.xlu0 %3671
    %v3673 = vmax.f32 %v3667, 1e-24
    %v3674 = vmax.f32 %v3672, 1e-24
    %v3675 = vrsqrt.pop %v3673
    %v3676 = vrsqrt.pop %v3674
    %v3677 = vmul.f32 %v3518, %v3675
    %v3678 = vmul.f32 %v3520, %v3675
    %v3679 = vmul.f32 %v3647, %v3675
    %v3680 = vmul.f32 %v3649, %v3675
    %v3681 = vmul.f32 %v3522, %v3676
    %v3682 = vmul.f32 %v3524, %v3676
    %v3683 = vmul.f32 %v3651, %v3676
    %v3684 = vmul.f32 %v3653, %v3676
    %v3685 = vpack.c.bf16 %v3681, %v3677
    %v3686 = vpack.c.bf16 %v3682, %v3678
    %v3687 = vpack.c.bf16 %v3683, %v3679
    %v3688 = vpack.c.bf16 %v3684, %v3680
    %v3693 = vunpack.c.l.b16 %v3685
    %v3694 = vunpack.c.l.b16 %v3686
    %v3695 = vunpack.c.l.b16 %v3687
    %v3696 = vunpack.c.l.b16 %v3688
    %v3697 = vunpack.c.h.b16 %v3685
    %v3698 = vunpack.c.h.b16 %v3686
    %v3699 = vunpack.c.h.b16 %v3687
    %v3700 = vunpack.c.h.b16 %v3688
    %v3701 = vpack.c.b16 %v3694, %v3693
    %v3702 = vpack.c.b16 %v3696, %v3695
    %v3703 = vpack.c.b16 %v3698, %v3697
    %v3704 = vpack.c.b16 %v3700, %v3699
    %3709 = vst [vmem:[#allocation7] sm:$0xff] %v3701
    %3710 = vst [vmem:[#allocation7 + $0x8] sm:$0xff] %v3702
    %3711 = vst [vmem:[#allocation7 + $0x10] sm:$0xff] %v3703
    %3712 = vst [vmem:[#allocation7 + $0x18] sm:$0xff] %v3704
    // Predicated region
    $region18: #{tpu_custom_call.1} parent=1 // pred_check
      _
    $region19: #{tpu_custom_call.1} parent=1 // pred_check_branch
      %3714 = sbr.rel (0) target = $region21
    $region20: #{tpu_custom_call.1} parent=1 // pred_region
      %s3716 = ssub.s32 512, 512
      %3717 = vsyncadd [#allocation4], %s3716
      %s3718 = sshll.u32 [#allocation7], 4
      %s3719 = int_to_ptr.vmem [resolvable:$true] %s3718
      %3724 = dma.vmem_to_hbm [thread:$0]  %s3719, 512, %s2, [#allocation4], 256, 256, 16
    $region21: #{tpu_custom_call.1} parent=1 // pred_fallthru
      _
    // Predicated region
    $region22: #{tpu_custom_call.1} parent=1 // pred_check
      _
    $region23: #{tpu_custom_call.1} parent=1 // pred_check_branch
      %3726 = sbr.rel (0) target = $region25
    $region24: #{tpu_custom_call.1} parent=1 // pred_region
      %3727 = dma.done [#allocation4], 512
    $region25: #{tpu_custom_call.1} parent=1 // pred_fallthru
      _
    %3728 = vsyncpa [#allocation3], 1
    %3729 = vsyncpa [#allocation6], 1
    %3730 = vsyncpa [#allocation4], 1

</llo_original>
